<compile_context>
chip_gen: v6e
topology: v6e:2x2x1
jax: 0.10.0
libtpu: 0.0.40
codegen_flags: <defaults>
</compile_context>

<pallas_src>
import functools

import jax
import jax.numpy as jnp
from jax.experimental import pallas as pl
from jax.experimental.pallas import tpu as pltpu


def _mednext_block_kernel(x_ref, vmask_ref, dww_ref, dwb_ref, gng_ref, gnb_ref,
                          w2_ref, b2_ref, w3_ref, b3_ref, o_ref,
                          *, C, H, W, K, do_res, eps):
    P = K // 2
    Wp = W + 2 * P                  # padded row width (stride of the flat layout)
    HWp = H * Wp                    # "center" region: H rows x Wp cols (incl. halo)
    HW = H * W
    CB = (P + 1) * Wp               # flat offset of the first output row

    # ---- depthwise KxK conv: 49 contiguous, unmasked taps --------------------
    acc = jnp.zeros((C, HWp), jnp.float32)
    for dh in range(-P, P + 1):
        for dw in range(-P, P + 1):
            start = CB + dh * Wp + dw           # always in-bounds by construction
            k = (dh + P) * K + (dw + P)
            acc = acc + x_ref[0, :, start:start + HWp] * dww_ref[k]   # (C,1) bcast
    acc = acc + dwb_ref[...]

    # ---- GroupNorm(num_groups=C) stats over the W valid columns per row ------
    vmask = vmask_ref[...]                                   # (1, HWp) in {0, 1}
    inv_hw = 1.0 / float(HW)
    mu = jnp.sum(acc * vmask, axis=-1, keepdims=True) * inv_hw           # (C, 1)
    d = (acc - mu) * vmask
    var = jnp.sum(d * d, axis=-1, keepdims=True) * inv_hw                # (C, 1)
    # Affine folded with the stats: xn = acc*scale + shift  (2 VALU passes).
    scale = gng_ref[...] * jax.lax.rsqrt(var + eps)                      # (C, 1)
    shift = gnb_ref[...] - mu * scale                                    # (C, 1)
    xn = (acc * scale + shift).astype(jnp.bfloat16)

    # ---- 1x1 expand conv + GELU (single-pass bf16 MXU, f32 accumulate) -------
    h = jnp.dot(w2_ref[...], xn,
                preferred_element_type=jnp.float32) + b2_ref[...]
    # TODO(synk): nn.GELU() default is exact erf; erf has no Mosaic lowering, so
    # the tanh approximation is used (max abs deviation ~3e-3).
    h = jax.nn.gelu(h, approximate=True)

    # ---- 1x1 compress conv + residual -----------------------------------------
    y = jnp.dot(w3_ref[...], h.astype(jnp.bfloat16),
                preferred_element_type=jnp.float32) + b3_ref[...]
    if do_res:
        y = y + x_ref[0, :, CB:CB + HWp]        # residual = original x (valid cols)

    # ---- drop the halo columns; output block stays lane-dense in HBM ---------
    for r in range(H):
        o_ref[0, :, r * W:(r + 1) * W] = (
            y[:, r * Wp + P:r * Wp + P + W].astype(o_ref.dtype))


def mednext_block_2d(x, conv1_w, conv1_b, gn_w, gn_b, conv2_w, conv2_b,
                     conv3_w, conv3_b, *, kernel_size=7, use_residual=True,
                     eps=1e-5):
    """Fused MedNeXtBlock forward (dim='2d', norm_type='group').

    Args:
      x:        (N, C, H, W) float32 (PyTorch NCHW layout).
      conv1_w:  (C, 1, K, K) depthwise conv weight (Conv2d, groups=C); conv1_b: (C,)
      gn_w, gn_b: (C,) GroupNorm affine parameters.
      conv2_w:  (E*C, C, 1, 1); conv2_b: (E*C,)
      conv3_w:  (C_out, E*C, 1, 1); conv3_b: (C_out,)
    Returns:
      (N, C_out, H, W) float32.
    """
    N, C, H, W = x.shape
    K = kernel_size
    P = K // 2
    KK = K * K
    Wp = W + 2 * P
    Hp = H + 2 * P + 2            # +2 guard rows so every tap slice is in-bounds
    HWp = H * Wp
    HW = H * W
    L = Hp * Wp
    EC = conv2_w.shape[0]
    Cout = conv3_w.shape[0]
    if use_residual and Cout != C:
        raise ValueError("residual connection requires out_channels == in_channels")

    # Zero-pad the spatial plane once (this is both the conv halo and the
    # residual source); the flat spatial axis stays lane-dense so every
    # depthwise tap is a contiguous slice.
    # TODO(synk): the pad is still a standalone XLA op (one extra HBM pass); an
    # in-kernel strided DMA into a zeroed VMEM scratch would remove it.
    x_pad = jnp.pad(x, ((0, 0), (0, 0), (P + 1, P + 1), (P, P))).reshape(N, C, L)

    # {0,1} mask of the W valid columns inside each padded row of the center.
    col = jnp.arange(HWp, dtype=jnp.int32) % Wp
    vmask = ((col >= P) & (col < P + W)).astype(jnp.float32).reshape(1, HWp)

    # Repack parameters (tiny) so channels sit on sublanes; 1x1-conv weights go
    # to the MXU in bf16 (single-pass path, f32 accumulation).
    dw_w = jnp.transpose(conv1_w.reshape(C, KK), (1, 0))[:, :, None]   # (KK, C, 1)
    dw_b = conv1_b.reshape(C, 1)
    gng = gn_w.reshape(C, 1)
    gnb = gn_b.reshape(C, 1)
    w2 = conv2_w.reshape(EC, C).astype(jnp.bfloat16)
    b2 = conv2_b.reshape(EC, 1)
    w3 = conv3_w.reshape(Cout, EC).astype(jnp.bfloat16)
    b3 = conv3_b.reshape(Cout, 1)

    kernel = functools.partial(_mednext_block_kernel, C=C, H=H, W=W, K=K,
                               do_res=use_residual, eps=eps)

    flops = 2 * N * HWp * (KK * C + EC * C + Cout * EC)
    bytes_accessed = 4 * (N * C * L + N * Cout * HW + HWp
                          + 4 * C + EC + Cout) + 2 * (KK * C + EC * C + Cout * EC)
    cost = pl.CostEstimate(flops=flops, transcendentals=N * EC * HWp,
                           bytes_accessed=bytes_accessed)

    # Explicit scoped-VMEM budget (defaults are only 16/32 MiB), capped at ~85%
    # of the physical VMEM of the current chip generation (v7x has 64 MiB).
    vmem_est = 4 * (2 * C * L + 2 * Cout * HW + 4 * C * HWp + 3 * EC * HWp
                    + 2 * Cout * HWp + 4 * HWp) + (2 << 20)
    try:
        vmem_cap = int(pltpu.get_tpu_info().vmem_capacity_bytes * 0.85)
    except Exception:  # pragma: no cover - conservative fallback
        vmem_cap = 56 * 2**20
    vmem_limit = int(min(max(vmem_est, 32 * 2**20), vmem_cap))

    out_flat = pl.pallas_call(
        kernel,
        out_shape=jax.ShapeDtypeStruct((N, Cout, HW), x.dtype),
        grid_spec=pltpu.PrefetchScalarGridSpec(
            num_scalar_prefetch=0,
            grid=(N,),
            in_specs=[
                pl.BlockSpec((1, C, L), lambda n: (n, 0, 0)),     # padded flat x
                pl.BlockSpec((1, HWp), lambda n: (0, 0)),         # valid-col mask
                pl.BlockSpec((KK, C, 1), lambda n: (0, 0, 0)),    # depthwise w
                pl.BlockSpec((C, 1), lambda n: (0, 0)),           # depthwise b
                pl.BlockSpec((C, 1), lambda n: (0, 0)),           # GN gamma
                pl.BlockSpec((C, 1), lambda n: (0, 0)),           # GN beta
                pl.BlockSpec((EC, C), lambda n: (0, 0)),          # conv2 w (bf16)
                pl.BlockSpec((EC, 1), lambda n: (0, 0)),          # conv2 b
                pl.BlockSpec((Cout, EC), lambda n: (0, 0)),       # conv3 w (bf16)
                pl.BlockSpec((Cout, 1), lambda n: (0, 0)),        # conv3 b
            ],
            out_specs=pl.BlockSpec((1, Cout, HW), lambda n: (n, 0, 0)),
        ),
        compiler_params=pltpu.CompilerParams(
            dimension_semantics=("parallel",),
            vmem_limit_bytes=vmem_limit),
        cost_estimate=cost,
    )(x_pad, vmask, dw_w, dw_b, gng, gnb, w2, b2, w3, b3)

    return out_flat.reshape(N, Cout, H, W)


if __name__ == "__main__":
    key = jax.random.PRNGKey(0)
    N, C, H, W = 2, 8, 16, 16
    expansion = 4
    K = 7
    EC = expansion * C
    Cout = C

    ks = jax.random.split(key, 9)
    x = jax.random.normal(ks[0], (N, C, H, W), dtype=jnp.float32)
    conv1_w = 0.1 * jax.random.normal(ks[1], (C, 1, K, K), dtype=jnp.float32)
    conv1_b = 0.1 * jax.random.normal(ks[2], (C,), dtype=jnp.float32)
    gn_w = 1.0 + 0.1 * jax.random.normal(ks[3], (C,), dtype=jnp.float32)
    gn_b = 0.1 * jax.random.normal(ks[4], (C,), dtype=jnp.float32)
    conv2_w = 0.2 * jax.random.normal(ks[5], (EC, C, 1, 1), dtype=jnp.float32)
    conv2_b = 0.1 * jax.random.normal(ks[6], (EC,), dtype=jnp.float32)
    conv3_w = 0.2 * jax.random.normal(ks[7], (Cout, EC, 1, 1), dtype=jnp.float32)
    conv3_b = 0.1 * jax.random.normal(ks[8], (Cout,), dtype=jnp.float32)

    out = mednext_block_2d(x, conv1_w, conv1_b, gn_w, gn_b, conv2_w, conv2_b,
                           conv3_w, conv3_b, kernel_size=K, use_residual=True)
    out = jax.block_until_ready(out)

    # Pure-JAX f32 reference of the same forward pass.
    hp = jax.lax.Precision.HIGHEST
    P = K // 2
    y = jax.lax.conv_general_dilated(
        x, conv1_w, window_strides=(1, 1), padding=((P, P), (P, P)),
        dimension_numbers=("NCHW", "OIHW", "NCHW"), feature_group_count=C,
        precision=hp)
    y = y + conv1_b[None, :, None, None]
    mu = y.mean(axis=(2, 3), keepdims=True)
    var = y.var(axis=(2, 3), keepdims=True)
    y = (y - mu) / jnp.sqrt(var + 1e-5)
    y = y * gn_w[None, :, None, None] + gn_b[None, :, None, None]
    h = jnp.einsum("oc,nchw->nohw", conv2_w[:, :, 0, 0], y,
                   precision=hp) + conv2_b[None, :, None, None]
    h = jax.nn.gelu(h, approximate=True)
    ref = jnp.einsum("oe,nehw->nohw", conv3_w[:, :, 0, 0], h,
                     precision=hp) + conv3_b[None, :, None, None]
    ref = ref + x

    assert out.shape == (N, Cout, H, W)
    max_err = float(jnp.max(jnp.abs(out - ref)))
    # Tolerance covers the single-pass bf16 MXU path in the kernel vs f32 ref.
    assert jnp.allclose(out, ref, atol=5e-2, rtol=5e-2), max_err
    print("KERNEL_OK")
</pallas_src>

<mosaic_0001>
module attributes {stable_mosaic.version = 11 : i64} {
  func.func @_mednext_block_kernel(%arg0: i32, %arg1: memref<1x8x528xf32, #tpu.memory_space<vmem>>, %arg2: memref<1x352xf32, #tpu.memory_space<vmem>>, %arg3: memref<49x8x1xf32, #tpu.memory_space<vmem>>, %arg4: memref<8x1xf32, #tpu.memory_space<vmem>>, %arg5: memref<8x1xf32, #tpu.memory_space<vmem>>, %arg6: memref<8x1xf32, #tpu.memory_space<vmem>>, %arg7: memref<32x8xbf16, #tpu.memory_space<vmem>>, %arg8: memref<32x1xf32, #tpu.memory_space<vmem>>, %arg9: memref<8x32xbf16, #tpu.memory_space<vmem>>, %arg10: memref<8x1xf32, #tpu.memory_space<vmem>>, %arg11: memref<1x8x256xf32, #tpu.memory_space<vmem>>) attributes {dimension_semantics = [#tpu.dimension_semantics<parallel>], iteration_bounds = array<i64: 2>, scalar_prefetch = 0 : i64, scratch_operands = 0 : i64, tpu.core_type = #tpu.core_type<tc>, window_params = [{transform_indices = @transform_0, window_bounds = array<i64: 1, 8, 528>}, {pipeline_mode = #tpu.pipeline_mode<synchronous>, transform_indices = @transform_1, window_bounds = array<i64: 1, 352>}, {pipeline_mode = #tpu.pipeline_mode<synchronous>, transform_indices = @transform_2, window_bounds = array<i64: 49, 8, 1>}, {pipeline_mode = #tpu.pipeline_mode<synchronous>, transform_indices = @transform_3, window_bounds = array<i64: 8, 1>}, {pipeline_mode = #tpu.pipeline_mode<synchronous>, transform_indices = @transform_4, window_bounds = array<i64: 8, 1>}, {pipeline_mode = #tpu.pipeline_mode<synchronous>, transform_indices = @transform_5, window_bounds = array<i64: 8, 1>}, {pipeline_mode = #tpu.pipeline_mode<synchronous>, transform_indices = @transform_6, window_bounds = array<i64: 32, 8>}, {pipeline_mode = #tpu.pipeline_mode<synchronous>, transform_indices = @transform_7, window_bounds = array<i64: 32, 1>}, {pipeline_mode = #tpu.pipeline_mode<synchronous>, transform_indices = @transform_8, window_bounds = array<i64: 8, 32>}, {pipeline_mode = #tpu.pipeline_mode<synchronous>, transform_indices = @transform_9, window_bounds = array<i64: 8, 1>}, {transform_indices = @transform_10, window_bounds = array<i64: 1, 8, 256>}]} {
    %cst = arith.constant 0.000000e+00 : f32
    %0 = vector.broadcast %cst : f32 to vector<8x352xf32>
    %c0 = arith.constant 0 : index
    %c0_0 = arith.constant 0 : index
    %c19 = arith.constant 19 : index
    %1 = vector.load %arg1[%c0, %c0_0, %c19] : memref<1x8x528xf32, #tpu.memory_space<vmem>>, vector<1x8x352xf32>
    %2 = vector.shape_cast %1 : vector<1x8x352xf32> to vector<8x352xf32>
    %c0_1 = arith.constant 0 : index
    %c0_2 = arith.constant 0 : index
    %c0_3 = arith.constant 0 : index
    %3 = vector.load %arg3[%c0_1, %c0_2, %c0_3] : memref<49x8x1xf32, #tpu.memory_space<vmem>>, vector<1x8x1xf32>
    %4 = vector.shape_cast %3 : vector<1x8x1xf32> to vector<8x1xf32>
    %5 = vector.broadcast %4 : vector<8x1xf32> to vector<8x352xf32>
    %6 = arith.mulf %2, %5 : vector<8x352xf32>
    %7 = arith.addf %0, %6 : vector<8x352xf32>
    %c0_4 = arith.constant 0 : index
    %c0_5 = arith.constant 0 : index
    %c20 = arith.constant 20 : index
    %8 = vector.load %arg1[%c0_4, %c0_5, %c20] : memref<1x8x528xf32, #tpu.memory_space<vmem>>, vector<1x8x352xf32>
    %9 = vector.shape_cast %8 : vector<1x8x352xf32> to vector<8x352xf32>
    %c1 = arith.constant 1 : index
    %c0_6 = arith.constant 0 : index
    %c0_7 = arith.constant 0 : index
    %10 = vector.load %arg3[%c1, %c0_6, %c0_7] : memref<49x8x1xf32, #tpu.memory_space<vmem>>, vector<1x8x1xf32>
    %11 = vector.shape_cast %10 : vector<1x8x1xf32> to vector<8x1xf32>
    %12 = vector.broadcast %11 : vector<8x1xf32> to vector<8x352xf32>
    %13 = arith.mulf %9, %12 : vector<8x352xf32>
    %14 = arith.addf %7, %13 : vector<8x352xf32>
    %c0_8 = arith.constant 0 : index
    %c0_9 = arith.constant 0 : index
    %c21 = arith.constant 21 : index
    %15 = vector.load %arg1[%c0_8, %c0_9, %c21] : memref<1x8x528xf32, #tpu.memory_space<vmem>>, vector<1x8x352xf32>
    %16 = vector.shape_cast %15 : vector<1x8x352xf32> to vector<8x352xf32>
    %c2 = arith.constant 2 : index
    %c0_10 = arith.constant 0 : index
    %c0_11 = arith.constant 0 : index
    %17 = vector.load %arg3[%c2, %c0_10, %c0_11] : memref<49x8x1xf32, #tpu.memory_space<vmem>>, vector<1x8x1xf32>
    %18 = vector.shape_cast %17 : vector<1x8x1xf32> to vector<8x1xf32>
    %19 = vector.broadcast %18 : vector<8x1xf32> to vector<8x352xf32>
    %20 = arith.mulf %16, %19 : vector<8x352xf32>
    %21 = arith.addf %14, %20 : vector<8x352xf32>
    %c0_12 = arith.constant 0 : index
    %c0_13 = arith.constant 0 : index
    %c22 = arith.constant 22 : index
    %22 = vector.load %arg1[%c0_12, %c0_13, %c22] : memref<1x8x528xf32, #tpu.memory_space<vmem>>, vector<1x8x352xf32>
    %23 = vector.shape_cast %22 : vector<1x8x352xf32> to vector<8x352xf32>
    %c3 = arith.constant 3 : index
    %c0_14 = arith.constant 0 : index
    %c0_15 = arith.constant 0 : index
    %24 = vector.load %arg3[%c3, %c0_14, %c0_15] : memref<49x8x1xf32, #tpu.memory_space<vmem>>, vector<1x8x1xf32>
    %25 = vector.shape_cast %24 : vector<1x8x1xf32> to vector<8x1xf32>
    %26 = vector.broadcast %25 : vector<8x1xf32> to vector<8x352xf32>
    %27 = arith.mulf %23, %26 : vector<8x352xf32>
    %28 = arith.addf %21, %27 : vector<8x352xf32>
    %c0_16 = arith.constant 0 : index
    %c0_17 = arith.constant 0 : index
    %c23 = arith.constant 23 : index
    %29 = vector.load %arg1[%c0_16, %c0_17, %c23] : memref<1x8x528xf32, #tpu.memory_space<vmem>>, vector<1x8x352xf32>
    %30 = vector.shape_cast %29 : vector<1x8x352xf32> to vector<8x352xf32>
    %c4 = arith.constant 4 : index
    %c0_18 = arith.constant 0 : index
    %c0_19 = arith.constant 0 : index
    %31 = vector.load %arg3[%c4, %c0_18, %c0_19] : memref<49x8x1xf32, #tpu.memory_space<vmem>>, vector<1x8x1xf32>
    %32 = vector.shape_cast %31 : vector<1x8x1xf32> to vector<8x1xf32>
    %33 = vector.broadcast %32 : vector<8x1xf32> to vector<8x352xf32>
    %34 = arith.mulf %30, %33 : vector<8x352xf32>
    %35 = arith.addf %28, %34 : vector<8x352xf32>
    %c0_20 = arith.constant 0 : index
    %c0_21 = arith.constant 0 : index
    %c24 = arith.constant 24 : index
    %36 = vector.load %arg1[%c0_20, %c0_21, %c24] : memref<1x8x528xf32, #tpu.memory_space<vmem>>, vector<1x8x352xf32>
    %37 = vector.shape_cast %36 : vector<1x8x352xf32> to vector<8x352xf32>
    %c5 = arith.constant 5 : index
    %c0_22 = arith.constant 0 : index
    %c0_23 = arith.constant 0 : index
    %38 = vector.load %arg3[%c5, %c0_22, %c0_23] : memref<49x8x1xf32, #tpu.memory_space<vmem>>, vector<1x8x1xf32>
    %39 = vector.shape_cast %38 : vector<1x8x1xf32> to vector<8x1xf32>
    %40 = vector.broadcast %39 : vector<8x1xf32> to vector<8x352xf32>
    %41 = arith.mulf %37, %40 : vector<8x352xf32>
    %42 = arith.addf %35, %41 : vector<8x352xf32>
    %c0_24 = arith.constant 0 : index
    %c0_25 = arith.constant 0 : index
    %c25 = arith.constant 25 : index
    %43 = vector.load %arg1[%c0_24, %c0_25, %c25] : memref<1x8x528xf32, #tpu.memory_space<vmem>>, vector<1x8x352xf32>
    %44 = vector.shape_cast %43 : vector<1x8x352xf32> to vector<8x352xf32>
    %c6 = arith.constant 6 : index
    %c0_26 = arith.constant 0 : index
    %c0_27 = arith.constant 0 : index
    %45 = vector.load %arg3[%c6, %c0_26, %c0_27] : memref<49x8x1xf32, #tpu.memory_space<vmem>>, vector<1x8x1xf32>
    %46 = vector.shape_cast %45 : vector<1x8x1xf32> to vector<8x1xf32>
    %47 = vector.broadcast %46 : vector<8x1xf32> to vector<8x352xf32>
    %48 = arith.mulf %44, %47 : vector<8x352xf32>
    %49 = arith.addf %42, %48 : vector<8x352xf32>
    %c0_28 = arith.constant 0 : index
    %c0_29 = arith.constant 0 : index
    %c41 = arith.constant 41 : index
    %50 = vector.load %arg1[%c0_28, %c0_29, %c41] : memref<1x8x528xf32, #tpu.memory_space<vmem>>, vector<1x8x352xf32>
    %51 = vector.shape_cast %50 : vector<1x8x352xf32> to vector<8x352xf32>
    %c7 = arith.constant 7 : index
    %c0_30 = arith.constant 0 : index
    %c0_31 = arith.constant 0 : index
    %52 = vector.load %arg3[%c7, %c0_30, %c0_31] : memref<49x8x1xf32, #tpu.memory_space<vmem>>, vector<1x8x1xf32>
    %53 = vector.shape_cast %52 : vector<1x8x1xf32> to vector<8x1xf32>
    %54 = vector.broadcast %53 : vector<8x1xf32> to vector<8x352xf32>
    %55 = arith.mulf %51, %54 : vector<8x352xf32>
    %56 = arith.addf %49, %55 : vector<8x352xf32>
    %c0_32 = arith.constant 0 : index
    %c0_33 = arith.constant 0 : index
    %c42 = arith.constant 42 : index
    %57 = vector.load %arg1[%c0_32, %c0_33, %c42] : memref<1x8x528xf32, #tpu.memory_space<vmem>>, vector<1x8x352xf32>
    %58 = vector.shape_cast %57 : vector<1x8x352xf32> to vector<8x352xf32>
    %c8 = arith.constant 8 : index
    %c0_34 = arith.constant 0 : index
    %c0_35 = arith.constant 0 : index
    %59 = vector.load %arg3[%c8, %c0_34, %c0_35] : memref<49x8x1xf32, #tpu.memory_space<vmem>>, vector<1x8x1xf32>
    %60 = vector.shape_cast %59 : vector<1x8x1xf32> to vector<8x1xf32>
    %61 = vector.broadcast %60 : vector<8x1xf32> to vector<8x352xf32>
    %62 = arith.mulf %58, %61 : vector<8x352xf32>
    %63 = arith.addf %56, %62 : vector<8x352xf32>
    %c0_36 = arith.constant 0 : index
    %c0_37 = arith.constant 0 : index
    %c43 = arith.constant 43 : index
    %64 = vector.load %arg1[%c0_36, %c0_37, %c43] : memref<1x8x528xf32, #tpu.memory_space<vmem>>, vector<1x8x352xf32>
    %65 = vector.shape_cast %64 : vector<1x8x352xf32> to vector<8x352xf32>
    %c9 = arith.constant 9 : index
    %c0_38 = arith.constant 0 : index
    %c0_39 = arith.constant 0 : index
    %66 = vector.load %arg3[%c9, %c0_38, %c0_39] : memref<49x8x1xf32, #tpu.memory_space<vmem>>, vector<1x8x1xf32>
    %67 = vector.shape_cast %66 : vector<1x8x1xf32> to vector<8x1xf32>
    %68 = vector.broadcast %67 : vector<8x1xf32> to vector<8x352xf32>
    %69 = arith.mulf %65, %68 : vector<8x352xf32>
    %70 = arith.addf %63, %69 : vector<8x352xf32>
    %c0_40 = arith.constant 0 : index
    %c0_41 = arith.constant 0 : index
    %c44 = arith.constant 44 : index
    %71 = vector.load %arg1[%c0_40, %c0_41, %c44] : memref<1x8x528xf32, #tpu.memory_space<vmem>>, vector<1x8x352xf32>
    %72 = vector.shape_cast %71 : vector<1x8x352xf32> to vector<8x352xf32>
    %c10 = arith.constant 10 : index
    %c0_42 = arith.constant 0 : index
    %c0_43 = arith.constant 0 : index
    %73 = vector.load %arg3[%c10, %c0_42, %c0_43] : memref<49x8x1xf32, #tpu.memory_space<vmem>>, vector<1x8x1xf32>
    %74 = vector.shape_cast %73 : vector<1x8x1xf32> to vector<8x1xf32>
    %75 = vector.broadcast %74 : vector<8x1xf32> to vector<8x352xf32>
    %76 = arith.mulf %72, %75 : vector<8x352xf32>
    %77 = arith.addf %70, %76 : vector<8x352xf32>
    %c0_44 = arith.constant 0 : index
    %c0_45 = arith.constant 0 : index
    %c45 = arith.constant 45 : index
    %78 = vector.load %arg1[%c0_44, %c0_45, %c45] : memref<1x8x528xf32, #tpu.memory_space<vmem>>, vector<1x8x352xf32>
    %79 = vector.shape_cast %78 : vector<1x8x352xf32> to vector<8x352xf32>
    %c11 = arith.constant 11 : index
    %c0_46 = arith.constant 0 : index
    %c0_47 = arith.constant 0 : index
    %80 = vector.load %arg3[%c11, %c0_46, %c0_47] : memref<49x8x1xf32, #tpu.memory_space<vmem>>, vector<1x8x1xf32>
    %81 = vector.shape_cast %80 : vector<1x8x1xf32> to vector<8x1xf32>
    %82 = vector.broadcast %81 : vector<8x1xf32> to vector<8x352xf32>
    %83 = arith.mulf %79, %82 : vector<8x352xf32>
    %84 = arith.addf %77, %83 : vector<8x352xf32>
    %c0_48 = arith.constant 0 : index
    %c0_49 = arith.constant 0 : index
    %c46 = arith.constant 46 : index
    %85 = vector.load %arg1[%c0_48, %c0_49, %c46] : memref<1x8x528xf32, #tpu.memory_space<vmem>>, vector<1x8x352xf32>
    %86 = vector.shape_cast %85 : vector<1x8x352xf32> to vector<8x352xf32>
    %c12 = arith.constant 12 : index
    %c0_50 = arith.constant 0 : index
    %c0_51 = arith.constant 0 : index
    %87 = vector.load %arg3[%c12, %c0_50, %c0_51] : memref<49x8x1xf32, #tpu.memory_space<vmem>>, vector<1x8x1xf32>
    %88 = vector.shape_cast %87 : vector<1x8x1xf32> to vector<8x1xf32>
    %89 = vector.broadcast %88 : vector<8x1xf32> to vector<8x352xf32>
    %90 = arith.mulf %86, %89 : vector<8x352xf32>
    %91 = arith.addf %84, %90 : vector<8x352xf32>
    %c0_52 = arith.constant 0 : index
    %c0_53 = arith.constant 0 : index
    %c47 = arith.constant 47 : index
    %92 = vector.load %arg1[%c0_52, %c0_53, %c47] : memref<1x8x528xf32, #tpu.memory_space<vmem>>, vector<1x8x352xf32>
    %93 = vector.shape_cast %92 : vector<1x8x352xf32> to vector<8x352xf32>
    %c13 = arith.constant 13 : index
    %c0_54 = arith.constant 0 : index
    %c0_55 = arith.constant 0 : index
    %94 = vector.load %arg3[%c13, %c0_54, %c0_55] : memref<49x8x1xf32, #tpu.memory_space<vmem>>, vector<1x8x1xf32>
    %95 = vector.shape_cast %94 : vector<1x8x1xf32> to vector<8x1xf32>
    %96 = vector.broadcast %95 : vector<8x1xf32> to vector<8x352xf32>
    %97 = arith.mulf %93, %96 : vector<8x352xf32>
    %98 = arith.addf %91, %97 : vector<8x352xf32>
    %c0_56 = arith.constant 0 : index
    %c0_57 = arith.constant 0 : index
    %c63 = arith.constant 63 : index
    %99 = vector.load %arg1[%c0_56, %c0_57, %c63] : memref<1x8x528xf32, #tpu.memory_space<vmem>>, vector<1x8x352xf32>
    %100 = vector.shape_cast %99 : vector<1x8x352xf32> to vector<8x352xf32>
    %c14 = arith.constant 14 : index
    %c0_58 = arith.constant 0 : index
    %c0_59 = arith.constant 0 : index
    %101 = vector.load %arg3[%c14, %c0_58, %c0_59] : memref<49x8x1xf32, #tpu.memory_space<vmem>>, vector<1x8x1xf32>
    %102 = vector.shape_cast %101 : vector<1x8x1xf32> to vector<8x1xf32>
    %103 = vector.broadcast %102 : vector<8x1xf32> to vector<8x352xf32>
    %104 = arith.mulf %100, %103 : vector<8x352xf32>
    %105 = arith.addf %98, %104 : vector<8x352xf32>
    %c0_60 = arith.constant 0 : index
    %c0_61 = arith.constant 0 : index
    %c64 = arith.constant 64 : index
    %106 = vector.load %arg1[%c0_60, %c0_61, %c64] : memref<1x8x528xf32, #tpu.memory_space<vmem>>, vector<1x8x352xf32>
    %107 = vector.shape_cast %106 : vector<1x8x352xf32> to vector<8x352xf32>
    %c15 = arith.constant 15 : index
    %c0_62 = arith.constant 0 : index
    %c0_63 = arith.constant 0 : index
    %108 = vector.load %arg3[%c15, %c0_62, %c0_63] : memref<49x8x1xf32, #tpu.memory_space<vmem>>, vector<1x8x1xf32>
    %109 = vector.shape_cast %108 : vector<1x8x1xf32> to vector<8x1xf32>
    %110 = vector.broadcast %109 : vector<8x1xf32> to vector<8x352xf32>
    %111 = arith.mulf %107, %110 : vector<8x352xf32>
    %112 = arith.addf %105, %111 : vector<8x352xf32>
    %c0_64 = arith.constant 0 : index
    %c0_65 = arith.constant 0 : index
    %c65 = arith.constant 65 : index
    %113 = vector.load %arg1[%c0_64, %c0_65, %c65] : memref<1x8x528xf32, #tpu.memory_space<vmem>>, vector<1x8x352xf32>
    %114 = vector.shape_cast %113 : vector<1x8x352xf32> to vector<8x352xf32>
    %c16 = arith.constant 16 : index
    %c0_66 = arith.constant 0 : index
    %c0_67 = arith.constant 0 : index
    %115 = vector.load %arg3[%c16, %c0_66, %c0_67] : memref<49x8x1xf32, #tpu.memory_space<vmem>>, vector<1x8x1xf32>
    %116 = vector.shape_cast %115 : vector<1x8x1xf32> to vector<8x1xf32>
    %117 = vector.broadcast %116 : vector<8x1xf32> to vector<8x352xf32>
    %118 = arith.mulf %114, %117 : vector<8x352xf32>
    %119 = arith.addf %112, %118 : vector<8x352xf32>
    %c0_68 = arith.constant 0 : index
    %c0_69 = arith.constant 0 : index
    %c66 = arith.constant 66 : index
    %120 = vector.load %arg1[%c0_68, %c0_69, %c66] : memref<1x8x528xf32, #tpu.memory_space<vmem>>, vector<1x8x352xf32>
    %121 = vector.shape_cast %120 : vector<1x8x352xf32> to vector<8x352xf32>
    %c17 = arith.constant 17 : index
    %c0_70 = arith.constant 0 : index
    %c0_71 = arith.constant 0 : index
    %122 = vector.load %arg3[%c17, %c0_70, %c0_71] : memref<49x8x1xf32, #tpu.memory_space<vmem>>, vector<1x8x1xf32>
    %123 = vector.shape_cast %122 : vector<1x8x1xf32> to vector<8x1xf32>
    %124 = vector.broadcast %123 : vector<8x1xf32> to vector<8x352xf32>
    %125 = arith.mulf %121, %124 : vector<8x352xf32>
    %126 = arith.addf %119, %125 : vector<8x352xf32>
    %c0_72 = arith.constant 0 : index
    %c0_73 = arith.constant 0 : index
    %c67 = arith.constant 67 : index
    %127 = vector.load %arg1[%c0_72, %c0_73, %c67] : memref<1x8x528xf32, #tpu.memory_space<vmem>>, vector<1x8x352xf32>
    %128 = vector.shape_cast %127 : vector<1x8x352xf32> to vector<8x352xf32>
    %c18 = arith.constant 18 : index
    %c0_74 = arith.constant 0 : index
    %c0_75 = arith.constant 0 : index
    %129 = vector.load %arg3[%c18, %c0_74, %c0_75] : memref<49x8x1xf32, #tpu.memory_space<vmem>>, vector<1x8x1xf32>
    %130 = vector.shape_cast %129 : vector<1x8x1xf32> to vector<8x1xf32>
    %131 = vector.broadcast %130 : vector<8x1xf32> to vector<8x352xf32>
    %132 = arith.mulf %128, %131 : vector<8x352xf32>
    %133 = arith.addf %126, %132 : vector<8x352xf32>
    %c0_76 = arith.constant 0 : index
    %c0_77 = arith.constant 0 : index
    %c68 = arith.constant 68 : index
    %134 = vector.load %arg1[%c0_76, %c0_77, %c68] : memref<1x8x528xf32, #tpu.memory_space<vmem>>, vector<1x8x352xf32>
    %135 = vector.shape_cast %134 : vector<1x8x352xf32> to vector<8x352xf32>
    %c19_78 = arith.constant 19 : index
    %c0_79 = arith.constant 0 : index
    %c0_80 = arith.constant 0 : index
    %136 = vector.load %arg3[%c19_78, %c0_79, %c0_80] : memref<49x8x1xf32, #tpu.memory_space<vmem>>, vector<1x8x1xf32>
    %137 = vector.shape_cast %136 : vector<1x8x1xf32> to vector<8x1xf32>
    %138 = vector.broadcast %137 : vector<8x1xf32> to vector<8x352xf32>
    %139 = arith.mulf %135, %138 : vector<8x352xf32>
    %140 = arith.addf %133, %139 : vector<8x352xf32>
    %c0_81 = arith.constant 0 : index
    %c0_82 = arith.constant 0 : index
    %c69 = arith.constant 69 : index
    %141 = vector.load %arg1[%c0_81, %c0_82, %c69] : memref<1x8x528xf32, #tpu.memory_space<vmem>>, vector<1x8x352xf32>
    %142 = vector.shape_cast %141 : vector<1x8x352xf32> to vector<8x352xf32>
    %c20_83 = arith.constant 20 : index
    %c0_84 = arith.constant 0 : index
    %c0_85 = arith.constant 0 : index
    %143 = vector.load %arg3[%c20_83, %c0_84, %c0_85] : memref<49x8x1xf32, #tpu.memory_space<vmem>>, vector<1x8x1xf32>
    %144 = vector.shape_cast %143 : vector<1x8x1xf32> to vector<8x1xf32>
    %145 = vector.broadcast %144 : vector<8x1xf32> to vector<8x352xf32>
    %146 = arith.mulf %142, %145 : vector<8x352xf32>
    %147 = arith.addf %140, %146 : vector<8x352xf32>
    %c0_86 = arith.constant 0 : index
    %c0_87 = arith.constant 0 : index
    %c85 = arith.constant 85 : index
    %148 = vector.load %arg1[%c0_86, %c0_87, %c85] : memref<1x8x528xf32, #tpu.memory_space<vmem>>, vector<1x8x352xf32>
    %149 = vector.shape_cast %148 : vector<1x8x352xf32> to vector<8x352xf32>
    %c21_88 = arith.constant 21 : index
    %c0_89 = arith.constant 0 : index
    %c0_90 = arith.constant 0 : index
    %150 = vector.load %arg3[%c21_88, %c0_89, %c0_90] : memref<49x8x1xf32, #tpu.memory_space<vmem>>, vector<1x8x1xf32>
    %151 = vector.shape_cast %150 : vector<1x8x1xf32> to vector<8x1xf32>
    %152 = vector.broadcast %151 : vector<8x1xf32> to vector<8x352xf32>
    %153 = arith.mulf %149, %152 : vector<8x352xf32>
    %154 = arith.addf %147, %153 : vector<8x352xf32>
    %c0_91 = arith.constant 0 : index
    %c0_92 = arith.constant 0 : index
    %c86 = arith.constant 86 : index
    %155 = vector.load %arg1[%c0_91, %c0_92, %c86] : memref<1x8x528xf32, #tpu.memory_space<vmem>>, vector<1x8x352xf32>
    %156 = vector.shape_cast %155 : vector<1x8x352xf32> to vector<8x352xf32>
    %c22_93 = arith.constant 22 : index
    %c0_94 = arith.constant 0 : index
    %c0_95 = arith.constant 0 : index
    %157 = vector.load %arg3[%c22_93, %c0_94, %c0_95] : memref<49x8x1xf32, #tpu.memory_space<vmem>>, vector<1x8x1xf32>
    %158 = vector.shape_cast %157 : vector<1x8x1xf32> to vector<8x1xf32>
    %159 = vector.broadcast %158 : vector<8x1xf32> to vector<8x352xf32>
    %160 = arith.mulf %156, %159 : vector<8x352xf32>
    %161 = arith.addf %154, %160 : vector<8x352xf32>
    %c0_96 = arith.constant 0 : index
    %c0_97 = arith.constant 0 : index
    %c87 = arith.constant 87 : index
    %162 = vector.load %arg1[%c0_96, %c0_97, %c87] : memref<1x8x528xf32, #tpu.memory_space<vmem>>, vector<1x8x352xf32>
    %163 = vector.shape_cast %162 : vector<1x8x352xf32> to vector<8x352xf32>
    %c23_98 = arith.constant 23 : index
    %c0_99 = arith.constant 0 : index
    %c0_100 = arith.constant 0 : index
    %164 = vector.load %arg3[%c23_98, %c0_99, %c0_100] : memref<49x8x1xf32, #tpu.memory_space<vmem>>, vector<1x8x1xf32>
    %165 = vector.shape_cast %164 : vector<1x8x1xf32> to vector<8x1xf32>
    %166 = vector.broadcast %165 : vector<8x1xf32> to vector<8x352xf32>
    %167 = arith.mulf %163, %166 : vector<8x352xf32>
    %168 = arith.addf %161, %167 : vector<8x352xf32>
    %c0_101 = arith.constant 0 : index
    %c0_102 = arith.constant 0 : index
    %c88 = arith.constant 88 : index
    %169 = vector.load %arg1[%c0_101, %c0_102, %c88] : memref<1x8x528xf32, #tpu.memory_space<vmem>>, vector<1x8x352xf32>
    %170 = vector.shape_cast %169 : vector<1x8x352xf32> to vector<8x352xf32>
    %c24_103 = arith.constant 24 : index
    %c0_104 = arith.constant 0 : index
    %c0_105 = arith.constant 0 : index
    %171 = vector.load %arg3[%c24_103, %c0_104, %c0_105] : memref<49x8x1xf32, #tpu.memory_space<vmem>>, vector<1x8x1xf32>
    %172 = vector.shape_cast %171 : vector<1x8x1xf32> to vector<8x1xf32>
    %173 = vector.broadcast %172 : vector<8x1xf32> to vector<8x352xf32>
    %174 = arith.mulf %170, %173 : vector<8x352xf32>
    %175 = arith.addf %168, %174 : vector<8x352xf32>
    %c0_106 = arith.constant 0 : index
    %c0_107 = arith.constant 0 : index
    %c89 = arith.constant 89 : index
    %176 = vector.load %arg1[%c0_106, %c0_107, %c89] : memref<1x8x528xf32, #tpu.memory_space<vmem>>, vector<1x8x352xf32>
    %177 = vector.shape_cast %176 : vector<1x8x352xf32> to vector<8x352xf32>
    %c25_108 = arith.constant 25 : index
    %c0_109 = arith.constant 0 : index
    %c0_110 = arith.constant 0 : index
    %178 = vector.load %arg3[%c25_108, %c0_109, %c0_110] : memref<49x8x1xf32, #tpu.memory_space<vmem>>, vector<1x8x1xf32>
    %179 = vector.shape_cast %178 : vector<1x8x1xf32> to vector<8x1xf32>
    %180 = vector.broadcast %179 : vector<8x1xf32> to vector<8x352xf32>
    %181 = arith.mulf %177, %180 : vector<8x352xf32>
    %182 = arith.addf %175, %181 : vector<8x352xf32>
    %c0_111 = arith.constant 0 : index
    %c0_112 = arith.constant 0 : index
    %c90 = arith.constant 90 : index
    %183 = vector.load %arg1[%c0_111, %c0_112, %c90] : memref<1x8x528xf32, #tpu.memory_space<vmem>>, vector<1x8x352xf32>
    %184 = vector.shape_cast %183 : vector<1x8x352xf32> to vector<8x352xf32>
    %c26 = arith.constant 26 : index
    %c0_113 = arith.constant 0 : index
    %c0_114 = arith.constant 0 : index
    %185 = vector.load %arg3[%c26, %c0_113, %c0_114] : memref<49x8x1xf32, #tpu.memory_space<vmem>>, vector<1x8x1xf32>
    %186 = vector.shape_cast %185 : vector<1x8x1xf32> to vector<8x1xf32>
    %187 = vector.broadcast %186 : vector<8x1xf32> to vector<8x352xf32>
    %188 = arith.mulf %184, %187 : vector<8x352xf32>
    %189 = arith.addf %182, %188 : vector<8x352xf32>
    %c0_115 = arith.constant 0 : index
    %c0_116 = arith.constant 0 : index
    %c91 = arith.constant 91 : index
    %190 = vector.load %arg1[%c0_115, %c0_116, %c91] : memref<1x8x528xf32, #tpu.memory_space<vmem>>, vector<1x8x352xf32>
    %191 = vector.shape_cast %190 : vector<1x8x352xf32> to vector<8x352xf32>
    %c27 = arith.constant 27 : index
    %c0_117 = arith.constant 0 : index
    %c0_118 = arith.constant 0 : index
    %192 = vector.load %arg3[%c27, %c0_117, %c0_118] : memref<49x8x1xf32, #tpu.memory_space<vmem>>, vector<1x8x1xf32>
    %193 = vector.shape_cast %192 : vector<1x8x1xf32> to vector<8x1xf32>
    %194 = vector.broadcast %193 : vector<8x1xf32> to vector<8x352xf32>
    %195 = arith.mulf %191, %194 : vector<8x352xf32>
    %196 = arith.addf %189, %195 : vector<8x352xf32>
    %c0_119 = arith.constant 0 : index
    %c0_120 = arith.constant 0 : index
    %c107 = arith.constant 107 : index
    %197 = vector.load %arg1[%c0_119, %c0_120, %c107] : memref<1x8x528xf32, #tpu.memory_space<vmem>>, vector<1x8x352xf32>
    %198 = vector.shape_cast %197 : vector<1x8x352xf32> to vector<8x352xf32>
    %c28 = arith.constant 28 : index
    %c0_121 = arith.constant 0 : index
    %c0_122 = arith.constant 0 : index
    %199 = vector.load %arg3[%c28, %c0_121, %c0_122] : memref<49x8x1xf32, #tpu.memory_space<vmem>>, vector<1x8x1xf32>
    %200 = vector.shape_cast %199 : vector<1x8x1xf32> to vector<8x1xf32>
    %201 = vector.broadcast %200 : vector<8x1xf32> to vector<8x352xf32>
    %202 = arith.mulf %198, %201 : vector<8x352xf32>
    %203 = arith.addf %196, %202 : vector<8x352xf32>
    %c0_123 = arith.constant 0 : index
    %c0_124 = arith.constant 0 : index
    %c108 = arith.constant 108 : index
    %204 = vector.load %arg1[%c0_123, %c0_124, %c108] : memref<1x8x528xf32, #tpu.memory_space<vmem>>, vector<1x8x352xf32>
    %205 = vector.shape_cast %204 : vector<1x8x352xf32> to vector<8x352xf32>
    %c29 = arith.constant 29 : index
    %c0_125 = arith.constant 0 : index
    %c0_126 = arith.constant 0 : index
    %206 = vector.load %arg3[%c29, %c0_125, %c0_126] : memref<49x8x1xf32, #tpu.memory_space<vmem>>, vector<1x8x1xf32>
    %207 = vector.shape_cast %206 : vector<1x8x1xf32> to vector<8x1xf32>
    %208 = vector.broadcast %207 : vector<8x1xf32> to vector<8x352xf32>
    %209 = arith.mulf %205, %208 : vector<8x352xf32>
    %210 = arith.addf %203, %209 : vector<8x352xf32>
    %c0_127 = arith.constant 0 : index
    %c0_128 = arith.constant 0 : index
    %c109 = arith.constant 109 : index
    %211 = vector.load %arg1[%c0_127, %c0_128, %c109] : memref<1x8x528xf32, #tpu.memory_space<vmem>>, vector<1x8x352xf32>
    %212 = vector.shape_cast %211 : vector<1x8x352xf32> to vector<8x352xf32>
    %c30 = arith.constant 30 : index
    %c0_129 = arith.constant 0 : index
    %c0_130 = arith.constant 0 : index
    %213 = vector.load %arg3[%c30, %c0_129, %c0_130] : memref<49x8x1xf32, #tpu.memory_space<vmem>>, vector<1x8x1xf32>
    %214 = vector.shape_cast %213 : vector<1x8x1xf32> to vector<8x1xf32>
    %215 = vector.broadcast %214 : vector<8x1xf32> to vector<8x352xf32>
    %216 = arith.mulf %212, %215 : vector<8x352xf32>
    %217 = arith.addf %210, %216 : vector<8x352xf32>
    %c0_131 = arith.constant 0 : index
    %c0_132 = arith.constant 0 : index
    %c110 = arith.constant 110 : index
    %218 = vector.load %arg1[%c0_131, %c0_132, %c110] : memref<1x8x528xf32, #tpu.memory_space<vmem>>, vector<1x8x352xf32>
    %219 = vector.shape_cast %218 : vector<1x8x352xf32> to vector<8x352xf32>
    %c31 = arith.constant 31 : index
    %c0_133 = arith.constant 0 : index
    %c0_134 = arith.constant 0 : index
    %220 = vector.load %arg3[%c31, %c0_133, %c0_134] : memref<49x8x1xf32, #tpu.memory_space<vmem>>, vector<1x8x1xf32>
    %221 = vector.shape_cast %220 : vector<1x8x1xf32> to vector<8x1xf32>
    %222 = vector.broadcast %221 : vector<8x1xf32> to vector<8x352xf32>
    %223 = arith.mulf %219, %222 : vector<8x352xf32>
    %224 = arith.addf %217, %223 : vector<8x352xf32>
    %c0_135 = arith.constant 0 : index
    %c0_136 = arith.constant 0 : index
    %c111 = arith.constant 111 : index
    %225 = vector.load %arg1[%c0_135, %c0_136, %c111] : memref<1x8x528xf32, #tpu.memory_space<vmem>>, vector<1x8x352xf32>
    %226 = vector.shape_cast %225 : vector<1x8x352xf32> to vector<8x352xf32>
    %c32 = arith.constant 32 : index
    %c0_137 = arith.constant 0 : index
    %c0_138 = arith.constant 0 : index
    %227 = vector.load %arg3[%c32, %c0_137, %c0_138] : memref<49x8x1xf32, #tpu.memory_space<vmem>>, vector<1x8x1xf32>
    %228 = vector.shape_cast %227 : vector<1x8x1xf32> to vector<8x1xf32>
    %229 = vector.broadcast %228 : vector<8x1xf32> to vector<8x352xf32>
    %230 = arith.mulf %226, %229 : vector<8x352xf32>
    %231 = arith.addf %224, %230 : vector<8x352xf32>
    %c0_139 = arith.constant 0 : index
    %c0_140 = arith.constant 0 : index
    %c112 = arith.constant 112 : index
    %232 = vector.load %arg1[%c0_139, %c0_140, %c112] : memref<1x8x528xf32, #tpu.memory_space<vmem>>, vector<1x8x352xf32>
    %233 = vector.shape_cast %232 : vector<1x8x352xf32> to vector<8x352xf32>
    %c33 = arith.constant 33 : index
    %c0_141 = arith.constant 0 : index
    %c0_142 = arith.constant 0 : index
    %234 = vector.load %arg3[%c33, %c0_141, %c0_142] : memref<49x8x1xf32, #tpu.memory_space<vmem>>, vector<1x8x1xf32>
    %235 = vector.shape_cast %234 : vector<1x8x1xf32> to vector<8x1xf32>
    %236 = vector.broadcast %235 : vector<8x1xf32> to vector<8x352xf32>
    %237 = arith.mulf %233, %236 : vector<8x352xf32>
    %238 = arith.addf %231, %237 : vector<8x352xf32>
    %c0_143 = arith.constant 0 : index
    %c0_144 = arith.constant 0 : index
    %c113 = arith.constant 113 : index
    %239 = vector.load %arg1[%c0_143, %c0_144, %c113] : memref<1x8x528xf32, #tpu.memory_space<vmem>>, vector<1x8x352xf32>
    %240 = vector.shape_cast %239 : vector<1x8x352xf32> to vector<8x352xf32>
    %c34 = arith.constant 34 : index
    %c0_145 = arith.constant 0 : index
    %c0_146 = arith.constant 0 : index
    %241 = vector.load %arg3[%c34, %c0_145, %c0_146] : memref<49x8x1xf32, #tpu.memory_space<vmem>>, vector<1x8x1xf32>
    %242 = vector.shape_cast %241 : vector<1x8x1xf32> to vector<8x1xf32>
    %243 = vector.broadcast %242 : vector<8x1xf32> to vector<8x352xf32>
    %244 = arith.mulf %240, %243 : vector<8x352xf32>
    %245 = arith.addf %238, %244 : vector<8x352xf32>
    %c0_147 = arith.constant 0 : index
    %c0_148 = arith.constant 0 : index
    %c129 = arith.constant 129 : index
    %246 = vector.load %arg1[%c0_147, %c0_148, %c129] : memref<1x8x528xf32, #tpu.memory_space<vmem>>, vector<1x8x352xf32>
    %247 = vector.shape_cast %246 : vector<1x8x352xf32> to vector<8x352xf32>
    %c35 = arith.constant 35 : index
    %c0_149 = arith.constant 0 : index
    %c0_150 = arith.constant 0 : index
    %248 = vector.load %arg3[%c35, %c0_149, %c0_150] : memref<49x8x1xf32, #tpu.memory_space<vmem>>, vector<1x8x1xf32>
    %249 = vector.shape_cast %248 : vector<1x8x1xf32> to vector<8x1xf32>
    %250 = vector.broadcast %249 : vector<8x1xf32> to vector<8x352xf32>
    %251 = arith.mulf %247, %250 : vector<8x352xf32>
    %252 = arith.addf %245, %251 : vector<8x352xf32>
    %c0_151 = arith.constant 0 : index
    %c0_152 = arith.constant 0 : index
    %c130 = arith.constant 130 : index
    %253 = vector.load %arg1[%c0_151, %c0_152, %c130] : memref<1x8x528xf32, #tpu.memory_space<vmem>>, vector<1x8x352xf32>
    %254 = vector.shape_cast %253 : vector<1x8x352xf32> to vector<8x352xf32>
    %c36 = arith.constant 36 : index
    %c0_153 = arith.constant 0 : index
    %c0_154 = arith.constant 0 : index
    %255 = vector.load %arg3[%c36, %c0_153, %c0_154] : memref<49x8x1xf32, #tpu.memory_space<vmem>>, vector<1x8x1xf32>
    %256 = vector.shape_cast %255 : vector<1x8x1xf32> to vector<8x1xf32>
    %257 = vector.broadcast %256 : vector<8x1xf32> to vector<8x352xf32>
    %258 = arith.mulf %254, %257 : vector<8x352xf32>
    %259 = arith.addf %252, %258 : vector<8x352xf32>
    %c0_155 = arith.constant 0 : index
    %c0_156 = arith.constant 0 : index
    %c131 = arith.constant 131 : index
    %260 = vector.load %arg1[%c0_155, %c0_156, %c131] : memref<1x8x528xf32, #tpu.memory_space<vmem>>, vector<1x8x352xf32>
    %261 = vector.shape_cast %260 : vector<1x8x352xf32> to vector<8x352xf32>
    %c37 = arith.constant 37 : index
    %c0_157 = arith.constant 0 : index
    %c0_158 = arith.constant 0 : index
    %262 = vector.load %arg3[%c37, %c0_157, %c0_158] : memref<49x8x1xf32, #tpu.memory_space<vmem>>, vector<1x8x1xf32>
    %263 = vector.shape_cast %262 : vector<1x8x1xf32> to vector<8x1xf32>
    %264 = vector.broadcast %263 : vector<8x1xf32> to vector<8x352xf32>
    %265 = arith.mulf %261, %264 : vector<8x352xf32>
    %266 = arith.addf %259, %265 : vector<8x352xf32>
    %c0_159 = arith.constant 0 : index
    %c0_160 = arith.constant 0 : index
    %c132 = arith.constant 132 : index
    %267 = vector.load %arg1[%c0_159, %c0_160, %c132] : memref<1x8x528xf32, #tpu.memory_space<vmem>>, vector<1x8x352xf32>
    %268 = vector.shape_cast %267 : vector<1x8x352xf32> to vector<8x352xf32>
    %c38 = arith.constant 38 : index
    %c0_161 = arith.constant 0 : index
    %c0_162 = arith.constant 0 : index
    %269 = vector.load %arg3[%c38, %c0_161, %c0_162] : memref<49x8x1xf32, #tpu.memory_space<vmem>>, vector<1x8x1xf32>
    %270 = vector.shape_cast %269 : vector<1x8x1xf32> to vector<8x1xf32>
    %271 = vector.broadcast %270 : vector<8x1xf32> to vector<8x352xf32>
    %272 = arith.mulf %268, %271 : vector<8x352xf32>
    %273 = arith.addf %266, %272 : vector<8x352xf32>
    %c0_163 = arith.constant 0 : index
    %c0_164 = arith.constant 0 : index
    %c133 = arith.constant 133 : index
    %274 = vector.load %arg1[%c0_163, %c0_164, %c133] : memref<1x8x528xf32, #tpu.memory_space<vmem>>, vector<1x8x352xf32>
    %275 = vector.shape_cast %274 : vector<1x8x352xf32> to vector<8x352xf32>
    %c39 = arith.constant 39 : index
    %c0_165 = arith.constant 0 : index
    %c0_166 = arith.constant 0 : index
    %276 = vector.load %arg3[%c39, %c0_165, %c0_166] : memref<49x8x1xf32, #tpu.memory_space<vmem>>, vector<1x8x1xf32>
    %277 = vector.shape_cast %276 : vector<1x8x1xf32> to vector<8x1xf32>
    %278 = vector.broadcast %277 : vector<8x1xf32> to vector<8x352xf32>
    %279 = arith.mulf %275, %278 : vector<8x352xf32>
    %280 = arith.addf %273, %279 : vector<8x352xf32>
    %c0_167 = arith.constant 0 : index
    %c0_168 = arith.constant 0 : index
    %c134 = arith.constant 134 : index
    %281 = vector.load %arg1[%c0_167, %c0_168, %c134] : memref<1x8x528xf32, #tpu.memory_space<vmem>>, vector<1x8x352xf32>
    %282 = vector.shape_cast %281 : vector<1x8x352xf32> to vector<8x352xf32>
    %c40 = arith.constant 40 : index
    %c0_169 = arith.constant 0 : index
    %c0_170 = arith.constant 0 : index
    %283 = vector.load %arg3[%c40, %c0_169, %c0_170] : memref<49x8x1xf32, #tpu.memory_space<vmem>>, vector<1x8x1xf32>
    %284 = vector.shape_cast %283 : vector<1x8x1xf32> to vector<8x1xf32>
    %285 = vector.broadcast %284 : vector<8x1xf32> to vector<8x352xf32>
    %286 = arith.mulf %282, %285 : vector<8x352xf32>
    %287 = arith.addf %280, %286 : vector<8x352xf32>
    %c0_171 = arith.constant 0 : index
    %c0_172 = arith.constant 0 : index
    %c135 = arith.constant 135 : index
    %288 = vector.load %arg1[%c0_171, %c0_172, %c135] : memref<1x8x528xf32, #tpu.memory_space<vmem>>, vector<1x8x352xf32>
    %289 = vector.shape_cast %288 : vector<1x8x352xf32> to vector<8x352xf32>
    %c41_173 = arith.constant 41 : index
    %c0_174 = arith.constant 0 : index
    %c0_175 = arith.constant 0 : index
    %290 = vector.load %arg3[%c41_173, %c0_174, %c0_175] : memref<49x8x1xf32, #tpu.memory_space<vmem>>, vector<1x8x1xf32>
    %291 = vector.shape_cast %290 : vector<1x8x1xf32> to vector<8x1xf32>
    %292 = vector.broadcast %291 : vector<8x1xf32> to vector<8x352xf32>
    %293 = arith.mulf %289, %292 : vector<8x352xf32>
    %294 = arith.addf %287, %293 : vector<8x352xf32>
    %c0_176 = arith.constant 0 : index
    %c0_177 = arith.constant 0 : index
    %c151 = arith.constant 151 : index
    %295 = vector.load %arg1[%c0_176, %c0_177, %c151] : memref<1x8x528xf32, #tpu.memory_space<vmem>>, vector<1x8x352xf32>
    %296 = vector.shape_cast %295 : vector<1x8x352xf32> to vector<8x352xf32>
    %c42_178 = arith.constant 42 : index
    %c0_179 = arith.constant 0 : index
    %c0_180 = arith.constant 0 : index
    %297 = vector.load %arg3[%c42_178, %c0_179, %c0_180] : memref<49x8x1xf32, #tpu.memory_space<vmem>>, vector<1x8x1xf32>
    %298 = vector.shape_cast %297 : vector<1x8x1xf32> to vector<8x1xf32>
    %299 = vector.broadcast %298 : vector<8x1xf32> to vector<8x352xf32>
    %300 = arith.mulf %296, %299 : vector<8x352xf32>
    %301 = arith.addf %294, %300 : vector<8x352xf32>
    %c0_181 = arith.constant 0 : index
    %c0_182 = arith.constant 0 : index
    %c152 = arith.constant 152 : index
    %302 = vector.load %arg1[%c0_181, %c0_182, %c152] : memref<1x8x528xf32, #tpu.memory_space<vmem>>, vector<1x8x352xf32>
    %303 = vector.shape_cast %302 : vector<1x8x352xf32> to vector<8x352xf32>
    %c43_183 = arith.constant 43 : index
    %c0_184 = arith.constant 0 : index
    %c0_185 = arith.constant 0 : index
    %304 = vector.load %arg3[%c43_183, %c0_184, %c0_185] : memref<49x8x1xf32, #tpu.memory_space<vmem>>, vector<1x8x1xf32>
    %305 = vector.shape_cast %304 : vector<1x8x1xf32> to vector<8x1xf32>
    %306 = vector.broadcast %305 : vector<8x1xf32> to vector<8x352xf32>
    %307 = arith.mulf %303, %306 : vector<8x352xf32>
    %308 = arith.addf %301, %307 : vector<8x352xf32>
    %c0_186 = arith.constant 0 : index
    %c0_187 = arith.constant 0 : index
    %c153 = arith.constant 153 : index
    %309 = vector.load %arg1[%c0_186, %c0_187, %c153] : memref<1x8x528xf32, #tpu.memory_space<vmem>>, vector<1x8x352xf32>
    %310 = vector.shape_cast %309 : vector<1x8x352xf32> to vector<8x352xf32>
    %c44_188 = arith.constant 44 : index
    %c0_189 = arith.constant 0 : index
    %c0_190 = arith.constant 0 : index
    %311 = vector.load %arg3[%c44_188, %c0_189, %c0_190] : memref<49x8x1xf32, #tpu.memory_space<vmem>>, vector<1x8x1xf32>
    %312 = vector.shape_cast %311 : vector<1x8x1xf32> to vector<8x1xf32>
    %313 = vector.broadcast %312 : vector<8x1xf32> to vector<8x352xf32>
    %314 = arith.mulf %310, %313 : vector<8x352xf32>
    %315 = arith.addf %308, %314 : vector<8x352xf32>
    %c0_191 = arith.constant 0 : index
    %c0_192 = arith.constant 0 : index
    %c154 = arith.constant 154 : index
    %316 = vector.load %arg1[%c0_191, %c0_192, %c154] : memref<1x8x528xf32, #tpu.memory_space<vmem>>, vector<1x8x352xf32>
    %317 = vector.shape_cast %316 : vector<1x8x352xf32> to vector<8x352xf32>
    %c45_193 = arith.constant 45 : index
    %c0_194 = arith.constant 0 : index
    %c0_195 = arith.constant 0 : index
    %318 = vector.load %arg3[%c45_193, %c0_194, %c0_195] : memref<49x8x1xf32, #tpu.memory_space<vmem>>, vector<1x8x1xf32>
    %319 = vector.shape_cast %318 : vector<1x8x1xf32> to vector<8x1xf32>
    %320 = vector.broadcast %319 : vector<8x1xf32> to vector<8x352xf32>
    %321 = arith.mulf %317, %320 : vector<8x352xf32>
    %322 = arith.addf %315, %321 : vector<8x352xf32>
    %c0_196 = arith.constant 0 : index
    %c0_197 = arith.constant 0 : index
    %c155 = arith.constant 155 : index
    %323 = vector.load %arg1[%c0_196, %c0_197, %c155] : memref<1x8x528xf32, #tpu.memory_space<vmem>>, vector<1x8x352xf32>
    %324 = vector.shape_cast %323 : vector<1x8x352xf32> to vector<8x352xf32>
    %c46_198 = arith.constant 46 : index
    %c0_199 = arith.constant 0 : index
    %c0_200 = arith.constant 0 : index
    %325 = vector.load %arg3[%c46_198, %c0_199, %c0_200] : memref<49x8x1xf32, #tpu.memory_space<vmem>>, vector<1x8x1xf32>
    %326 = vector.shape_cast %325 : vector<1x8x1xf32> to vector<8x1xf32>
    %327 = vector.broadcast %326 : vector<8x1xf32> to vector<8x352xf32>
    %328 = arith.mulf %324, %327 : vector<8x352xf32>
    %329 = arith.addf %322, %328 : vector<8x352xf32>
    %c0_201 = arith.constant 0 : index
    %c0_202 = arith.constant 0 : index
    %c156 = arith.constant 156 : index
    %330 = vector.load %arg1[%c0_201, %c0_202, %c156] : memref<1x8x528xf32, #tpu.memory_space<vmem>>, vector<1x8x352xf32>
    %331 = vector.shape_cast %330 : vector<1x8x352xf32> to vector<8x352xf32>
    %c47_203 = arith.constant 47 : index
    %c0_204 = arith.constant 0 : index
    %c0_205 = arith.constant 0 : index
    %332 = vector.load %arg3[%c47_203, %c0_204, %c0_205] : memref<49x8x1xf32, #tpu.memory_space<vmem>>, vector<1x8x1xf32>
    %333 = vector.shape_cast %332 : vector<1x8x1xf32> to vector<8x1xf32>
    %334 = vector.broadcast %333 : vector<8x1xf32> to vector<8x352xf32>
    %335 = arith.mulf %331, %334 : vector<8x352xf32>
    %336 = arith.addf %329, %335 : vector<8x352xf32>
    %c0_206 = arith.constant 0 : index
    %c0_207 = arith.constant 0 : index
    %c157 = arith.constant 157 : index
    %337 = vector.load %arg1[%c0_206, %c0_207, %c157] : memref<1x8x528xf32, #tpu.memory_space<vmem>>, vector<1x8x352xf32>
    %338 = vector.shape_cast %337 : vector<1x8x352xf32> to vector<8x352xf32>
    %c48 = arith.constant 48 : index
    %c0_208 = arith.constant 0 : index
    %c0_209 = arith.constant 0 : index
    %339 = vector.load %arg3[%c48, %c0_208, %c0_209] : memref<49x8x1xf32, #tpu.memory_space<vmem>>, vector<1x8x1xf32>
    %340 = vector.shape_cast %339 : vector<1x8x1xf32> to vector<8x1xf32>
    %341 = vector.broadcast %340 : vector<8x1xf32> to vector<8x352xf32>
    %342 = arith.mulf %338, %341 : vector<8x352xf32>
    %343 = arith.addf %336, %342 : vector<8x352xf32>
    %c0_210 = arith.constant 0 : index
    %c0_211 = arith.constant 0 : index
    %344 = vector.load %arg4[%c0_210, %c0_211] : memref<8x1xf32, #tpu.memory_space<vmem>>, vector<8x1xf32>
    %345 = vector.broadcast %344 : vector<8x1xf32> to vector<8x352xf32>
    %346 = arith.addf %343, %345 : vector<8x352xf32>
    %c0_212 = arith.constant 0 : index
    %c0_213 = arith.constant 0 : index
    %347 = vector.load %arg2[%c0_212, %c0_213] : memref<1x352xf32, #tpu.memory_space<vmem>>, vector<1x352xf32>
    %348 = vector.broadcast %347 : vector<1x352xf32> to vector<8x352xf32>
    %349 = arith.mulf %346, %348 : vector<8x352xf32>
    %cst_214 = arith.constant dense<0.000000e+00> : vector<8xf32>
    %350 = vector.multi_reduction <add>, %349, %cst_214 [1] : vector<8x352xf32> to vector<8xf32>
    %351 = vector.shape_cast %350 : vector<8xf32> to vector<8x1xf32>
    %cst_215 = arith.constant 3.906250e-03 : f32
    %352 = vector.broadcast %cst_215 : f32 to vector<8x1xf32>
    %353 = arith.mulf %351, %352 : vector<8x1xf32>
    %354 = vector.broadcast %353 : vector<8x1xf32> to vector<8x352xf32>
    %355 = arith.subf %346, %354 : vector<8x352xf32>
    %356 = vector.broadcast %347 : vector<1x352xf32> to vector<8x352xf32>
    %357 = arith.mulf %355, %356 : vector<8x352xf32>
    %358 = arith.mulf %357, %357 : vector<8x352xf32>
    %cst_216 = arith.constant dense<0.000000e+00> : vector<8xf32>
    %359 = vector.multi_reduction <add>, %358, %cst_216 [1] : vector<8x352xf32> to vector<8xf32>
    %360 = vector.shape_cast %359 : vector<8xf32> to vector<8x1xf32>
    %cst_217 = arith.constant 3.906250e-03 : f32
    %361 = vector.broadcast %cst_217 : f32 to vector<8x1xf32>
    %362 = arith.mulf %360, %361 : vector<8x1xf32>
    %c0_218 = arith.constant 0 : index
    %c0_219 = arith.constant 0 : index
    %363 = vector.load %arg5[%c0_218, %c0_219] : memref<8x1xf32, #tpu.memory_space<vmem>>, vector<8x1xf32>
    %cst_220 = arith.constant 9.99999974E-6 : f32
    %364 = vector.broadcast %cst_220 : f32 to vector<8x1xf32>
    %365 = arith.addf %362, %364 : vector<8x1xf32>
    %366 = math.rsqrt %365 : vector<8x1xf32>
    %367 = arith.mulf %363, %366 : vector<8x1xf32>
    %c0_221 = arith.constant 0 : index
    %c0_222 = arith.constant 0 : index
    %368 = vector.load %arg6[%c0_221, %c0_222] : memref<8x1xf32, #tpu.memory_space<vmem>>, vector<8x1xf32>
    %369 = arith.mulf %353, %367 : vector<8x1xf32>
    %370 = arith.subf %368, %369 : vector<8x1xf32>
    %371 = vector.broadcast %367 : vector<8x1xf32> to vector<8x352xf32>
    %372 = arith.mulf %346, %371 : vector<8x352xf32>
    %373 = vector.broadcast %370 : vector<8x1xf32> to vector<8x352xf32>
    %374 = arith.addf %372, %373 : vector<8x352xf32>
    %375 = arith.truncf %374 : vector<8x352xf32> to vector<8x352xbf16>
    %c0_223 = arith.constant 0 : index
    %c0_224 = arith.constant 0 : index
    %376 = vector.load %arg7[%c0_223, %c0_224] : memref<32x8xbf16, #tpu.memory_space<vmem>>, vector<32x8xbf16>
    %cst_225 = arith.constant dense<0.000000e+00> : vector<32x352xf32>
    %377 = tpu.matmul %376, %375, %cst_225 {dimension_numbers = #tpu.dot_dimension_numbers<[1], [0], [0], [1], [0, 0, 1, 1], [], []>} : vector<32x8xbf16>, vector<8x352xbf16>, vector<32x352xf32> -> vector<32x352xf32>
    %c0_226 = arith.constant 0 : index
    %c0_227 = arith.constant 0 : index
    %378 = vector.load %arg8[%c0_226, %c0_227] : memref<32x1xf32, #tpu.memory_space<vmem>>, vector<32x1xf32>
    %379 = vector.broadcast %378 : vector<32x1xf32> to vector<32x352xf32>
    %380 = arith.addf %377, %379 : vector<32x352xf32>
    %381 = arith.mulf %380, %380 : vector<32x352xf32>
    %382 = arith.mulf %380, %381 : vector<32x352xf32>
    %cst_228 = arith.constant 4.471500e-02 : f32
    %383 = vector.broadcast %cst_228 : f32 to vector<32x352xf32>
    %384 = arith.mulf %383, %382 : vector<32x352xf32>
    %385 = arith.addf %380, %384 : vector<32x352xf32>
    %cst_229 = arith.constant 0.797884583 : f32
    %386 = vector.broadcast %cst_229 : f32 to vector<32x352xf32>
    %387 = arith.mulf %386, %385 : vector<32x352xf32>
    %388 = math.tanh %387 : vector<32x352xf32>
    %cst_230 = arith.constant 1.000000e+00 : f32
    %389 = vector.broadcast %cst_230 : f32 to vector<32x352xf32>
    %390 = arith.addf %389, %388 : vector<32x352xf32>
    %cst_231 = arith.constant 5.000000e-01 : f32
    %391 = vector.broadcast %cst_231 : f32 to vector<32x352xf32>
    %392 = arith.mulf %391, %390 : vector<32x352xf32>
    %393 = arith.mulf %380, %392 : vector<32x352xf32>
    %c0_232 = arith.constant 0 : index
    %c0_233 = arith.constant 0 : index
    %394 = vector.load %arg9[%c0_232, %c0_233] : memref<8x32xbf16, #tpu.memory_space<vmem>>, vector<8x32xbf16>
    %395 = arith.truncf %393 : vector<32x352xf32> to vector<32x352xbf16>
    %cst_234 = arith.constant dense<0.000000e+00> : vector<8x352xf32>
    %396 = tpu.matmul %394, %395, %cst_234 {dimension_numbers = #tpu.dot_dimension_numbers<[1], [0], [0], [1], [0, 0, 1, 1], [], []>} : vector<8x32xbf16>, vector<32x352xbf16>, vector<8x352xf32> -> vector<8x352xf32>
    %c0_235 = arith.constant 0 : index
    %c0_236 = arith.constant 0 : index
    %397 = vector.load %arg10[%c0_235, %c0_236] : memref<8x1xf32, #tpu.memory_space<vmem>>, vector<8x1xf32>
    %398 = vector.broadcast %397 : vector<8x1xf32> to vector<8x352xf32>
    %399 = arith.addf %396, %398 : vector<8x352xf32>
    %c0_237 = arith.constant 0 : index
    %c0_238 = arith.constant 0 : index
    %c88_239 = arith.constant 88 : index
    %400 = vector.load %arg1[%c0_237, %c0_238, %c88_239] : memref<1x8x528xf32, #tpu.memory_space<vmem>>, vector<1x8x352xf32>
    %401 = vector.shape_cast %400 : vector<1x8x352xf32> to vector<8x352xf32>
    %402 = arith.addf %399, %401 : vector<8x352xf32>
    %403 = vector.extract_strided_slice %402 {offsets = [0, 3], sizes = [8, 16], strides = [1, 1]} : vector<8x352xf32> to vector<8x16xf32>
    %c0_240 = arith.constant 0 : index
    %c0_241 = arith.constant 0 : index
    %c0_242 = arith.constant 0 : index
    %404 = vector.load %arg11[%c0_240, %c0_241, %c0_242] : memref<1x8x256xf32, #tpu.memory_space<vmem>>, vector<1x8x16xf32>
    %405 = vector.shape_cast %404 : vector<1x8x16xf32> to vector<8x16xf32>
    %406 = vector.shape_cast %403 : vector<8x16xf32> to vector<1x8x16xf32>
    tpu.vector_store %arg11[%c0_240, %c0_241, %c0_242], %406 {strides = array<i32>} : memref<1x8x256xf32, #tpu.memory_space<vmem>>, vector<1x8x16xf32>,
    %407 = vector.extract_strided_slice %402 {offsets = [0, 25], sizes = [8, 16], strides = [1, 1]} : vector<8x352xf32> to vector<8x16xf32>
    %c0_243 = arith.constant 0 : index
    %c0_244 = arith.constant 0 : index
    %c16_245 = arith.constant 16 : index
    %408 = vector.load %arg11[%c0_243, %c0_244, %c16_245] : memref<1x8x256xf32, #tpu.memory_space<vmem>>, vector<1x8x16xf32>
    %409 = vector.shape_cast %408 : vector<1x8x16xf32> to vector<8x16xf32>
    %410 = vector.shape_cast %407 : vector<8x16xf32> to vector<1x8x16xf32>
    tpu.vector_store %arg11[%c0_243, %c0_244, %c16_245], %410 {strides = array<i32>} : memref<1x8x256xf32, #tpu.memory_space<vmem>>, vector<1x8x16xf32>,
    %411 = vector.extract_strided_slice %402 {offsets = [0, 47], sizes = [8, 16], strides = [1, 1]} : vector<8x352xf32> to vector<8x16xf32>
    %c0_246 = arith.constant 0 : index
    %c0_247 = arith.constant 0 : index
    %c32_248 = arith.constant 32 : index
    %412 = vector.load %arg11[%c0_246, %c0_247, %c32_248] : memref<1x8x256xf32, #tpu.memory_space<vmem>>, vector<1x8x16xf32>
    %413 = vector.shape_cast %412 : vector<1x8x16xf32> to vector<8x16xf32>
    %414 = vector.shape_cast %411 : vector<8x16xf32> to vector<1x8x16xf32>
    tpu.vector_store %arg11[%c0_246, %c0_247, %c32_248], %414 {strides = array<i32>} : memref<1x8x256xf32, #tpu.memory_space<vmem>>, vector<1x8x16xf32>,
    %415 = vector.extract_strided_slice %402 {offsets = [0, 69], sizes = [8, 16], strides = [1, 1]} : vector<8x352xf32> to vector<8x16xf32>
    %c0_249 = arith.constant 0 : index
    %c0_250 = arith.constant 0 : index
    %c48_251 = arith.constant 48 : index
    %416 = vector.load %arg11[%c0_249, %c0_250, %c48_251] : memref<1x8x256xf32, #tpu.memory_space<vmem>>, vector<1x8x16xf32>
    %417 = vector.shape_cast %416 : vector<1x8x16xf32> to vector<8x16xf32>
    %418 = vector.shape_cast %415 : vector<8x16xf32> to vector<1x8x16xf32>
    tpu.vector_store %arg11[%c0_249, %c0_250, %c48_251], %418 {strides = array<i32>} : memref<1x8x256xf32, #tpu.memory_space<vmem>>, vector<1x8x16xf32>,
    %419 = vector.extract_strided_slice %402 {offsets = [0, 91], sizes = [8, 16], strides = [1, 1]} : vector<8x352xf32> to vector<8x16xf32>
    %c0_252 = arith.constant 0 : index
    %c0_253 = arith.constant 0 : index
    %c64_254 = arith.constant 64 : index
    %420 = vector.load %arg11[%c0_252, %c0_253, %c64_254] : memref<1x8x256xf32, #tpu.memory_space<vmem>>, vector<1x8x16xf32>
    %421 = vector.shape_cast %420 : vector<1x8x16xf32> to vector<8x16xf32>
    %422 = vector.shape_cast %419 : vector<8x16xf32> to vector<1x8x16xf32>
    tpu.vector_store %arg11[%c0_252, %c0_253, %c64_254], %422 {strides = array<i32>} : memref<1x8x256xf32, #tpu.memory_space<vmem>>, vector<1x8x16xf32>,
    %423 = vector.extract_strided_slice %402 {offsets = [0, 113], sizes = [8, 16], strides = [1, 1]} : vector<8x352xf32> to vector<8x16xf32>
    %c0_255 = arith.constant 0 : index
    %c0_256 = arith.constant 0 : index
    %c80 = arith.constant 80 : index
    %424 = vector.load %arg11[%c0_255, %c0_256, %c80] : memref<1x8x256xf32, #tpu.memory_space<vmem>>, vector<1x8x16xf32>
    %425 = vector.shape_cast %424 : vector<1x8x16xf32> to vector<8x16xf32>
    %426 = vector.shape_cast %423 : vector<8x16xf32> to vector<1x8x16xf32>
    tpu.vector_store %arg11[%c0_255, %c0_256, %c80], %426 {strides = array<i32>} : memref<1x8x256xf32, #tpu.memory_space<vmem>>, vector<1x8x16xf32>,
    %427 = vector.extract_strided_slice %402 {offsets = [0, 135], sizes = [8, 16], strides = [1, 1]} : vector<8x352xf32> to vector<8x16xf32>
    %c0_257 = arith.constant 0 : index
    %c0_258 = arith.constant 0 : index
    %c96 = arith.constant 96 : index
    %428 = vector.load %arg11[%c0_257, %c0_258, %c96] : memref<1x8x256xf32, #tpu.memory_space<vmem>>, vector<1x8x16xf32>
    %429 = vector.shape_cast %428 : vector<1x8x16xf32> to vector<8x16xf32>
    %430 = vector.shape_cast %427 : vector<8x16xf32> to vector<1x8x16xf32>
    tpu.vector_store %arg11[%c0_257, %c0_258, %c96], %430 {strides = array<i32>} : memref<1x8x256xf32, #tpu.memory_space<vmem>>, vector<1x8x16xf32>,
    %431 = vector.extract_strided_slice %402 {offsets = [0, 157], sizes = [8, 16], strides = [1, 1]} : vector<8x352xf32> to vector<8x16xf32>
    %c0_259 = arith.constant 0 : index
    %c0_260 = arith.constant 0 : index
    %c112_261 = arith.constant 112 : index
    %432 = vector.load %arg11[%c0_259, %c0_260, %c112_261] : memref<1x8x256xf32, #tpu.memory_space<vmem>>, vector<1x8x16xf32>
    %433 = vector.shape_cast %432 : vector<1x8x16xf32> to vector<8x16xf32>
    %434 = vector.shape_cast %431 : vector<8x16xf32> to vector<1x8x16xf32>
    tpu.vector_store %arg11[%c0_259, %c0_260, %c112_261], %434 {strides = array<i32>} : memref<1x8x256xf32, #tpu.memory_space<vmem>>, vector<1x8x16xf32>,
    %435 = vector.extract_strided_slice %402 {offsets = [0, 179], sizes = [8, 16], strides = [1, 1]} : vector<8x352xf32> to vector<8x16xf32>
    %c0_262 = arith.constant 0 : index
    %c0_263 = arith.constant 0 : index
    %c128 = arith.constant 128 : index
    %436 = vector.load %arg11[%c0_262, %c0_263, %c128] : memref<1x8x256xf32, #tpu.memory_space<vmem>>, vector<1x8x16xf32>
    %437 = vector.shape_cast %436 : vector<1x8x16xf32> to vector<8x16xf32>
    %438 = vector.shape_cast %435 : vector<8x16xf32> to vector<1x8x16xf32>
    tpu.vector_store %arg11[%c0_262, %c0_263, %c128], %438 {strides = array<i32>} : memref<1x8x256xf32, #tpu.memory_space<vmem>>, vector<1x8x16xf32>,
    %439 = vector.extract_strided_slice %402 {offsets = [0, 201], sizes = [8, 16], strides = [1, 1]} : vector<8x352xf32> to vector<8x16xf32>
    %c0_264 = arith.constant 0 : index
    %c0_265 = arith.constant 0 : index
    %c144 = arith.constant 144 : index
    %440 = vector.load %arg11[%c0_264, %c0_265, %c144] : memref<1x8x256xf32, #tpu.memory_space<vmem>>, vector<1x8x16xf32>
    %441 = vector.shape_cast %440 : vector<1x8x16xf32> to vector<8x16xf32>
    %442 = vector.shape_cast %439 : vector<8x16xf32> to vector<1x8x16xf32>
    tpu.vector_store %arg11[%c0_264, %c0_265, %c144], %442 {strides = array<i32>} : memref<1x8x256xf32, #tpu.memory_space<vmem>>, vector<1x8x16xf32>,
    %443 = vector.extract_strided_slice %402 {offsets = [0, 223], sizes = [8, 16], strides = [1, 1]} : vector<8x352xf32> to vector<8x16xf32>
    %c0_266 = arith.constant 0 : index
    %c0_267 = arith.constant 0 : index
    %c160 = arith.constant 160 : index
    %444 = vector.load %arg11[%c0_266, %c0_267, %c160] : memref<1x8x256xf32, #tpu.memory_space<vmem>>, vector<1x8x16xf32>
    %445 = vector.shape_cast %444 : vector<1x8x16xf32> to vector<8x16xf32>
    %446 = vector.shape_cast %443 : vector<8x16xf32> to vector<1x8x16xf32>
    tpu.vector_store %arg11[%c0_266, %c0_267, %c160], %446 {strides = array<i32>} : memref<1x8x256xf32, #tpu.memory_space<vmem>>, vector<1x8x16xf32>,
    %447 = vector.extract_strided_slice %402 {offsets = [0, 245], sizes = [8, 16], strides = [1, 1]} : vector<8x352xf32> to vector<8x16xf32>
    %c0_268 = arith.constant 0 : index
    %c0_269 = arith.constant 0 : index
    %c176 = arith.constant 176 : index
    %448 = vector.load %arg11[%c0_268, %c0_269, %c176] : memref<1x8x256xf32, #tpu.memory_space<vmem>>, vector<1x8x16xf32>
    %449 = vector.shape_cast %448 : vector<1x8x16xf32> to vector<8x16xf32>
    %450 = vector.shape_cast %447 : vector<8x16xf32> to vector<1x8x16xf32>
    tpu.vector_store %arg11[%c0_268, %c0_269, %c176], %450 {strides = array<i32>} : memref<1x8x256xf32, #tpu.memory_space<vmem>>, vector<1x8x16xf32>,
    %451 = vector.extract_strided_slice %402 {offsets = [0, 267], sizes = [8, 16], strides = [1, 1]} : vector<8x352xf32> to vector<8x16xf32>
    %c0_270 = arith.constant 0 : index
    %c0_271 = arith.constant 0 : index
    %c192 = arith.constant 192 : index
    %452 = vector.load %arg11[%c0_270, %c0_271, %c192] : memref<1x8x256xf32, #tpu.memory_space<vmem>>, vector<1x8x16xf32>
    %453 = vector.shape_cast %452 : vector<1x8x16xf32> to vector<8x16xf32>
    %454 = vector.shape_cast %451 : vector<8x16xf32> to vector<1x8x16xf32>
    tpu.vector_store %arg11[%c0_270, %c0_271, %c192], %454 {strides = array<i32>} : memref<1x8x256xf32, #tpu.memory_space<vmem>>, vector<1x8x16xf32>,
    %455 = vector.extract_strided_slice %402 {offsets = [0, 289], sizes = [8, 16], strides = [1, 1]} : vector<8x352xf32> to vector<8x16xf32>
    %c0_272 = arith.constant 0 : index
    %c0_273 = arith.constant 0 : index
    %c208 = arith.constant 208 : index
    %456 = vector.load %arg11[%c0_272, %c0_273, %c208] : memref<1x8x256xf32, #tpu.memory_space<vmem>>, vector<1x8x16xf32>
    %457 = vector.shape_cast %456 : vector<1x8x16xf32> to vector<8x16xf32>
    %458 = vector.shape_cast %455 : vector<8x16xf32> to vector<1x8x16xf32>
    tpu.vector_store %arg11[%c0_272, %c0_273, %c208], %458 {strides = array<i32>} : memref<1x8x256xf32, #tpu.memory_space<vmem>>, vector<1x8x16xf32>,
    %459 = vector.extract_strided_slice %402 {offsets = [0, 311], sizes = [8, 16], strides = [1, 1]} : vector<8x352xf32> to vector<8x16xf32>
    %c0_274 = arith.constant 0 : index
    %c0_275 = arith.constant 0 : index
    %c224 = arith.constant 224 : index
    %460 = vector.load %arg11[%c0_274, %c0_275, %c224] : memref<1x8x256xf32, #tpu.memory_space<vmem>>, vector<1x8x16xf32>
    %461 = vector.shape_cast %460 : vector<1x8x16xf32> to vector<8x16xf32>
    %462 = vector.shape_cast %459 : vector<8x16xf32> to vector<1x8x16xf32>
    tpu.vector_store %arg11[%c0_274, %c0_275, %c224], %462 {strides = array<i32>} : memref<1x8x256xf32, #tpu.memory_space<vmem>>, vector<1x8x16xf32>,
    %463 = vector.extract_strided_slice %402 {offsets = [0, 333], sizes = [8, 16], strides = [1, 1]} : vector<8x352xf32> to vector<8x16xf32>
    %c0_276 = arith.constant 0 : index
    %c0_277 = arith.constant 0 : index
    %c240 = arith.constant 240 : index
    %464 = vector.load %arg11[%c0_276, %c0_277, %c240] : memref<1x8x256xf32, #tpu.memory_space<vmem>>, vector<1x8x16xf32>
    %465 = vector.shape_cast %464 : vector<1x8x16xf32> to vector<8x16xf32>
    %466 = vector.shape_cast %463 : vector<8x16xf32> to vector<1x8x16xf32>
    tpu.vector_store %arg11[%c0_276, %c0_277, %c240], %466 {strides = array<i32>} : memref<1x8x256xf32, #tpu.memory_space<vmem>>, vector<1x8x16xf32>,
    return
  }
  func.func @transform_0(%arg0: i32) -> (i32, i32, i32) {
    %c0_i32 = arith.constant 0 : i32
    %c0_i32_0 = arith.constant 0 : i32
    %c0_i32_1 = arith.constant 0 : i32
    return %arg0, %c0_i32, %c0_i32_0 : i32, i32, i32
  }
  func.func @transform_1(%arg0: i32) -> (i32, i32) {
    %c0_i32 = arith.constant 0 : i32
    %c0_i32_0 = arith.constant 0 : i32
    %c0_i32_1 = arith.constant 0 : i32
    return %c0_i32, %c0_i32_0 : i32, i32
  }
  func.func @transform_2(%arg0: i32) -> (i32, i32, i32) {
    %c0_i32 = arith.constant 0 : i32
    %c0_i32_0 = arith.constant 0 : i32
    %c0_i32_1 = arith.constant 0 : i32
    %c0_i32_2 = arith.constant 0 : i32
    return %c0_i32, %c0_i32_0, %c0_i32_1 : i32, i32, i32
  }
  func.func @transform_3(%arg0: i32) -> (i32, i32) {
    %c0_i32 = arith.constant 0 : i32
    %c0_i32_0 = arith.constant 0 : i32
    %c0_i32_1 = arith.constant 0 : i32
    return %c0_i32, %c0_i32_0 : i32, i32
  }
  func.func @transform_4(%arg0: i32) -> (i32, i32) {
    %c0_i32 = arith.constant 0 : i32
    %c0_i32_0 = arith.constant 0 : i32
    %c0_i32_1 = arith.constant 0 : i32
    return %c0_i32, %c0_i32_0 : i32, i32
  }
  func.func @transform_5(%arg0: i32) -> (i32, i32) {
    %c0_i32 = arith.constant 0 : i32
    %c0_i32_0 = arith.constant 0 : i32
    %c0_i32_1 = arith.constant 0 : i32
    return %c0_i32, %c0_i32_0 : i32, i32
  }
  func.func @transform_6(%arg0: i32) -> (i32, i32) {
    %c0_i32 = arith.constant 0 : i32
    %c0_i32_0 = arith.constant 0 : i32
    %c0_i32_1 = arith.constant 0 : i32
    return %c0_i32, %c0_i32_0 : i32, i32
  }
  func.func @transform_7(%arg0: i32) -> (i32, i32) {
    %c0_i32 = arith.constant 0 : i32
    %c0_i32_0 = arith.constant 0 : i32
    %c0_i32_1 = arith.constant 0 : i32
    return %c0_i32, %c0_i32_0 : i32, i32
  }
  func.func @transform_8(%arg0: i32) -> (i32, i32) {
    %c0_i32 = arith.constant 0 : i32
    %c0_i32_0 = arith.constant 0 : i32
    %c0_i32_1 = arith.constant 0 : i32
    return %c0_i32, %c0_i32_0 : i32, i32
  }
  func.func @transform_9(%arg0: i32) -> (i32, i32) {
    %c0_i32 = arith.constant 0 : i32
    %c0_i32_0 = arith.constant 0 : i32
    %c0_i32_1 = arith.constant 0 : i32
    return %c0_i32, %c0_i32_0 : i32, i32
  }
  func.func @transform_10(%arg0: i32) -> (i32, i32, i32) {
    %c0_i32 = arith.constant 0 : i32
    %c0_i32_0 = arith.constant 0 : i32
    %c0_i32_1 = arith.constant 0 : i32
    return %arg0, %c0_i32, %c0_i32_0 : i32, i32, i32
  }
}

</mosaic_0001>

<llo_original>
// kernel: tpu_custom_call.1
$region0: #{tpu_custom_call.1}
  #allocation0 [shape = 'u32[]', space=smem, size = 0x4, offset = 0x4, fixed_abs, tag = 'smem constant byte address 0x4 - core index']
  #allocation1 [shape = 'u32[144,128]{1,0:T(1,128)}', space=vmem, size = 0x12000, scoped, tag = 'internal scratch']
  %s0 = inlined_call_operand.vmem [shape: f32[2,8,528], index: 0, kind: input, shape index: {}]
  %s1 = inlined_call_operand.vmem [shape: f32[1,352], index: 1, kind: input, shape index: {}]
  %s2 = inlined_call_operand.vmem [shape: f32[49,8,1], index: 2, kind: input, shape index: {}]
  %s3 = inlined_call_operand.vmem [shape: f32[8,1], index: 3, kind: input, shape index: {}]
  %s4 = inlined_call_operand.vmem [shape: f32[8,1], index: 4, kind: input, shape index: {}]
  %s5 = inlined_call_operand.vmem [shape: f32[8,1], index: 5, kind: input, shape index: {}]
  %s6 = inlined_call_operand.vmem [shape: bf16[32,8], index: 6, kind: input, shape index: {}]
  %s7 = inlined_call_operand.vmem [shape: f32[32,1], index: 7, kind: input, shape index: {}]
  %s8 = inlined_call_operand.vmem [shape: bf16[8,32], index: 8, kind: input, shape index: {}]
  %s9 = inlined_call_operand.vmem [shape: f32[8,1], index: 9, kind: input, shape index: {}]
  %s10 = inlined_call_operand.hbm [shape: f32[2,8,256], index: 10, kind: output, shape index: {}]
  %s11 = sld [smem:[#allocation0]]
  $region73: #{tpu_custom_call.1} parent=0
    _
  %s13 = ssub.s32 1, %s11
  %s14 = scalar_select 0, %s13, %s11
  $region1: #{tpu_custom_call.1} parent=0
    #allocation2 [shape = 'u8[16384]{0}', space=vmem, size = 0x4000, scoped, tag = 'output window, operand 0']
    #allocation3 [shape = 's32[2]{0}', space=sflag, size = 0x8, scoped, tag = 'scoped memory for tpu_custom_call.1']
    %15 = vsyncpa [#allocation3], 0
    %s16 = scalar_lea.sflag [#allocation3], 1
    %17 = vsyncpa %s16, 0
    loop: start=0, step=1, limit=4
    $region2: #{tpu_custom_call.1} parent=1 // loop_pre_header
      _
    $region3: #{tpu_custom_call.1} parent=1 // loop_header
      %s19 = sphi 0, %s23
      %p20 = scmp.ge.s32.totalorder %s19, 4
      %s29 = sphi 0, %s31
      %s32 = sphi 0, %s29
      %s33 = sphi 0, %s32
      %s49 = sphi 0, %s33
      %s53 = sphi 0, %s53
      %s55 = sphi 0, %s53
      %s56 = sphi 0, %s55
      %s70 = sphi 0, %s56
      %s74 = sphi 0, %s74
      %s76 = sphi 0, %s74
      %s77 = sphi 0, %s76
      %s91 = sphi 0, %s77
      %s95 = sphi 0, %s95
      %s97 = sphi 0, %s95
      %s98 = sphi 0, %s97
      %s112 = sphi 0, %s98
      %s116 = sphi 0, %s116
      %s118 = sphi 0, %s116
      %s119 = sphi 0, %s118
      %s133 = sphi 0, %s119
      %s137 = sphi 0, %s137
      %s139 = sphi 0, %s137
      %s140 = sphi 0, %s139
      %s154 = sphi 0, %s140
      %s158 = sphi 0, %s158
      %s160 = sphi 0, %s158
      %s161 = sphi 0, %s160
      %s175 = sphi 0, %s161
      %s179 = sphi 0, %s179
      %s181 = sphi 0, %s179
      %s182 = sphi 0, %s181
      %s196 = sphi 0, %s182
      %s200 = sphi 0, %s200
      %s202 = sphi 0, %s200
      %s203 = sphi 0, %s202
      %s217 = sphi 0, %s203
      %s221 = sphi 0, %s221
      %s223 = sphi 0, %s221
      %s224 = sphi 0, %s223
      %s238 = sphi 0, %s224
      %s244 = sphi 0, %s246
      %s247 = sphi 0, %s244
      %s248 = sphi 0, %s247
      %s264 = sphi 0, %s248
    $region4: #{tpu_custom_call.1} parent=1 // loop_header_branch
      %22 = sbr.rel (%p20) target = $region8
    $region5: #{tpu_custom_call.1} parent=1 // loop_body
      %s24 = ssub.s32 %s19, 1
      %s25 = ssub.s32 %s19, 2
      %s26 = sadd.s32 %s19, 1
      %s27 = ssub.s32 %s19, %s26
      %p28 = scmp.eq.s32.totalorder %s27, 0
      %s30 = sadd.s32 %s29, 1
      %s31 = scalar_select %p28, %s29, %s30
      %p34 = pneg %p28
      %p35 = scmp.eq.s32.totalorder %s19, 1
      %p36 = por %p34, %p35
      %p37 = scmp.ne.s32.totalorder %s29, %s32
      %p38 = scmp.eq.s32.totalorder %s19, 0
      %p39 = por %p37, %p38
      %p40 = scmp.ne.s32.totalorder %s29, %s32
      %p41 = scmp.eq.s32.totalorder %s24, 1
      %p42 = por %p40, %p41
      %p43 = scmp.ne.s32.totalorder %s32, %s33
      %p44 = scmp.eq.s32.totalorder %s24, 0
      %p45 = por %p43, %p44
      %p46 = scmp.ne.s32.totalorder %s32, %s33
      %p47 = scmp.eq.s32.totalorder %s25, 1
      %p48 = por %p46, %p47
      %p50 = scmp.ne.s32.totalorder %s33, %s49
      %p51 = scmp.eq.s32.totalorder %s25, 0
      %p52 = por %p50, %p51
      %s54 = sadd.s32 %s53, 1
      %p57 = scmp.eq.s32.totalorder %s19, 1
      %p58 = scmp.ne.s32.totalorder %s53, %s55
      %p59 = scmp.eq.s32.totalorder %s19, 0
      %p60 = por %p58, %p59
      %p61 = scmp.ne.s32.totalorder %s53, %s55
      %p62 = scmp.eq.s32.totalorder %s24, 1
      %p63 = por %p61, %p62
      %p64 = scmp.ne.s32.totalorder %s55, %s56
      %p65 = scmp.eq.s32.totalorder %s24, 0
      %p66 = por %p64, %p65
      %p67 = scmp.ne.s32.totalorder %s55, %s56
      %p68 = scmp.eq.s32.totalorder %s25, 1
      %p69 = por %p67, %p68
      %p71 = scmp.ne.s32.totalorder %s56, %s70
      %p72 = scmp.eq.s32.totalorder %s25, 0
      %p73 = por %p71, %p72
      %s75 = sadd.s32 %s74, 1
      %p78 = scmp.eq.s32.totalorder %s19, 1
      %p79 = scmp.ne.s32.totalorder %s74, %s76
      %p80 = scmp.eq.s32.totalorder %s19, 0
      %p81 = por %p79, %p80
      %p82 = scmp.ne.s32.totalorder %s74, %s76
      %p83 = scmp.eq.s32.totalorder %s24, 1
      %p84 = por %p82, %p83
      %p85 = scmp.ne.s32.totalorder %s76, %s77
      %p86 = scmp.eq.s32.totalorder %s24, 0
      %p87 = por %p85, %p86
      %p88 = scmp.ne.s32.totalorder %s76, %s77
      %p89 = scmp.eq.s32.totalorder %s25, 1
      %p90 = por %p88, %p89
      %p92 = scmp.ne.s32.totalorder %s77, %s91
      %p93 = scmp.eq.s32.totalorder %s25, 0
      %p94 = por %p92, %p93
      %s96 = sadd.s32 %s95, 1
      %p99 = scmp.eq.s32.totalorder %s19, 1
      %p100 = scmp.ne.s32.totalorder %s95, %s97
      %p101 = scmp.eq.s32.totalorder %s19, 0
      %p102 = por %p100, %p101
      %p103 = scmp.ne.s32.totalorder %s95, %s97
      %p104 = scmp.eq.s32.totalorder %s24, 1
      %p105 = por %p103, %p104
      %p106 = scmp.ne.s32.totalorder %s97, %s98
      %p107 = scmp.eq.s32.totalorder %s24, 0
      %p108 = por %p106, %p107
      %p109 = scmp.ne.s32.totalorder %s97, %s98
      %p110 = scmp.eq.s32.totalorder %s25, 1
      %p111 = por %p109, %p110
      %p113 = scmp.ne.s32.totalorder %s98, %s112
      %p114 = scmp.eq.s32.totalorder %s25, 0
      %p115 = por %p113, %p114
      %s117 = sadd.s32 %s116, 1
      %p120 = scmp.eq.s32.totalorder %s19, 1
      %p121 = scmp.ne.s32.totalorder %s116, %s118
      %p122 = scmp.eq.s32.totalorder %s19, 0
      %p123 = por %p121, %p122
      %p124 = scmp.ne.s32.totalorder %s116, %s118
      %p125 = scmp.eq.s32.totalorder %s24, 1
      %p126 = por %p124, %p125
      %p127 = scmp.ne.s32.totalorder %s118, %s119
      %p128 = scmp.eq.s32.totalorder %s24, 0
      %p129 = por %p127, %p128
      %p130 = scmp.ne.s32.totalorder %s118, %s119
      %p131 = scmp.eq.s32.totalorder %s25, 1
      %p132 = por %p130, %p131
      %p134 = scmp.ne.s32.totalorder %s119, %s133
      %p135 = scmp.eq.s32.totalorder %s25, 0
      %p136 = por %p134, %p135
      %s138 = sadd.s32 %s137, 1
      %p141 = scmp.eq.s32.totalorder %s19, 1
      %p142 = scmp.ne.s32.totalorder %s137, %s139
      %p143 = scmp.eq.s32.totalorder %s19, 0
      %p144 = por %p142, %p143
      %p145 = scmp.ne.s32.totalorder %s137, %s139
      %p146 = scmp.eq.s32.totalorder %s24, 1
      %p147 = por %p145, %p146
      %p148 = scmp.ne.s32.totalorder %s139, %s140
      %p149 = scmp.eq.s32.totalorder %s24, 0
      %p150 = por %p148, %p149
      %p151 = scmp.ne.s32.totalorder %s139, %s140
      %p152 = scmp.eq.s32.totalorder %s25, 1
      %p153 = por %p151, %p152
      %p155 = scmp.ne.s32.totalorder %s140, %s154
      %p156 = scmp.eq.s32.totalorder %s25, 0
      %p157 = por %p155, %p156
      %s159 = sadd.s32 %s158, 1
      %p162 = scmp.eq.s32.totalorder %s19, 1
      %p163 = scmp.ne.s32.totalorder %s158, %s160
      %p164 = scmp.eq.s32.totalorder %s19, 0
      %p165 = por %p163, %p164
      %p166 = scmp.ne.s32.totalorder %s158, %s160
      %p167 = scmp.eq.s32.totalorder %s24, 1
      %p168 = por %p166, %p167
      %p169 = scmp.ne.s32.totalorder %s160, %s161
      %p170 = scmp.eq.s32.totalorder %s24, 0
      %p171 = por %p169, %p170
      %p172 = scmp.ne.s32.totalorder %s160, %s161
      %p173 = scmp.eq.s32.totalorder %s25, 1
      %p174 = por %p172, %p173
      %p176 = scmp.ne.s32.totalorder %s161, %s175
      %p177 = scmp.eq.s32.totalorder %s25, 0
      %p178 = por %p176, %p177
      %s180 = sadd.s32 %s179, 1
      %p183 = scmp.eq.s32.totalorder %s19, 1
      %p184 = scmp.ne.s32.totalorder %s179, %s181
      %p185 = scmp.eq.s32.totalorder %s19, 0
      %p186 = por %p184, %p185
      %p187 = scmp.ne.s32.totalorder %s179, %s181
      %p188 = scmp.eq.s32.totalorder %s24, 1
      %p189 = por %p187, %p188
      %p190 = scmp.ne.s32.totalorder %s181, %s182
      %p191 = scmp.eq.s32.totalorder %s24, 0
      %p192 = por %p190, %p191
      %p193 = scmp.ne.s32.totalorder %s181, %s182
      %p194 = scmp.eq.s32.totalorder %s25, 1
      %p195 = por %p193, %p194
      %p197 = scmp.ne.s32.totalorder %s182, %s196
      %p198 = scmp.eq.s32.totalorder %s25, 0
      %p199 = por %p197, %p198
      %s201 = sadd.s32 %s200, 1
      %p204 = scmp.eq.s32.totalorder %s19, 1
      %p205 = scmp.ne.s32.totalorder %s200, %s202
      %p206 = scmp.eq.s32.totalorder %s19, 0
      %p207 = por %p205, %p206
      %p208 = scmp.ne.s32.totalorder %s200, %s202
      %p209 = scmp.eq.s32.totalorder %s24, 1
      %p210 = por %p208, %p209
      %p211 = scmp.ne.s32.totalorder %s202, %s203
      %p212 = scmp.eq.s32.totalorder %s24, 0
      %p213 = por %p211, %p212
      %p214 = scmp.ne.s32.totalorder %s202, %s203
      %p215 = scmp.eq.s32.totalorder %s25, 1
      %p216 = por %p214, %p215
      %p218 = scmp.ne.s32.totalorder %s203, %s217
      %p219 = scmp.eq.s32.totalorder %s25, 0
      %p220 = por %p218, %p219
      %s222 = sadd.s32 %s221, 1
      %p225 = scmp.eq.s32.totalorder %s19, 1
      %p226 = scmp.ne.s32.totalorder %s221, %s223
      %p227 = scmp.eq.s32.totalorder %s19, 0
      %p228 = por %p226, %p227
      %p229 = scmp.ne.s32.totalorder %s221, %s223
      %p230 = scmp.eq.s32.totalorder %s24, 1
      %p231 = por %p229, %p230
      %p232 = scmp.ne.s32.totalorder %s223, %s224
      %p233 = scmp.eq.s32.totalorder %s24, 0
      %p234 = por %p232, %p233
      %p235 = scmp.ne.s32.totalorder %s223, %s224
      %p236 = scmp.eq.s32.totalorder %s25, 1
      %p237 = por %p235, %p236
      %p239 = scmp.ne.s32.totalorder %s224, %s238
      %p240 = scmp.eq.s32.totalorder %s25, 0
      %p241 = por %p239, %p240
      %s242 = ssub.s32 %s19, %s26
      %p243 = scmp.eq.s32.totalorder %s242, 0
      %s245 = sadd.s32 %s244, 1
      %s246 = scalar_select %p243, %s244, %s245
      %p249 = pneg %p243
      %p250 = scmp.eq.s32.totalorder %s19, 1
      %p251 = por %p249, %p250
      %p252 = scmp.ne.s32.totalorder %s244, %s247
      %p253 = scmp.eq.s32.totalorder %s19, 0
      %p254 = por %p252, %p253
      %p255 = scmp.ne.s32.totalorder %s244, %s247
      %p256 = scmp.eq.s32.totalorder %s24, 1
      %p257 = por %p255, %p256
      %p258 = scmp.ne.s32.totalorder %s247, %s248
      %p259 = scmp.eq.s32.totalorder %s24, 0
      %p260 = por %p258, %p259
      %p261 = scmp.ne.s32.totalorder %s247, %s248
      %p262 = scmp.eq.s32.totalorder %s25, 1
      %p263 = por %p261, %p262
      %p265 = scmp.ne.s32.totalorder %s248, %s264
      %p266 = scmp.eq.s32.totalorder %s25, 0
      %p267 = por %p265, %p266
      %p268 = scmp.le.s32.totalorder 1, %s19
      %p269 = scmp.lt.s32.totalorder %s19, 3
      %p270 = pnand %p268, %p269
      %p271 = pneg %p270
      // Predicated region
      $region9: #{tpu_custom_call.1} parent=5 // pred_check
        _
      $region10: #{tpu_custom_call.1} parent=5 // pred_check_branch
        %273 = sbr.rel (%p270) target = $region12
      $region11: #{tpu_custom_call.1} parent=5 // pred_region
        %s274 = ssub.s32 %s19, 1
        // Predicated region
        $region13: #{tpu_custom_call.1} parent=11 // pred_check
          %p275 = pneg %p66
        $region14: #{tpu_custom_call.1} parent=11 // pred_check_branch
          %277 = sbr.rel (%p275) target = $region16
        $region15: #{tpu_custom_call.1} parent=11 // pred_region
          _
        $region16: #{tpu_custom_call.1} parent=11 // pred_fallthru
          _
        // Predicated region
        $region17: #{tpu_custom_call.1} parent=11 // pred_check
          %p278 = pneg %p87
        $region18: #{tpu_custom_call.1} parent=11 // pred_check_branch
          %280 = sbr.rel (%p278) target = $region20
        $region19: #{tpu_custom_call.1} parent=11 // pred_region
          _
        $region20: #{tpu_custom_call.1} parent=11 // pred_fallthru
          _
        // Predicated region
        $region21: #{tpu_custom_call.1} parent=11 // pred_check
          %p281 = pneg %p108
        $region22: #{tpu_custom_call.1} parent=11 // pred_check_branch
          %283 = sbr.rel (%p281) target = $region24
        $region23: #{tpu_custom_call.1} parent=11 // pred_region
          _
        $region24: #{tpu_custom_call.1} parent=11 // pred_fallthru
          _
        // Predicated region
        $region25: #{tpu_custom_call.1} parent=11 // pred_check
          %p284 = pneg %p129
        $region26: #{tpu_custom_call.1} parent=11 // pred_check_branch
          %286 = sbr.rel (%p284) target = $region28
        $region27: #{tpu_custom_call.1} parent=11 // pred_region
          _
        $region28: #{tpu_custom_call.1} parent=11 // pred_fallthru
          _
        // Predicated region
        $region29: #{tpu_custom_call.1} parent=11 // pred_check
          %p287 = pneg %p150
        $region30: #{tpu_custom_call.1} parent=11 // pred_check_branch
          %289 = sbr.rel (%p287) target = $region32
        $region31: #{tpu_custom_call.1} parent=11 // pred_region
          _
        $region32: #{tpu_custom_call.1} parent=11 // pred_fallthru
          _
        // Predicated region
        $region33: #{tpu_custom_call.1} parent=11 // pred_check
          %p290 = pneg %p171
        $region34: #{tpu_custom_call.1} parent=11 // pred_check_branch
          %292 = sbr.rel (%p290) target = $region36
        $region35: #{tpu_custom_call.1} parent=11 // pred_region
          _
        $region36: #{tpu_custom_call.1} parent=11 // pred_fallthru
          _
        // Predicated region
        $region37: #{tpu_custom_call.1} parent=11 // pred_check
          %p293 = pneg %p192
        $region38: #{tpu_custom_call.1} parent=11 // pred_check_branch
          %295 = sbr.rel (%p293) target = $region40
        $region39: #{tpu_custom_call.1} parent=11 // pred_region
          _
        $region40: #{tpu_custom_call.1} parent=11 // pred_fallthru
          _
        // Predicated region
        $region41: #{tpu_custom_call.1} parent=11 // pred_check
          %p296 = pneg %p213
        $region42: #{tpu_custom_call.1} parent=11 // pred_check_branch
          %298 = sbr.rel (%p296) target = $region44
        $region43: #{tpu_custom_call.1} parent=11 // pred_region
          _
        $region44: #{tpu_custom_call.1} parent=11 // pred_fallthru
          _
        // Predicated region
        $region45: #{tpu_custom_call.1} parent=11 // pred_check
          %p299 = pneg %p234
        $region46: #{tpu_custom_call.1} parent=11 // pred_check_branch
          %301 = sbr.rel (%p299) target = $region48
        $region47: #{tpu_custom_call.1} parent=11 // pred_region
          _
        $region48: #{tpu_custom_call.1} parent=11 // pred_fallthru
          _
      $region12: #{tpu_custom_call.1} parent=5 // pred_fallthru
        _
      %p302 = scmp.lt.s32.totalorder %s19, 2
      // Predicated region
      $region49: #{tpu_custom_call.1} parent=5 // pred_check
        %p303 = pneg %p302
      $region50: #{tpu_custom_call.1} parent=5 // pred_check_branch
        %305 = sbr.rel (%p303) target = $region52
      $region51: #{tpu_custom_call.1} parent=5 // pred_region
        // Predicated region
        $region53: #{tpu_custom_call.1} parent=51 // pred_check
          %p306 = pneg %p39
        $region54: #{tpu_custom_call.1} parent=51 // pred_check_branch
          %308 = sbr.rel (%p306) target = $region56
        $region55: #{tpu_custom_call.1} parent=51 // pred_region
          %p309 = scmp.lt.s32.totalorder %s19, 1
          %s310 = scalar_select %p309, %s19, 1
          %s311 = smul.addr %s310, 5
          %s312 = smul.addr %s311, 8
          %s313 = scalar_lea.vmem %s0, %s312
        $region56: #{tpu_custom_call.1} parent=51 // pred_fallthru
          _
      $region52: #{tpu_custom_call.1} parent=5 // pred_fallthru
        _
      %p314 = scmp.le.s32.totalorder 1, %s19
      %p315 = scmp.lt.s32.totalorder %s19, 3
      %p316 = pnand %p314, %p315
      %p317 = pneg %p316
      // Predicated region
      $region57: #{tpu_custom_call.1} parent=5 // pred_check
        _
      $region58: #{tpu_custom_call.1} parent=5 // pred_check_branch
        %319 = sbr.rel (%p316) target = $region60
      $region59: #{tpu_custom_call.1} parent=5 // pred_region
        %s320 = ssub.s32 %s19, 1
        %p321 = scmp.lt.s32.totalorder %s24, 1
        %s322 = scalar_select %p321, %s24, 1
        %s323 = smul.addr %s322, 5
        %s324 = smul.addr %s323, 8
        %s325 = scalar_lea.vmem %s0, %s324
        %p326 = pneg %p45
        %p327 = pneg %p42
        %p328 = pneg %p66
        %p329 = pneg %p63
        %p330 = pneg %p87
        %p331 = pneg %p84
        %p332 = pneg %p108
        %p333 = pneg %p105
        %p334 = pneg %p129
        %p335 = pneg %p126
        %p336 = pneg %p150
        %p337 = pneg %p147
        %p338 = pneg %p171
        %p339 = pneg %p168
        %p340 = pneg %p192
        %p341 = pneg %p189
        %p342 = pneg %p213
        %p343 = pneg %p210
        %p344 = pneg %p234
        %p345 = pneg %p231
        %p346 = pneg %p260
        %p347 = pneg %p257
        %s348 = sand.u32 %s247, 1
        %s349 = scalar_lea.sflag [#allocation3], %s348
        %s350 = sand.u32 %s247, 1
        %s351 = smul.addr %s350, 16
        %s352 = scalar_lea.vmem [#allocation2], %s351
        %p353 = scmp.lt.s32.totalorder %s24, 1
        %s354 = scalar_select %p353, %s24, 1
        %s355 = smul.addr %s354, 5
        %s356 = smul.addr %s355, 8
        %s357 = scalar_lea.vmem %s0, %s356
        %v359 = vld [vmem:[%s357] sm:$0xff]
        %v360 = vld [vmem:[%s357 + $0x8] sm:$0xff]
        %v361 = vld [vmem:[%s357 + $0x10] sm:$0xff]
        %v362 = vld [vmem:[%s2] sm:$0xff]
        %364 = vset.pattern.permute.xlu0 0
        %365 = vperm.xlu0 %364, %v362
        %v366 = vpop.permute.xlu0 %365
        %v368 = vmul.f32 %v359, %v366
        %v369 = vmul.f32 %v360, %v366
        %v370 = vmul.f32 %v361, %v366
        %v371 = vadd.f32 %v368, 0.0
        %v372 = vadd.f32 %v369, 0.0
        %v373 = vadd.f32 %v370, 0.0
        %s374 = scalar_lea.vmem %s2, 8
        %v375 = vld [vmem:[%s374] sm:$0xff]
        %377 = vset.pattern.permute.xlu0 0
        %378 = vperm.xlu0 %377, %v375
        %v379 = vpop.permute.xlu0 %378
        %v381 = vmul.f32 %v359, %v379
        %v382 = vmul.f32 %v360, %v379
        %v383 = vmul.f32 %v361, %v379
        %387 = vrot.lane.b32.xlu0 %v381, 127
        %v388 = vpop.permute.xlu0 %387
        %389 = vrot.lane.b32.xlu0 %v382, 127
        %v390 = vpop.permute.xlu0 %389
        %391 = vrot.lane.b32.xlu0 %v383, 127
        %v392 = vpop.permute.xlu0 %391
        %vm393 = vcmask 1039360
        %v394 = vsel %vm393, %v388, %v390
        %v395 = vsel %vm393, %v390, %v392
        %v399 = vadd.f32 %v371, %v394
        %v400 = vadd.f32 %v372, %v395
        %v401 = vadd.f32 %v373, %v392
        %s402 = scalar_lea.vmem %s2, 16
        %v403 = vld [vmem:[%s402] sm:$0xff]
        %405 = vset.pattern.permute.xlu0 0
        %406 = vperm.xlu0 %405, %v403
        %v407 = vpop.permute.xlu0 %406
        %v409 = vmul.f32 %v359, %v407
        %v410 = vmul.f32 %v360, %v407
        %v411 = vmul.f32 %v361, %v407
        %415 = vrot.lane.b32.xlu0 %v409, 126
        %v416 = vpop.permute.xlu0 %415
        %417 = vrot.lane.b32.xlu0 %v410, 126
        %v418 = vpop.permute.xlu0 %417
        %419 = vrot.lane.b32.xlu0 %v411, 126
        %v420 = vpop.permute.xlu0 %419
        %vm421 = vcmask 1031168
        %v422 = vsel %vm421, %v416, %v418
        %v423 = vsel %vm421, %v418, %v420
        %v427 = vadd.f32 %v399, %v422
        %v428 = vadd.f32 %v400, %v423
        %v429 = vadd.f32 %v401, %v420
        %s430 = scalar_lea.vmem %s2, 24
        %v431 = vld [vmem:[%s430] sm:$0xff]
        %433 = vset.pattern.permute.xlu0 0
        %434 = vperm.xlu0 %433, %v431
        %v435 = vpop.permute.xlu0 %434
        %v437 = vmul.f32 %v359, %v435
        %v438 = vmul.f32 %v360, %v435
        %v439 = vmul.f32 %v361, %v435
        %443 = vrot.lane.b32.xlu0 %v437, 125
        %v444 = vpop.permute.xlu0 %443
        %445 = vrot.lane.b32.xlu0 %v438, 125
        %v446 = vpop.permute.xlu0 %445
        %447 = vrot.lane.b32.xlu0 %v439, 125
        %v448 = vpop.permute.xlu0 %447
        %vm449 = vcmask 1022976
        %v450 = vsel %vm449, %v444, %v446
        %v451 = vsel %vm449, %v446, %v448
        %v455 = vadd.f32 %v427, %v450
        %v456 = vadd.f32 %v428, %v451
        %v457 = vadd.f32 %v429, %v448
        %s458 = scalar_lea.vmem %s2, 32
        %v459 = vld [vmem:[%s458] sm:$0xff]
        %461 = vset.pattern.permute.xlu0 0
        %462 = vperm.xlu0 %461, %v459
        %v463 = vpop.permute.xlu0 %462
        %v465 = vmul.f32 %v359, %v463
        %v466 = vmul.f32 %v360, %v463
        %v467 = vmul.f32 %v361, %v463
        %471 = vrot.lane.b32.xlu0 %v465, 124
        %v472 = vpop.permute.xlu0 %471
        %473 = vrot.lane.b32.xlu0 %v466, 124
        %v474 = vpop.permute.xlu0 %473
        %475 = vrot.lane.b32.xlu0 %v467, 124
        %v476 = vpop.permute.xlu0 %475
        %vm477 = vcmask 1014784
        %v478 = vsel %vm477, %v472, %v474
        %v479 = vsel %vm477, %v474, %v476
        %v483 = vadd.f32 %v455, %v478
        %v484 = vadd.f32 %v456, %v479
        %v485 = vadd.f32 %v457, %v476
        %s486 = scalar_lea.vmem %s2, 40
        %v487 = vld [vmem:[%s486] sm:$0xff]
        %489 = vset.pattern.permute.xlu0 0
        %490 = vperm.xlu0 %489, %v487
        %v491 = vpop.permute.xlu0 %490
        %v493 = vmul.f32 %v359, %v491
        %v494 = vmul.f32 %v360, %v491
        %v495 = vmul.f32 %v361, %v491
        %499 = vrot.lane.b32.xlu0 %v493, 123
        %v500 = vpop.permute.xlu0 %499
        %501 = vrot.lane.b32.xlu0 %v494, 123
        %v502 = vpop.permute.xlu0 %501
        %503 = vrot.lane.b32.xlu0 %v495, 123
        %v504 = vpop.permute.xlu0 %503
        %vm505 = vcmask 1006592
        %v506 = vsel %vm505, %v500, %v502
        %v507 = vsel %vm505, %v502, %v504
        %v511 = vadd.f32 %v483, %v506
        %v512 = vadd.f32 %v484, %v507
        %v513 = vadd.f32 %v485, %v504
        %s514 = scalar_lea.vmem %s2, 48
        %v515 = vld [vmem:[%s514] sm:$0xff]
        %517 = vset.pattern.permute.xlu0 0
        %518 = vperm.xlu0 %517, %v515
        %v519 = vpop.permute.xlu0 %518
        %v521 = vmul.f32 %v359, %v519
        %v522 = vmul.f32 %v360, %v519
        %v523 = vmul.f32 %v361, %v519
        %527 = vrot.lane.b32.xlu0 %v521, 122
        %v528 = vpop.permute.xlu0 %527
        %529 = vrot.lane.b32.xlu0 %v522, 122
        %v530 = vpop.permute.xlu0 %529
        %531 = vrot.lane.b32.xlu0 %v523, 122
        %v532 = vpop.permute.xlu0 %531
        %vm533 = vcmask 998400
        %v534 = vsel %vm533, %v528, %v530
        %v535 = vsel %vm533, %v530, %v532
        %v539 = vadd.f32 %v511, %v534
        %v540 = vadd.f32 %v512, %v535
        %v541 = vadd.f32 %v513, %v532
        %v542 = vld [vmem:[%s357] sm:$0xff]
        %v543 = vld [vmem:[%s357 + $0x8] sm:$0xff]
        %v544 = vld [vmem:[%s357 + $0x10] sm:$0xff]
        %v545 = vld [vmem:[%s357 + $0x18] sm:$0xff]
        %s546 = scalar_lea.vmem %s2, 56
        %v547 = vld [vmem:[%s546] sm:$0xff]
        %549 = vset.pattern.permute.xlu0 0
        %550 = vperm.xlu0 %549, %v547
        %v551 = vpop.permute.xlu0 %550
        %v553 = vmul.f32 %v542, %v551
        %v554 = vmul.f32 %v543, %v551
        %v555 = vmul.f32 %v544, %v551
        %v556 = vmul.f32 %v545, %v551
        %561 = vrot.lane.b32.xlu0 %v553, 106
        %v562 = vpop.permute.xlu0 %561
        %563 = vrot.lane.b32.xlu0 %v554, 106
        %v564 = vpop.permute.xlu0 %563
        %565 = vrot.lane.b32.xlu0 %v555, 106
        %v566 = vpop.permute.xlu0 %565
        %567 = vrot.lane.b32.xlu0 %v556, 106
        %v568 = vpop.permute.xlu0 %567
        %vm569 = vcmask 867328
        %v570 = vsel %vm569, %v562, %v564
        %v571 = vsel %vm569, %v564, %v566
        %v572 = vsel %vm569, %v566, %v568
        %v576 = vadd.f32 %v539, %v570
        %v577 = vadd.f32 %v540, %v571
        %v578 = vadd.f32 %v541, %v572
        %s579 = scalar_lea.vmem %s2, 64
        %v580 = vld [vmem:[%s579] sm:$0xff]
        %582 = vset.pattern.permute.xlu0 0
        %583 = vperm.xlu0 %582, %v580
        %v584 = vpop.permute.xlu0 %583
        %v586 = vmul.f32 %v542, %v584
        %v587 = vmul.f32 %v543, %v584
        %v588 = vmul.f32 %v544, %v584
        %v589 = vmul.f32 %v545, %v584
        %594 = vrot.lane.b32.xlu0 %v586, 105
        %v595 = vpop.permute.xlu0 %594
        %596 = vrot.lane.b32.xlu0 %v587, 105
        %v597 = vpop.permute.xlu0 %596
        %598 = vrot.lane.b32.xlu0 %v588, 105
        %v599 = vpop.permute.xlu0 %598
        %600 = vrot.lane.b32.xlu0 %v589, 105
        %v601 = vpop.permute.xlu0 %600
        %vm602 = vcmask 859136
        %v603 = vsel %vm602, %v595, %v597
        %v604 = vsel %vm602, %v597, %v599
        %v605 = vsel %vm602, %v599, %v601
        %v609 = vadd.f32 %v576, %v603
        %v610 = vadd.f32 %v577, %v604
        %v611 = vadd.f32 %v578, %v605
        %s612 = scalar_lea.vmem %s2, 72
        %v613 = vld [vmem:[%s612] sm:$0xff]
        %615 = vset.pattern.permute.xlu0 0
        %616 = vperm.xlu0 %615, %v613
        %v617 = vpop.permute.xlu0 %616
        %v619 = vmul.f32 %v542, %v617
        %v620 = vmul.f32 %v543, %v617
        %v621 = vmul.f32 %v544, %v617
        %v622 = vmul.f32 %v545, %v617
        %627 = vrot.lane.b32.xlu0 %v619, 104
        %v628 = vpop.permute.xlu0 %627
        %629 = vrot.lane.b32.xlu0 %v620, 104
        %v630 = vpop.permute.xlu0 %629
        %631 = vrot.lane.b32.xlu0 %v621, 104
        %v632 = vpop.permute.xlu0 %631
        %633 = vrot.lane.b32.xlu0 %v622, 104
        %v634 = vpop.permute.xlu0 %633
        %vm635 = vcmask 850944
        %v636 = vsel %vm635, %v628, %v630
        %v637 = vsel %vm635, %v630, %v632
        %v638 = vsel %vm635, %v632, %v634
        %v642 = vadd.f32 %v609, %v636
        %v643 = vadd.f32 %v610, %v637
        %v644 = vadd.f32 %v611, %v638
        %s645 = scalar_lea.vmem %s2, 80
        %v646 = vld [vmem:[%s645] sm:$0xff]
        %648 = vset.pattern.permute.xlu0 0
        %649 = vperm.xlu0 %648, %v646
        %v650 = vpop.permute.xlu0 %649
        %v652 = vmul.f32 %v542, %v650
        %v653 = vmul.f32 %v543, %v650
        %v654 = vmul.f32 %v544, %v650
        %v655 = vmul.f32 %v545, %v650
        %660 = vrot.lane.b32.xlu0 %v652, 103
        %v661 = vpop.permute.xlu0 %660
        %662 = vrot.lane.b32.xlu0 %v653, 103
        %v663 = vpop.permute.xlu0 %662
        %664 = vrot.lane.b32.xlu0 %v654, 103
        %v665 = vpop.permute.xlu0 %664
        %666 = vrot.lane.b32.xlu0 %v655, 103
        %v667 = vpop.permute.xlu0 %666
        %vm668 = vcmask 842752
        %v669 = vsel %vm668, %v661, %v663
        %v670 = vsel %vm668, %v663, %v665
        %v671 = vsel %vm668, %v665, %v667
        %v675 = vadd.f32 %v642, %v669
        %v676 = vadd.f32 %v643, %v670
        %v677 = vadd.f32 %v644, %v671
        %s678 = scalar_lea.vmem %s2, 88
        %v679 = vld [vmem:[%s678] sm:$0xff]
        %681 = vset.pattern.permute.xlu0 0
        %682 = vperm.xlu0 %681, %v679
        %v683 = vpop.permute.xlu0 %682
        %v685 = vmul.f32 %v542, %v683
        %v686 = vmul.f32 %v543, %v683
        %v687 = vmul.f32 %v544, %v683
        %v688 = vmul.f32 %v545, %v683
        %693 = vrot.lane.b32.xlu0 %v685, 102
        %v694 = vpop.permute.xlu0 %693
        %695 = vrot.lane.b32.xlu0 %v686, 102
        %v696 = vpop.permute.xlu0 %695
        %697 = vrot.lane.b32.xlu0 %v687, 102
        %v698 = vpop.permute.xlu0 %697
        %699 = vrot.lane.b32.xlu0 %v688, 102
        %v700 = vpop.permute.xlu0 %699
        %vm701 = vcmask 834560
        %v702 = vsel %vm701, %v694, %v696
        %v703 = vsel %vm701, %v696, %v698
        %v704 = vsel %vm701, %v698, %v700
        %v708 = vadd.f32 %v675, %v702
        %v709 = vadd.f32 %v676, %v703
        %v710 = vadd.f32 %v677, %v704
        %s711 = scalar_lea.vmem %s2, 96
        %v712 = vld [vmem:[%s711] sm:$0xff]
        %714 = vset.pattern.permute.xlu0 0
        %715 = vperm.xlu0 %714, %v712
        %v716 = vpop.permute.xlu0 %715
        %v718 = vmul.f32 %v542, %v716
        %v719 = vmul.f32 %v543, %v716
        %v720 = vmul.f32 %v544, %v716
        %v721 = vmul.f32 %v545, %v716
        %726 = vrot.lane.b32.xlu0 %v718, 101
        %v727 = vpop.permute.xlu0 %726
        %728 = vrot.lane.b32.xlu0 %v719, 101
        %v729 = vpop.permute.xlu0 %728
        %730 = vrot.lane.b32.xlu0 %v720, 101
        %v731 = vpop.permute.xlu0 %730
        %732 = vrot.lane.b32.xlu0 %v721, 101
        %v733 = vpop.permute.xlu0 %732
        %vm734 = vcmask 826368
        %v735 = vsel %vm734, %v727, %v729
        %v736 = vsel %vm734, %v729, %v731
        %v737 = vsel %vm734, %v731, %v733
        %v741 = vadd.f32 %v708, %v735
        %v742 = vadd.f32 %v709, %v736
        %v743 = vadd.f32 %v710, %v737
        %s744 = scalar_lea.vmem %s2, 104
        %v745 = vld [vmem:[%s744] sm:$0xff]
        %747 = vset.pattern.permute.xlu0 0
        %748 = vperm.xlu0 %747, %v745
        %v749 = vpop.permute.xlu0 %748
        %v751 = vmul.f32 %v542, %v749
        %v752 = vmul.f32 %v543, %v749
        %v753 = vmul.f32 %v544, %v749
        %v754 = vmul.f32 %v545, %v749
        %759 = vrot.lane.b32.xlu0 %v751, 100
        %v760 = vpop.permute.xlu0 %759
        %761 = vrot.lane.b32.xlu0 %v752, 100
        %v762 = vpop.permute.xlu0 %761
        %763 = vrot.lane.b32.xlu0 %v753, 100
        %v764 = vpop.permute.xlu0 %763
        %765 = vrot.lane.b32.xlu0 %v754, 100
        %v766 = vpop.permute.xlu0 %765
        %vm767 = vcmask 818176
        %v768 = vsel %vm767, %v760, %v762
        %v769 = vsel %vm767, %v762, %v764
        %v770 = vsel %vm767, %v764, %v766
        %v774 = vadd.f32 %v741, %v768
        %v775 = vadd.f32 %v742, %v769
        %v776 = vadd.f32 %v743, %v770
        %s777 = scalar_lea.vmem %s2, 112
        %v778 = vld [vmem:[%s777] sm:$0xff]
        %780 = vset.pattern.permute.xlu0 0
        %781 = vperm.xlu0 %780, %v778
        %v782 = vpop.permute.xlu0 %781
        %v784 = vmul.f32 %v542, %v782
        %v785 = vmul.f32 %v543, %v782
        %v786 = vmul.f32 %v544, %v782
        %v787 = vmul.f32 %v545, %v782
        %792 = vrot.lane.b32.xlu0 %v784, 84
        %v793 = vpop.permute.xlu0 %792
        %794 = vrot.lane.b32.xlu0 %v785, 84
        %v795 = vpop.permute.xlu0 %794
        %796 = vrot.lane.b32.xlu0 %v786, 84
        %v797 = vpop.permute.xlu0 %796
        %798 = vrot.lane.b32.xlu0 %v787, 84
        %v799 = vpop.permute.xlu0 %798
        %vm800 = vcmask 687104
        %v801 = vsel %vm800, %v793, %v795
        %v802 = vsel %vm800, %v795, %v797
        %v803 = vsel %vm800, %v797, %v799
        %v807 = vadd.f32 %v774, %v801
        %v808 = vadd.f32 %v775, %v802
        %v809 = vadd.f32 %v776, %v803
        %s810 = scalar_lea.vmem %s2, 120
        %v811 = vld [vmem:[%s810] sm:$0xff]
        %813 = vset.pattern.permute.xlu0 0
        %814 = vperm.xlu0 %813, %v811
        %v815 = vpop.permute.xlu0 %814
        %v817 = vmul.f32 %v542, %v815
        %v818 = vmul.f32 %v543, %v815
        %v819 = vmul.f32 %v544, %v815
        %v820 = vmul.f32 %v545, %v815
        %825 = vrot.lane.b32.xlu0 %v817, 83
        %v826 = vpop.permute.xlu0 %825
        %827 = vrot.lane.b32.xlu0 %v818, 83
        %v828 = vpop.permute.xlu0 %827
        %829 = vrot.lane.b32.xlu0 %v819, 83
        %v830 = vpop.permute.xlu0 %829
        %831 = vrot.lane.b32.xlu0 %v820, 83
        %v832 = vpop.permute.xlu0 %831
        %vm833 = vcmask 678912
        %v834 = vsel %vm833, %v826, %v828
        %v835 = vsel %vm833, %v828, %v830
        %v836 = vsel %vm833, %v830, %v832
        %v840 = vadd.f32 %v807, %v834
        %v841 = vadd.f32 %v808, %v835
        %v842 = vadd.f32 %v809, %v836
        %s843 = scalar_lea.vmem %s2, 128
        %v844 = vld [vmem:[%s843] sm:$0xff]
        %846 = vset.pattern.permute.xlu0 0
        %847 = vperm.xlu0 %846, %v844
        %v848 = vpop.permute.xlu0 %847
        %v850 = vmul.f32 %v542, %v848
        %v851 = vmul.f32 %v543, %v848
        %v852 = vmul.f32 %v544, %v848
        %v853 = vmul.f32 %v545, %v848
        %858 = vrot.lane.b32.xlu0 %v850, 82
        %v859 = vpop.permute.xlu0 %858
        %860 = vrot.lane.b32.xlu0 %v851, 82
        %v861 = vpop.permute.xlu0 %860
        %862 = vrot.lane.b32.xlu0 %v852, 82
        %v863 = vpop.permute.xlu0 %862
        %864 = vrot.lane.b32.xlu0 %v853, 82
        %v865 = vpop.permute.xlu0 %864
        %vm866 = vcmask 670720
        %v867 = vsel %vm866, %v859, %v861
        %v868 = vsel %vm866, %v861, %v863
        %v869 = vsel %vm866, %v863, %v865
        %v873 = vadd.f32 %v840, %v867
        %v874 = vadd.f32 %v841, %v868
        %v875 = vadd.f32 %v842, %v869
        %s876 = scalar_lea.vmem %s2, 136
        %v877 = vld [vmem:[%s876] sm:$0xff]
        %879 = vset.pattern.permute.xlu0 0
        %880 = vperm.xlu0 %879, %v877
        %v881 = vpop.permute.xlu0 %880
        %v883 = vmul.f32 %v542, %v881
        %v884 = vmul.f32 %v543, %v881
        %v885 = vmul.f32 %v544, %v881
        %v886 = vmul.f32 %v545, %v881
        %891 = vrot.lane.b32.xlu0 %v883, 81
        %v892 = vpop.permute.xlu0 %891
        %893 = vrot.lane.b32.xlu0 %v884, 81
        %v894 = vpop.permute.xlu0 %893
        %895 = vrot.lane.b32.xlu0 %v885, 81
        %v896 = vpop.permute.xlu0 %895
        %897 = vrot.lane.b32.xlu0 %v886, 81
        %v898 = vpop.permute.xlu0 %897
        %vm899 = vcmask 662528
        %v900 = vsel %vm899, %v892, %v894
        %v901 = vsel %vm899, %v894, %v896
        %v902 = vsel %vm899, %v896, %v898
        %v906 = vadd.f32 %v873, %v900
        %v907 = vadd.f32 %v874, %v901
        %v908 = vadd.f32 %v875, %v902
        %s909 = scalar_lea.vmem %s2, 144
        %v910 = vld [vmem:[%s909] sm:$0xff]
        %912 = vset.pattern.permute.xlu0 0
        %913 = vperm.xlu0 %912, %v910
        %v914 = vpop.permute.xlu0 %913
        %v916 = vmul.f32 %v542, %v914
        %v917 = vmul.f32 %v543, %v914
        %v918 = vmul.f32 %v544, %v914
        %v919 = vmul.f32 %v545, %v914
        %924 = vrot.lane.b32.xlu0 %v916, 80
        %v925 = vpop.permute.xlu0 %924
        %926 = vrot.lane.b32.xlu0 %v917, 80
        %v927 = vpop.permute.xlu0 %926
        %928 = vrot.lane.b32.xlu0 %v918, 80
        %v929 = vpop.permute.xlu0 %928
        %930 = vrot.lane.b32.xlu0 %v919, 80
        %v931 = vpop.permute.xlu0 %930
        %vm932 = vcmask 654336
        %v933 = vsel %vm932, %v925, %v927
        %v934 = vsel %vm932, %v927, %v929
        %v935 = vsel %vm932, %v929, %v931
        %v939 = vadd.f32 %v906, %v933
        %v940 = vadd.f32 %v907, %v934
        %v941 = vadd.f32 %v908, %v935
        %s942 = scalar_lea.vmem %s2, 152
        %v943 = vld [vmem:[%s942] sm:$0xff]
        %945 = vset.pattern.permute.xlu0 0
        %946 = vperm.xlu0 %945, %v943
        %v947 = vpop.permute.xlu0 %946
        %v949 = vmul.f32 %v542, %v947
        %v950 = vmul.f32 %v543, %v947
        %v951 = vmul.f32 %v544, %v947
        %v952 = vmul.f32 %v545, %v947
        %957 = vrot.lane.b32.xlu0 %v949, 79
        %v958 = vpop.permute.xlu0 %957
        %959 = vrot.lane.b32.xlu0 %v950, 79
        %v960 = vpop.permute.xlu0 %959
        %961 = vrot.lane.b32.xlu0 %v951, 79
        %v962 = vpop.permute.xlu0 %961
        %963 = vrot.lane.b32.xlu0 %v952, 79
        %v964 = vpop.permute.xlu0 %963
        %vm965 = vcmask 646144
        %v966 = vsel %vm965, %v958, %v960
        %v967 = vsel %vm965, %v960, %v962
        %v968 = vsel %vm965, %v962, %v964
        %v972 = vadd.f32 %v939, %v966
        %v973 = vadd.f32 %v940, %v967
        %v974 = vadd.f32 %v941, %v968
        %s975 = scalar_lea.vmem %s2, 160
        %v976 = vld [vmem:[%s975] sm:$0xff]
        %978 = vset.pattern.permute.xlu0 0
        %979 = vperm.xlu0 %978, %v976
        %v980 = vpop.permute.xlu0 %979
        %v982 = vmul.f32 %v542, %v980
        %v983 = vmul.f32 %v543, %v980
        %v984 = vmul.f32 %v544, %v980
        %v985 = vmul.f32 %v545, %v980
        %990 = vrot.lane.b32.xlu0 %v982, 78
        %v991 = vpop.permute.xlu0 %990
        %992 = vrot.lane.b32.xlu0 %v983, 78
        %v993 = vpop.permute.xlu0 %992
        %994 = vrot.lane.b32.xlu0 %v984, 78
        %v995 = vpop.permute.xlu0 %994
        %996 = vrot.lane.b32.xlu0 %v985, 78
        %v997 = vpop.permute.xlu0 %996
        %vm998 = vcmask 637952
        %v999 = vsel %vm998, %v991, %v993
        %v1000 = vsel %vm998, %v993, %v995
        %v1001 = vsel %vm998, %v995, %v997
        %v1005 = vadd.f32 %v972, %v999
        %v1006 = vadd.f32 %v973, %v1000
        %v1007 = vadd.f32 %v974, %v1001
        %s1008 = scalar_lea.vmem %s2, 168
        %v1009 = vld [vmem:[%s1008] sm:$0xff]
        %1011 = vset.pattern.permute.xlu0 0
        %1012 = vperm.xlu0 %1011, %v1009
        %v1013 = vpop.permute.xlu0 %1012
        %v1015 = vmul.f32 %v542, %v1013
        %v1016 = vmul.f32 %v543, %v1013
        %v1017 = vmul.f32 %v544, %v1013
        %v1018 = vmul.f32 %v545, %v1013
        %1023 = vrot.lane.b32.xlu0 %v1015, 62
        %v1024 = vpop.permute.xlu0 %1023
        %1025 = vrot.lane.b32.xlu0 %v1016, 62
        %v1026 = vpop.permute.xlu0 %1025
        %1027 = vrot.lane.b32.xlu0 %v1017, 62
        %v1028 = vpop.permute.xlu0 %1027
        %1029 = vrot.lane.b32.xlu0 %v1018, 62
        %v1030 = vpop.permute.xlu0 %1029
        %vm1031 = vcmask 506880
        %v1032 = vsel %vm1031, %v1024, %v1026
        %v1033 = vsel %vm1031, %v1026, %v1028
        %v1034 = vsel %vm1031, %v1028, %v1030
        %v1038 = vadd.f32 %v1005, %v1032
        %v1039 = vadd.f32 %v1006, %v1033
        %v1040 = vadd.f32 %v1007, %v1034
        %s1041 = scalar_lea.vmem %s2, 176
        %v1042 = vld [vmem:[%s1041] sm:$0xff]
        %1044 = vset.pattern.permute.xlu0 0
        %1045 = vperm.xlu0 %1044, %v1042
        %v1046 = vpop.permute.xlu0 %1045
        %v1048 = vmul.f32 %v542, %v1046
        %v1049 = vmul.f32 %v543, %v1046
        %v1050 = vmul.f32 %v544, %v1046
        %v1051 = vmul.f32 %v545, %v1046
        %1056 = vrot.lane.b32.xlu0 %v1048, 61
        %v1057 = vpop.permute.xlu0 %1056
        %1058 = vrot.lane.b32.xlu0 %v1049, 61
        %v1059 = vpop.permute.xlu0 %1058
        %1060 = vrot.lane.b32.xlu0 %v1050, 61
        %v1061 = vpop.permute.xlu0 %1060
        %1062 = vrot.lane.b32.xlu0 %v1051, 61
        %v1063 = vpop.permute.xlu0 %1062
        %vm1064 = vcmask 498688
        %v1065 = vsel %vm1064, %v1057, %v1059
        %v1066 = vsel %vm1064, %v1059, %v1061
        %v1067 = vsel %vm1064, %v1061, %v1063
        %v1071 = vadd.f32 %v1038, %v1065
        %v1072 = vadd.f32 %v1039, %v1066
        %v1073 = vadd.f32 %v1040, %v1067
        %s1074 = scalar_lea.vmem %s2, 184
        %v1075 = vld [vmem:[%s1074] sm:$0xff]
        %1077 = vset.pattern.permute.xlu0 0
        %1078 = vperm.xlu0 %1077, %v1075
        %v1079 = vpop.permute.xlu0 %1078
        %v1081 = vmul.f32 %v542, %v1079
        %v1082 = vmul.f32 %v543, %v1079
        %v1083 = vmul.f32 %v544, %v1079
        %v1084 = vmul.f32 %v545, %v1079
        %1089 = vrot.lane.b32.xlu0 %v1081, 60
        %v1090 = vpop.permute.xlu0 %1089
        %1091 = vrot.lane.b32.xlu0 %v1082, 60
        %v1092 = vpop.permute.xlu0 %1091
        %1093 = vrot.lane.b32.xlu0 %v1083, 60
        %v1094 = vpop.permute.xlu0 %1093
        %1095 = vrot.lane.b32.xlu0 %v1084, 60
        %v1096 = vpop.permute.xlu0 %1095
        %vm1097 = vcmask 490496
        %v1098 = vsel %vm1097, %v1090, %v1092
        %v1099 = vsel %vm1097, %v1092, %v1094
        %v1100 = vsel %vm1097, %v1094, %v1096
        %v1104 = vadd.f32 %v1071, %v1098
        %v1105 = vadd.f32 %v1072, %v1099
        %v1106 = vadd.f32 %v1073, %v1100
        %s1107 = scalar_lea.vmem %s2, 192
        %v1108 = vld [vmem:[%s1107] sm:$0xff]
        %1110 = vset.pattern.permute.xlu0 0
        %1111 = vperm.xlu0 %1110, %v1108
        %v1112 = vpop.permute.xlu0 %1111
        %v1114 = vmul.f32 %v542, %v1112
        %v1115 = vmul.f32 %v543, %v1112
        %v1116 = vmul.f32 %v544, %v1112
        %v1117 = vmul.f32 %v545, %v1112
        %1122 = vrot.lane.b32.xlu0 %v1114, 59
        %v1123 = vpop.permute.xlu0 %1122
        %1124 = vrot.lane.b32.xlu0 %v1115, 59
        %v1125 = vpop.permute.xlu0 %1124
        %1126 = vrot.lane.b32.xlu0 %v1116, 59
        %v1127 = vpop.permute.xlu0 %1126
        %1128 = vrot.lane.b32.xlu0 %v1117, 59
        %v1129 = vpop.permute.xlu0 %1128
        %vm1130 = vcmask 482304
        %v1131 = vsel %vm1130, %v1123, %v1125
        %v1132 = vsel %vm1130, %v1125, %v1127
        %v1133 = vsel %vm1130, %v1127, %v1129
        %v1137 = vadd.f32 %v1104, %v1131
        %v1138 = vadd.f32 %v1105, %v1132
        %v1139 = vadd.f32 %v1106, %v1133
        %s1140 = scalar_lea.vmem %s2, 200
        %v1141 = vld [vmem:[%s1140] sm:$0xff]
        %1143 = vset.pattern.permute.xlu0 0
        %1144 = vperm.xlu0 %1143, %v1141
        %v1145 = vpop.permute.xlu0 %1144
        %v1147 = vmul.f32 %v542, %v1145
        %v1148 = vmul.f32 %v543, %v1145
        %v1149 = vmul.f32 %v544, %v1145
        %v1150 = vmul.f32 %v545, %v1145
        %1155 = vrot.lane.b32.xlu0 %v1147, 58
        %v1156 = vpop.permute.xlu0 %1155
        %1157 = vrot.lane.b32.xlu0 %v1148, 58
        %v1158 = vpop.permute.xlu0 %1157
        %1159 = vrot.lane.b32.xlu0 %v1149, 58
        %v1160 = vpop.permute.xlu0 %1159
        %1161 = vrot.lane.b32.xlu0 %v1150, 58
        %v1162 = vpop.permute.xlu0 %1161
        %vm1163 = vcmask 474112
        %v1164 = vsel %vm1163, %v1156, %v1158
        %v1165 = vsel %vm1163, %v1158, %v1160
        %v1166 = vsel %vm1163, %v1160, %v1162
        %v1170 = vadd.f32 %v1137, %v1164
        %v1171 = vadd.f32 %v1138, %v1165
        %v1172 = vadd.f32 %v1139, %v1166
        %s1173 = scalar_lea.vmem %s2, 208
        %v1174 = vld [vmem:[%s1173] sm:$0xff]
        %1176 = vset.pattern.permute.xlu0 0
        %1177 = vperm.xlu0 %1176, %v1174
        %v1178 = vpop.permute.xlu0 %1177
        %v1180 = vmul.f32 %v542, %v1178
        %v1181 = vmul.f32 %v543, %v1178
        %v1182 = vmul.f32 %v544, %v1178
        %v1183 = vmul.f32 %v545, %v1178
        %1188 = vrot.lane.b32.xlu0 %v1180, 57
        %v1189 = vpop.permute.xlu0 %1188
        %1190 = vrot.lane.b32.xlu0 %v1181, 57
        %v1191 = vpop.permute.xlu0 %1190
        %1192 = vrot.lane.b32.xlu0 %v1182, 57
        %v1193 = vpop.permute.xlu0 %1192
        %1194 = vrot.lane.b32.xlu0 %v1183, 57
        %v1195 = vpop.permute.xlu0 %1194
        %vm1196 = vcmask 465920
        %v1197 = vsel %vm1196, %v1189, %v1191
        %v1198 = vsel %vm1196, %v1191, %v1193
        %v1199 = vsel %vm1196, %v1193, %v1195
        %v1203 = vadd.f32 %v1170, %v1197
        %v1204 = vadd.f32 %v1171, %v1198
        %v1205 = vadd.f32 %v1172, %v1199
        %s1206 = scalar_lea.vmem %s2, 216
        %v1207 = vld [vmem:[%s1206] sm:$0xff]
        %1209 = vset.pattern.permute.xlu0 0
        %1210 = vperm.xlu0 %1209, %v1207
        %v1211 = vpop.permute.xlu0 %1210
        %v1213 = vmul.f32 %v542, %v1211
        %v1214 = vmul.f32 %v543, %v1211
        %v1215 = vmul.f32 %v544, %v1211
        %v1216 = vmul.f32 %v545, %v1211
        %1221 = vrot.lane.b32.xlu0 %v1213, 56
        %v1222 = vpop.permute.xlu0 %1221
        %1223 = vrot.lane.b32.xlu0 %v1214, 56
        %v1224 = vpop.permute.xlu0 %1223
        %1225 = vrot.lane.b32.xlu0 %v1215, 56
        %v1226 = vpop.permute.xlu0 %1225
        %1227 = vrot.lane.b32.xlu0 %v1216, 56
        %v1228 = vpop.permute.xlu0 %1227
        %vm1229 = vcmask 457728
        %v1230 = vsel %vm1229, %v1222, %v1224
        %v1231 = vsel %vm1229, %v1224, %v1226
        %v1232 = vsel %vm1229, %v1226, %v1228
        %v1236 = vadd.f32 %v1203, %v1230
        %v1237 = vadd.f32 %v1204, %v1231
        %v1238 = vadd.f32 %v1205, %v1232
        %s1239 = scalar_lea.vmem %s2, 224
        %v1240 = vld [vmem:[%s1239] sm:$0xff]
        %1242 = vset.pattern.permute.xlu0 0
        %1243 = vperm.xlu0 %1242, %v1240
        %v1244 = vpop.permute.xlu0 %1243
        %v1246 = vmul.f32 %v542, %v1244
        %v1247 = vmul.f32 %v543, %v1244
        %v1248 = vmul.f32 %v544, %v1244
        %v1249 = vmul.f32 %v545, %v1244
        %1254 = vrot.lane.b32.xlu0 %v1246, 40
        %v1255 = vpop.permute.xlu0 %1254
        %1256 = vrot.lane.b32.xlu0 %v1247, 40
        %v1257 = vpop.permute.xlu0 %1256
        %1258 = vrot.lane.b32.xlu0 %v1248, 40
        %v1259 = vpop.permute.xlu0 %1258
        %1260 = vrot.lane.b32.xlu0 %v1249, 40
        %v1261 = vpop.permute.xlu0 %1260
        %vm1262 = vcmask 326656
        %v1263 = vsel %vm1262, %v1255, %v1257
        %v1264 = vsel %vm1262, %v1257, %v1259
        %v1265 = vsel %vm1262, %v1259, %v1261
        %v1269 = vadd.f32 %v1236, %v1263
        %v1270 = vadd.f32 %v1237, %v1264
        %v1271 = vadd.f32 %v1238, %v1265
        %s1272 = scalar_lea.vmem %s2, 232
        %v1273 = vld [vmem:[%s1272] sm:$0xff]
        %1275 = vset.pattern.permute.xlu0 0
        %1276 = vperm.xlu0 %1275, %v1273
        %v1277 = vpop.permute.xlu0 %1276
        %v1279 = vmul.f32 %v542, %v1277
        %v1280 = vmul.f32 %v543, %v1277
        %v1281 = vmul.f32 %v544, %v1277
        %v1282 = vmul.f32 %v545, %v1277
        %1287 = vrot.lane.b32.xlu0 %v1279, 39
        %v1288 = vpop.permute.xlu0 %1287
        %1289 = vrot.lane.b32.xlu0 %v1280, 39
        %v1290 = vpop.permute.xlu0 %1289
        %1291 = vrot.lane.b32.xlu0 %v1281, 39
        %v1292 = vpop.permute.xlu0 %1291
        %1293 = vrot.lane.b32.xlu0 %v1282, 39
        %v1294 = vpop.permute.xlu0 %1293
        %vm1295 = vcmask 318464
        %v1296 = vsel %vm1295, %v1288, %v1290
        %v1297 = vsel %vm1295, %v1290, %v1292
        %v1298 = vsel %vm1295, %v1292, %v1294
        %v1302 = vadd.f32 %v1269, %v1296
        %v1303 = vadd.f32 %v1270, %v1297
        %v1304 = vadd.f32 %v1271, %v1298
        %s1305 = scalar_lea.vmem %s2, 240
        %v1306 = vld [vmem:[%s1305] sm:$0xff]
        %1308 = vset.pattern.permute.xlu0 0
        %1309 = vperm.xlu0 %1308, %v1306
        %v1310 = vpop.permute.xlu0 %1309
        %v1312 = vmul.f32 %v542, %v1310
        %v1313 = vmul.f32 %v543, %v1310
        %v1314 = vmul.f32 %v544, %v1310
        %v1315 = vmul.f32 %v545, %v1310
        %1320 = vrot.lane.b32.xlu0 %v1312, 38
        %v1321 = vpop.permute.xlu0 %1320
        %1322 = vrot.lane.b32.xlu0 %v1313, 38
        %v1323 = vpop.permute.xlu0 %1322
        %1324 = vrot.lane.b32.xlu0 %v1314, 38
        %v1325 = vpop.permute.xlu0 %1324
        %1326 = vrot.lane.b32.xlu0 %v1315, 38
        %v1327 = vpop.permute.xlu0 %1326
        %vm1328 = vcmask 310272
        %v1329 = vsel %vm1328, %v1321, %v1323
        %v1330 = vsel %vm1328, %v1323, %v1325
        %v1331 = vsel %vm1328, %v1325, %v1327
        %v1335 = vadd.f32 %v1302, %v1329
        %v1336 = vadd.f32 %v1303, %v1330
        %v1337 = vadd.f32 %v1304, %v1331
        %s1338 = scalar_lea.vmem %s2, 248
        %v1339 = vld [vmem:[%s1338] sm:$0xff]
        %1341 = vset.pattern.permute.xlu0 0
        %1342 = vperm.xlu0 %1341, %v1339
        %v1343 = vpop.permute.xlu0 %1342
        %v1345 = vmul.f32 %v542, %v1343
        %v1346 = vmul.f32 %v543, %v1343
        %v1347 = vmul.f32 %v544, %v1343
        %v1348 = vmul.f32 %v545, %v1343
        %1353 = vrot.lane.b32.xlu0 %v1345, 37
        %v1354 = vpop.permute.xlu0 %1353
        %1355 = vrot.lane.b32.xlu0 %v1346, 37
        %v1356 = vpop.permute.xlu0 %1355
        %1357 = vrot.lane.b32.xlu0 %v1347, 37
        %v1358 = vpop.permute.xlu0 %1357
        %1359 = vrot.lane.b32.xlu0 %v1348, 37
        %v1360 = vpop.permute.xlu0 %1359
        %vm1361 = vcmask 302080
        %v1362 = vsel %vm1361, %v1354, %v1356
        %v1363 = vsel %vm1361, %v1356, %v1358
        %v1364 = vsel %vm1361, %v1358, %v1360
        %v1368 = vadd.f32 %v1335, %v1362
        %v1369 = vadd.f32 %v1336, %v1363
        %v1370 = vadd.f32 %v1337, %v1364
        %s1371 = scalar_lea.vmem %s2, 256
        %v1372 = vld [vmem:[%s1371] sm:$0xff]
        %1374 = vset.pattern.permute.xlu0 0
        %1375 = vperm.xlu0 %1374, %v1372
        %v1376 = vpop.permute.xlu0 %1375
        %v1378 = vmul.f32 %v542, %v1376
        %v1379 = vmul.f32 %v543, %v1376
        %v1380 = vmul.f32 %v544, %v1376
        %v1381 = vmul.f32 %v545, %v1376
        %1386 = vrot.lane.b32.xlu0 %v1378, 36
        %v1387 = vpop.permute.xlu0 %1386
        %1388 = vrot.lane.b32.xlu0 %v1379, 36
        %v1389 = vpop.permute.xlu0 %1388
        %1390 = vrot.lane.b32.xlu0 %v1380, 36
        %v1391 = vpop.permute.xlu0 %1390
        %1392 = vrot.lane.b32.xlu0 %v1381, 36
        %v1393 = vpop.permute.xlu0 %1392
        %vm1394 = vcmask 293888
        %v1395 = vsel %vm1394, %v1387, %v1389
        %v1396 = vsel %vm1394, %v1389, %v1391
        %v1397 = vsel %vm1394, %v1391, %v1393
        %v1401 = vadd.f32 %v1368, %v1395
        %v1402 = vadd.f32 %v1369, %v1396
        %v1403 = vadd.f32 %v1370, %v1397
        %s1404 = scalar_lea.vmem %s2, 264
        %v1405 = vld [vmem:[%s1404] sm:$0xff]
        %1407 = vset.pattern.permute.xlu0 0
        %1408 = vperm.xlu0 %1407, %v1405
        %v1409 = vpop.permute.xlu0 %1408
        %v1411 = vmul.f32 %v542, %v1409
        %v1412 = vmul.f32 %v543, %v1409
        %v1413 = vmul.f32 %v544, %v1409
        %v1414 = vmul.f32 %v545, %v1409
        %1419 = vrot.lane.b32.xlu0 %v1411, 35
        %v1420 = vpop.permute.xlu0 %1419
        %1421 = vrot.lane.b32.xlu0 %v1412, 35
        %v1422 = vpop.permute.xlu0 %1421
        %1423 = vrot.lane.b32.xlu0 %v1413, 35
        %v1424 = vpop.permute.xlu0 %1423
        %1425 = vrot.lane.b32.xlu0 %v1414, 35
        %v1426 = vpop.permute.xlu0 %1425
        %vm1427 = vcmask 285696
        %v1428 = vsel %vm1427, %v1420, %v1422
        %v1429 = vsel %vm1427, %v1422, %v1424
        %v1430 = vsel %vm1427, %v1424, %v1426
        %v1434 = vadd.f32 %v1401, %v1428
        %v1435 = vadd.f32 %v1402, %v1429
        %v1436 = vadd.f32 %v1403, %v1430
        %s1437 = scalar_lea.vmem %s2, 272
        %v1438 = vld [vmem:[%s1437] sm:$0xff]
        %1440 = vset.pattern.permute.xlu0 0
        %1441 = vperm.xlu0 %1440, %v1438
        %v1442 = vpop.permute.xlu0 %1441
        %v1444 = vmul.f32 %v542, %v1442
        %v1445 = vmul.f32 %v543, %v1442
        %v1446 = vmul.f32 %v544, %v1442
        %v1447 = vmul.f32 %v545, %v1442
        %1452 = vrot.lane.b32.xlu0 %v1444, 34
        %v1453 = vpop.permute.xlu0 %1452
        %1454 = vrot.lane.b32.xlu0 %v1445, 34
        %v1455 = vpop.permute.xlu0 %1454
        %1456 = vrot.lane.b32.xlu0 %v1446, 34
        %v1457 = vpop.permute.xlu0 %1456
        %1458 = vrot.lane.b32.xlu0 %v1447, 34
        %v1459 = vpop.permute.xlu0 %1458
        %vm1460 = vcmask 277504
        %v1461 = vsel %vm1460, %v1453, %v1455
        %v1462 = vsel %vm1460, %v1455, %v1457
        %v1463 = vsel %vm1460, %v1457, %v1459
        %v1467 = vadd.f32 %v1434, %v1461
        %v1468 = vadd.f32 %v1435, %v1462
        %v1469 = vadd.f32 %v1436, %v1463
        %s1470 = scalar_lea.vmem %s2, 280
        %v1471 = vld [vmem:[%s1470] sm:$0xff]
        %1473 = vset.pattern.permute.xlu0 0
        %1474 = vperm.xlu0 %1473, %v1471
        %v1475 = vpop.permute.xlu0 %1474
        %v1477 = vmul.f32 %v543, %v1475
        %v1478 = vmul.f32 %v544, %v1475
        %v1479 = vmul.f32 %v545, %v1475
        %1483 = vrot.lane.b32.xlu0 %v1477, 18
        %v1484 = vpop.permute.xlu0 %1483
        %1485 = vrot.lane.b32.xlu0 %v1478, 18
        %v1486 = vpop.permute.xlu0 %1485
        %1487 = vrot.lane.b32.xlu0 %v1479, 18
        %v1488 = vpop.permute.xlu0 %1487
        %vm1489 = vcmask 146432
        %v1490 = vsel %vm1489, %v1484, %v1486
        %v1491 = vsel %vm1489, %v1486, %v1488
        %v1495 = vadd.f32 %v1467, %v1484
        %v1496 = vadd.f32 %v1468, %v1490
        %v1497 = vadd.f32 %v1469, %v1491
        %s1498 = scalar_lea.vmem %s2, 288
        %v1499 = vld [vmem:[%s1498] sm:$0xff]
        %1501 = vset.pattern.permute.xlu0 0
        %1502 = vperm.xlu0 %1501, %v1499
        %v1503 = vpop.permute.xlu0 %1502
        %v1505 = vmul.f32 %v543, %v1503
        %v1506 = vmul.f32 %v544, %v1503
        %v1507 = vmul.f32 %v545, %v1503
        %1511 = vrot.lane.b32.xlu0 %v1505, 17
        %v1512 = vpop.permute.xlu0 %1511
        %1513 = vrot.lane.b32.xlu0 %v1506, 17
        %v1514 = vpop.permute.xlu0 %1513
        %1515 = vrot.lane.b32.xlu0 %v1507, 17
        %v1516 = vpop.permute.xlu0 %1515
        %vm1517 = vcmask 138240
        %v1518 = vsel %vm1517, %v1512, %v1514
        %v1519 = vsel %vm1517, %v1514, %v1516
        %v1523 = vadd.f32 %v1495, %v1512
        %v1524 = vadd.f32 %v1496, %v1518
        %v1525 = vadd.f32 %v1497, %v1519
        %s1526 = scalar_lea.vmem %s2, 296
        %v1527 = vld [vmem:[%s1526] sm:$0xff]
        %1529 = vset.pattern.permute.xlu0 0
        %1530 = vperm.xlu0 %1529, %v1527
        %v1531 = vpop.permute.xlu0 %1530
        %v1533 = vmul.f32 %v543, %v1531
        %v1534 = vmul.f32 %v544, %v1531
        %v1535 = vmul.f32 %v545, %v1531
        %1539 = vrot.lane.b32.xlu0 %v1533, 16
        %v1540 = vpop.permute.xlu0 %1539
        %1541 = vrot.lane.b32.xlu0 %v1534, 16
        %v1542 = vpop.permute.xlu0 %1541
        %1543 = vrot.lane.b32.xlu0 %v1535, 16
        %v1544 = vpop.permute.xlu0 %1543
        %vm1545 = vcmask 130048
        %v1546 = vsel %vm1545, %v1540, %v1542
        %v1547 = vsel %vm1545, %v1542, %v1544
        %v1551 = vadd.f32 %v1523, %v1540
        %v1552 = vadd.f32 %v1524, %v1546
        %v1553 = vadd.f32 %v1525, %v1547
        %s1554 = scalar_lea.vmem %s2, 304
        %v1555 = vld [vmem:[%s1554] sm:$0xff]
        %1557 = vset.pattern.permute.xlu0 0
        %1558 = vperm.xlu0 %1557, %v1555
        %v1559 = vpop.permute.xlu0 %1558
        %v1561 = vmul.f32 %v543, %v1559
        %v1562 = vmul.f32 %v544, %v1559
        %v1563 = vmul.f32 %v545, %v1559
        %1567 = vrot.lane.b32.xlu0 %v1561, 15
        %v1568 = vpop.permute.xlu0 %1567
        %1569 = vrot.lane.b32.xlu0 %v1562, 15
        %v1570 = vpop.permute.xlu0 %1569
        %1571 = vrot.lane.b32.xlu0 %v1563, 15
        %v1572 = vpop.permute.xlu0 %1571
        %vm1573 = vcmask 121856
        %v1574 = vsel %vm1573, %v1568, %v1570
        %v1575 = vsel %vm1573, %v1570, %v1572
        %v1579 = vadd.f32 %v1551, %v1568
        %v1580 = vadd.f32 %v1552, %v1574
        %v1581 = vadd.f32 %v1553, %v1575
        %s1582 = scalar_lea.vmem %s2, 312
        %v1583 = vld [vmem:[%s1582] sm:$0xff]
        %1585 = vset.pattern.permute.xlu0 0
        %1586 = vperm.xlu0 %1585, %v1583
        %v1587 = vpop.permute.xlu0 %1586
        %v1589 = vmul.f32 %v543, %v1587
        %v1590 = vmul.f32 %v544, %v1587
        %v1591 = vmul.f32 %v545, %v1587
        %1595 = vrot.lane.b32.xlu0 %v1589, 14
        %v1596 = vpop.permute.xlu0 %1595
        %1597 = vrot.lane.b32.xlu0 %v1590, 14
        %v1598 = vpop.permute.xlu0 %1597
        %1599 = vrot.lane.b32.xlu0 %v1591, 14
        %v1600 = vpop.permute.xlu0 %1599
        %vm1601 = vcmask 113664
        %v1602 = vsel %vm1601, %v1596, %v1598
        %v1603 = vsel %vm1601, %v1598, %v1600
        %v1607 = vadd.f32 %v1579, %v1596
        %v1608 = vadd.f32 %v1580, %v1602
        %v1609 = vadd.f32 %v1581, %v1603
        %s1610 = scalar_lea.vmem %s2, 320
        %v1611 = vld [vmem:[%s1610] sm:$0xff]
        %1613 = vset.pattern.permute.xlu0 0
        %1614 = vperm.xlu0 %1613, %v1611
        %v1615 = vpop.permute.xlu0 %1614
        %v1617 = vmul.f32 %v543, %v1615
        %v1618 = vmul.f32 %v544, %v1615
        %v1619 = vmul.f32 %v545, %v1615
        %1623 = vrot.lane.b32.xlu0 %v1617, 13
        %v1624 = vpop.permute.xlu0 %1623
        %1625 = vrot.lane.b32.xlu0 %v1618, 13
        %v1626 = vpop.permute.xlu0 %1625
        %1627 = vrot.lane.b32.xlu0 %v1619, 13
        %v1628 = vpop.permute.xlu0 %1627
        %vm1629 = vcmask 105472
        %v1630 = vsel %vm1629, %v1624, %v1626
        %v1631 = vsel %vm1629, %v1626, %v1628
        %v1635 = vadd.f32 %v1607, %v1624
        %v1636 = vadd.f32 %v1608, %v1630
        %v1637 = vadd.f32 %v1609, %v1631
        %s1638 = scalar_lea.vmem %s2, 328
        %v1639 = vld [vmem:[%s1638] sm:$0xff]
        %1641 = vset.pattern.permute.xlu0 0
        %1642 = vperm.xlu0 %1641, %v1639
        %v1643 = vpop.permute.xlu0 %1642
        %v1645 = vmul.f32 %v543, %v1643
        %v1646 = vmul.f32 %v544, %v1643
        %v1647 = vmul.f32 %v545, %v1643
        %1651 = vrot.lane.b32.xlu0 %v1645, 12
        %v1652 = vpop.permute.xlu0 %1651
        %1653 = vrot.lane.b32.xlu0 %v1646, 12
        %v1654 = vpop.permute.xlu0 %1653
        %1655 = vrot.lane.b32.xlu0 %v1647, 12
        %v1656 = vpop.permute.xlu0 %1655
        %vm1657 = vcmask 97280
        %v1658 = vsel %vm1657, %v1652, %v1654
        %v1659 = vsel %vm1657, %v1654, %v1656
        %v1663 = vadd.f32 %v1635, %v1652
        %v1664 = vadd.f32 %v1636, %v1658
        %v1665 = vadd.f32 %v1637, %v1659
        %s1666 = scalar_lea.vmem %s2, 336
        %v1667 = vld [vmem:[%s1666] sm:$0xff]
        %1669 = vset.pattern.permute.xlu0 0
        %1670 = vperm.xlu0 %1669, %v1667
        %v1671 = vpop.permute.xlu0 %1670
        %v1673 = vmul.f32 %v543, %v1671
        %v1674 = vmul.f32 %v544, %v1671
        %v1675 = vmul.f32 %v545, %v1671
        %1679 = vrot.lane.b32.xlu0 %v1673, 124
        %v1680 = vpop.permute.xlu0 %1679
        %1681 = vrot.lane.b32.xlu0 %v1674, 124
        %v1682 = vpop.permute.xlu0 %1681
        %1683 = vrot.lane.b32.xlu0 %v1675, 124
        %v1684 = vpop.permute.xlu0 %1683
        %v1685 = vsel %vm477, %v1680, %v1682
        %v1686 = vsel %vm477, %v1682, %v1684
        %v1690 = vadd.f32 %v1663, %v1685
        %v1691 = vadd.f32 %v1664, %v1686
        %v1692 = vadd.f32 %v1665, %v1684
        %s1693 = scalar_lea.vmem %s2, 344
        %v1694 = vld [vmem:[%s1693] sm:$0xff]
        %1696 = vset.pattern.permute.xlu0 0
        %1697 = vperm.xlu0 %1696, %v1694
        %v1698 = vpop.permute.xlu0 %1697
        %v1700 = vmul.f32 %v543, %v1698
        %v1701 = vmul.f32 %v544, %v1698
        %v1702 = vmul.f32 %v545, %v1698
        %1706 = vrot.lane.b32.xlu0 %v1700, 123
        %v1707 = vpop.permute.xlu0 %1706
        %1708 = vrot.lane.b32.xlu0 %v1701, 123
        %v1709 = vpop.permute.xlu0 %1708
        %1710 = vrot.lane.b32.xlu0 %v1702, 123
        %v1711 = vpop.permute.xlu0 %1710
        %v1712 = vsel %vm505, %v1707, %v1709
        %v1713 = vsel %vm505, %v1709, %v1711
        %v1717 = vadd.f32 %v1690, %v1712
        %v1718 = vadd.f32 %v1691, %v1713
        %v1719 = vadd.f32 %v1692, %v1711
        %s1720 = scalar_lea.vmem %s2, 352
        %v1721 = vld [vmem:[%s1720] sm:$0xff]
        %1723 = vset.pattern.permute.xlu0 0
        %1724 = vperm.xlu0 %1723, %v1721
        %v1725 = vpop.permute.xlu0 %1724
        %v1727 = vmul.f32 %v543, %v1725
        %v1728 = vmul.f32 %v544, %v1725
        %v1729 = vmul.f32 %v545, %v1725
        %1733 = vrot.lane.b32.xlu0 %v1727, 122
        %v1734 = vpop.permute.xlu0 %1733
        %1735 = vrot.lane.b32.xlu0 %v1728, 122
        %v1736 = vpop.permute.xlu0 %1735
        %1737 = vrot.lane.b32.xlu0 %v1729, 122
        %v1738 = vpop.permute.xlu0 %1737
        %v1739 = vsel %vm533, %v1734, %v1736
        %v1740 = vsel %vm533, %v1736, %v1738
        %v1744 = vadd.f32 %v1717, %v1739
        %v1745 = vadd.f32 %v1718, %v1740
        %v1746 = vadd.f32 %v1719, %v1738
        %s1747 = scalar_lea.vmem %s2, 360
        %v1748 = vld [vmem:[%s1747] sm:$0xff]
        %1750 = vset.pattern.permute.xlu0 0
        %1751 = vperm.xlu0 %1750, %v1748
        %v1752 = vpop.permute.xlu0 %1751
        %v1754 = vmul.f32 %v543, %v1752
        %v1755 = vmul.f32 %v544, %v1752
        %v1756 = vmul.f32 %v545, %v1752
        %1760 = vrot.lane.b32.xlu0 %v1754, 121
        %v1761 = vpop.permute.xlu0 %1760
        %1762 = vrot.lane.b32.xlu0 %v1755, 121
        %v1763 = vpop.permute.xlu0 %1762
        %1764 = vrot.lane.b32.xlu0 %v1756, 121
        %v1765 = vpop.permute.xlu0 %1764
        %vm1766 = vcmask 990208
        %v1767 = vsel %vm1766, %v1761, %v1763
        %v1768 = vsel %vm1766, %v1763, %v1765
        %v1772 = vadd.f32 %v1744, %v1767
        %v1773 = vadd.f32 %v1745, %v1768
        %v1774 = vadd.f32 %v1746, %v1765
        %s1775 = scalar_lea.vmem %s2, 368
        %v1776 = vld [vmem:[%s1775] sm:$0xff]
        %1778 = vset.pattern.permute.xlu0 0
        %1779 = vperm.xlu0 %1778, %v1776
        %v1780 = vpop.permute.xlu0 %1779
        %v1782 = vmul.f32 %v543, %v1780
        %v1783 = vmul.f32 %v544, %v1780
        %v1784 = vmul.f32 %v545, %v1780
        %1788 = vrot.lane.b32.xlu0 %v1782, 120
        %v1789 = vpop.permute.xlu0 %1788
        %1790 = vrot.lane.b32.xlu0 %v1783, 120
        %v1791 = vpop.permute.xlu0 %1790
        %1792 = vrot.lane.b32.xlu0 %v1784, 120
        %v1793 = vpop.permute.xlu0 %1792
        %vm1794 = vcmask 982016
        %v1795 = vsel %vm1794, %v1789, %v1791
        %v1796 = vsel %vm1794, %v1791, %v1793
        %v1800 = vadd.f32 %v1772, %v1795
        %v1801 = vadd.f32 %v1773, %v1796
        %v1802 = vadd.f32 %v1774, %v1793
        %s1803 = scalar_lea.vmem %s2, 376
        %v1804 = vld [vmem:[%s1803] sm:$0xff]
        %1806 = vset.pattern.permute.xlu0 0
        %1807 = vperm.xlu0 %1806, %v1804
        %v1808 = vpop.permute.xlu0 %1807
        %v1810 = vmul.f32 %v543, %v1808
        %v1811 = vmul.f32 %v544, %v1808
        %v1812 = vmul.f32 %v545, %v1808
        %1816 = vrot.lane.b32.xlu0 %v1810, 119
        %v1817 = vpop.permute.xlu0 %1816
        %1818 = vrot.lane.b32.xlu0 %v1811, 119
        %v1819 = vpop.permute.xlu0 %1818
        %1820 = vrot.lane.b32.xlu0 %v1812, 119
        %v1821 = vpop.permute.xlu0 %1820
        %vm1822 = vcmask 973824
        %v1823 = vsel %vm1822, %v1817, %v1819
        %v1824 = vsel %vm1822, %v1819, %v1821
        %v1828 = vadd.f32 %v1800, %v1823
        %v1829 = vadd.f32 %v1801, %v1824
        %v1830 = vadd.f32 %v1802, %v1821
        %s1831 = scalar_lea.vmem %s2, 384
        %v1832 = vld [vmem:[%s1831] sm:$0xff]
        %1834 = vset.pattern.permute.xlu0 0
        %1835 = vperm.xlu0 %1834, %v1832
        %v1836 = vpop.permute.xlu0 %1835
        %v1838 = vmul.f32 %v543, %v1836
        %v1839 = vmul.f32 %v544, %v1836
        %v1840 = vmul.f32 %v545, %v1836
        %1844 = vrot.lane.b32.xlu0 %v1838, 118
        %v1845 = vpop.permute.xlu0 %1844
        %1846 = vrot.lane.b32.xlu0 %v1839, 118
        %v1847 = vpop.permute.xlu0 %1846
        %1848 = vrot.lane.b32.xlu0 %v1840, 118
        %v1849 = vpop.permute.xlu0 %1848
        %vm1850 = vcmask 965632
        %v1851 = vsel %vm1850, %v1845, %v1847
        %v1852 = vsel %vm1850, %v1847, %v1849
        %v1856 = vadd.f32 %v1828, %v1851
        %v1857 = vadd.f32 %v1829, %v1852
        %v1858 = vadd.f32 %v1830, %v1849
        %v1859 = vld [vmem:[%s3] sm:$0xff]
        %1861 = vset.pattern.permute.xlu0 0
        %1862 = vperm.xlu0 %1861, %v1859
        %v1863 = vpop.permute.xlu0 %1862
        %v1865 = vadd.f32 %v1856, %v1863
        %v1866 = vadd.f32 %v1857, %v1863
        %v1867 = vadd.f32 %v1858, %v1863
        %v1868 = vld [vmem:[%s1] sm:$0x7]
        %v1870 = vlaneseq
        %v1871 = vshrl.u32 %v1870, 7
        %v1872 = vsub.s32 0, %v1871
        %v1873 = vrot.slane %v1868, %v1872
        %v1874 = vlaneseq
        %v1875 = vshrl.u32 %v1874, 7
        %v1876 = vsub.s32 1, %v1875
        %v1877 = vrot.slane %v1868, %v1876
        %v1878 = vlaneseq
        %v1879 = vshrl.u32 %v1878, 7
        %v1880 = vsub.s32 2, %v1879
        %v1881 = vrot.slane %v1868, %v1880
        %1882 = vrot.lane.b32.xlu0 %v1873, 19
        %v1883 = vpop.permute.xlu0 %1882
        %1884 = vrot.lane.b32.xlu0 %v1877, 19
        %v1885 = vpop.permute.xlu0 %1884
        %1886 = vrot.lane.b32.xlu0 %v1881, 19
        %v1887 = vpop.permute.xlu0 %1886
        %vm1888 = vcmask 154624
        %v1889 = vsel %vm1888, %v1883, %v1885
        %v1890 = vsel %vm1888, %v1885, %v1887
        %v1894 = vmul.f32 %v1865, %v1883
        %v1895 = vmul.f32 %v1866, %v1889
        %v1896 = vmul.f32 %v1867, %v1890
        %1900 = vrot.lane.b32.xlu0 %v1894, 109
        %v1901 = vpop.permute.xlu0 %1900
        %1902 = vrot.lane.b32.xlu0 %v1895, 109
        %v1903 = vpop.permute.xlu0 %1902
        %1904 = vrot.lane.b32.xlu0 %v1896, 109
        %v1905 = vpop.permute.xlu0 %1904
        %vm1906 = vcmask 891904
        %v1907 = vsel %vm1906, %v1901, %v1903
        %v1908 = vsel %vm1906, %v1903, %v1905
        %v1912 = vadd.f32 %v1907, %v1908
        %vm1913 = vcmask 785408
        %v1914 = vsel %vm1913, %v1905, 0.0
        %v1915 = vadd.f32 %v1912, %v1914
        %1916 = vadd.xlane.f32.xlu0 %v1915
        %v1917 = vpop.xlane.xlu0 %1916
        %v1918 = vmul.f32 %v1917, 0.00390625
        %v1919 = vsub.f32 %v1865, %v1918
        %v1920 = vsub.f32 %v1866, %v1918
        %v1921 = vsub.f32 %v1867, %v1918
        %v1922 = vmul.f32 %v1919, %v1883
        %v1923 = vmul.f32 %v1920, %v1889
        %v1924 = vmul.f32 %v1921, %v1890
        %v1925 = vmul.f32 %v1922, %v1922
        %v1926 = vmul.f32 %v1923, %v1923
        %v1927 = vmul.f32 %v1924, %v1924
        %1931 = vrot.lane.b32.xlu0 %v1925, 109
        %v1932 = vpop.permute.xlu0 %1931
        %1933 = vrot.lane.b32.xlu0 %v1926, 109
        %v1934 = vpop.permute.xlu0 %1933
        %1935 = vrot.lane.b32.xlu0 %v1927, 109
        %v1936 = vpop.permute.xlu0 %1935
        %v1937 = vsel %vm1906, %v1932, %v1934
        %v1938 = vsel %vm1906, %v1934, %v1936
        %v1942 = vadd.f32 %v1937, %v1938
        %v1943 = vsel %vm1913, %v1936, 0.0
        %v1944 = vadd.f32 %v1942, %v1943
        %1945 = vadd.xlane.f32.xlu0 %v1944
        %v1946 = vpop.xlane.xlu0 %1945
        %v1947 = vmul.f32 %v1946, 0.00390625
        %v1948 = vld [vmem:[%s4] sm:$0xff]
        %v1949 = vadd.f32 %v1947, 1e-05
        %v1950 = vrsqrt.pop %v1949
        %v1951 = vmul.f32 %v1948, %v1950
        %v1952 = vld [vmem:[%s5] sm:$0xff]
        %v1953 = vmul.f32 %v1918, %v1951
        %v1954 = vsub.f32 %v1952, %v1953
        %1956 = vset.pattern.permute.xlu0 0
        %1957 = vperm.xlu0 %1956, %v1951
        %v1958 = vpop.permute.xlu0 %1957
        %v1960 = vmul.f32 %v1865, %v1958
        %v1961 = vmul.f32 %v1866, %v1958
        %v1962 = vmul.f32 %v1867, %v1958
        %1964 = vset.pattern.permute.xlu0 0
        %1965 = vperm.xlu0 %1964, %v1954
        %v1966 = vpop.permute.xlu0 %1965
        %v1968 = vadd.f32 %v1960, %v1966
        %v1969 = vadd.f32 %v1961, %v1966
        %v1970 = vadd.f32 %v1962, %v1966
        %v1971 = vpack.c.bf16 %v1968, %v1968
        %v1972 = vpack.c.bf16 %v1969, %v1969
        %v1973 = vpack.c.bf16 %v1970, %v1970
        %v1974 = vld [vmem:[%s6] sm:$0xf]
        %v1975 = vld [vmem:[%s6 + $0x4] sm:$0xf]
        %v1976 = vld [vmem:[%s6 + $0x8] sm:$0xf]
        %v1977 = vld [vmem:[%s6 + $0xc] sm:$0xf]
        %v1978 = vld [vmem:[%s7] sm:$0xff]
        %v1979 = vld [vmem:[%s7 + $0x8] sm:$0xff]
        %v1980 = vld [vmem:[%s7 + $0x10] sm:$0xff]
        %v1981 = vld [vmem:[%s7 + $0x18] sm:$0xff]
        %1983 = vset.pattern.permute.xlu0 0
        %1984 = vperm.xlu0 %1983, %v1978
        %v1985 = vpop.permute.xlu0 %1984
        %1988 = vset.pattern.permute.xlu0 0
        %1989 = vperm.xlu0 %1988, %v1979
        %v1990 = vpop.permute.xlu0 %1989
        %1993 = vset.pattern.permute.xlu0 0
        %1994 = vperm.xlu0 %1993, %v1980
        %v1995 = vpop.permute.xlu0 %1994
        %1998 = vset.pattern.permute.xlu0 0
        %1999 = vperm.xlu0 %1998, %v1981
        %v2000 = vpop.permute.xlu0 %1999
        %v2006 = vunpack.c.l.b16 %v1974
        %v2007 = vunpack.c.l.b16 %v1975
        %v2008 = vunpack.c.l.b16 %v1976
        %v2009 = vunpack.c.l.b16 %v1977
        %v2010 = vpack.c.b16 %v2007, %v2006
        %v2011 = vpack.c.b16 %v2009, %v2008
        %2015 = vrot.lane.b32.xlu0 %v1971, 109
        %v2016 = vpop.permute.xlu0 %2015
        %2017 = vrot.lane.b32.xlu0 %v1972, 109
        %v2018 = vpop.permute.xlu0 %2017
        %2019 = vrot.lane.b32.xlu0 %v1973, 109
        %v2020 = vpop.permute.xlu0 %2019
        %vm2021 = vcmask 891904
        %v2022 = vsel %vm2021, %v2016, %v2018
        %v2023 = vsel %vm2021, %v2018, %v2020
        %vm2024 = vcmask 64512
        %v2026 = vsel %vm2024, %v2010, 0
        %v2029 = vsel %vm2024, %v2011, 0
        %vm2031 = vcmask 1043456
        %v2033 = vsel %vm2031, %v2022, 0
        %v2036 = vsel %vm2031, %v2023, 0
        %v2039 = vsel %vm2031, %v2020, 0
        %2041 = vmatprep.subr.bf16.mxu0 0
        %2042 = vmatpush1.bf16.msra.mxu0 0
        %2043 = vmatprep.subr.bf16.mxu0 0
        %2044 = vmatpush1.bf16.msra.mxu0 0
        %2045 = vmatprep.subr.bf16.mxu0 0
        %2046 = vmatpush1.bf16.msra.mxu0 0
        %2047 = vmatprep.subr.bf16.mxu0 0
        %2048 = vmatpush1.bf16.msra.mxu0 0
        %2049 = vmatprep.subr.bf16.mxu0 0
        %2050 = vmatpush1.bf16.msra.mxu0 0
        %2051 = vmatprep.subr.bf16.mxu0 0
        %2052 = vmatpush1.bf16.msra.mxu0 0
        %2053 = vmatprep.subr.bf16.mxu0 0
        %2054 = vmatpush1.bf16.msra.mxu0 0
        %2055 = vmatprep.subr.bf16.mxu0 %v2036
        %2056 = vmatpush1.bf16.msra.mxu0 %v2033
        %2057 = vmatprep.subr.bf16.mxu0 0
        %2058 = vmatpush2.bf16.msra.mxu0 0
        %2059 = vmatprep.subr.bf16.mxu0 0
        %2060 = vmatpush2.bf16.msra.mxu0 0
        %2061 = vmatprep.subr.bf16.mxu0 0
        %2062 = vmatpush2.bf16.msra.mxu0 0
        %2063 = vmatprep.subr.bf16.mxu0 0
        %2064 = vmatpush2.bf16.msra.mxu0 0
        %2065 = vmatprep.subr.bf16.mxu0 0
        %2066 = vmatpush2.bf16.msra.mxu0 0
        %2067 = vmatprep.subr.bf16.mxu0 0
        %2068 = vmatpush2.bf16.msra.mxu0 0
        %2069 = vmatprep.subr.bf16.mxu0 0
        %2070 = vmatpush2.bf16.msra.mxu0 0
        %2071 = vmatprep.subr.bf16.mxu0 0
        %2072 = vmatpush2.bf16.msra.mxu0 0
        %2073 = vmatprep.mubr.bf16.mxu0 0
        %2074 = vmatmul.mubr.bf16.gmra.mxu0 %v2026
        %v2075 = vpop.f32.mrf.mxu0
        %v2076 = vadd.f32 %v1985, %v2075
        %v2077 = vpop.f32.mrf.mxu0
        %v2078 = vadd.f32 %v1985, %v2077
        %v2079 = vpop.f32.mrf.mxu0
        %v2080 = vadd.f32 %v1990, %v2079
        %v2081 = vpop.f32.mrf.mxu0
        %v2082 = vadd.f32 %v1990, %v2081
        %2083 = vmatprep.mubr.bf16.mxu0 0
        %2084 = vmatmul.mubr.bf16.gmra.mxu0 %v2029
        %v2085 = vpop.f32.mrf.mxu0
        %v2086 = vadd.f32 %v1995, %v2085
        %v2087 = vpop.f32.mrf.mxu0
        %v2088 = vadd.f32 %v1995, %v2087
        %v2089 = vpop.f32.mrf.mxu0
        %v2090 = vadd.f32 %v2000, %v2089
        %v2091 = vpop.f32.mrf.mxu0
        %v2092 = vadd.f32 %v2000, %v2091
        %2093 = vdwg.mxu0
        %2094 = vmatprep.subr.bf16.mxu0 0
        %2095 = vmatpush1.bf16.msra.mxu0 0
        %2096 = vmatprep.subr.bf16.mxu0 0
        %2097 = vmatpush1.bf16.msra.mxu0 0
        %2098 = vmatprep.subr.bf16.mxu0 0
        %2099 = vmatpush1.bf16.msra.mxu0 0
        %2100 = vmatprep.subr.bf16.mxu0 0
        %2101 = vmatpush1.bf16.msra.mxu0 0
        %2102 = vmatprep.subr.bf16.mxu0 0
        %2103 = vmatpush1.bf16.msra.mxu0 0
        %2104 = vmatprep.subr.bf16.mxu0 0
        %2105 = vmatpush1.bf16.msra.mxu0 0
        %2106 = vmatprep.subr.bf16.mxu0 0
        %2107 = vmatpush1.bf16.msra.mxu0 0
        %2108 = vmatprep.subr.bf16.mxu0 0
        %2109 = vmatpush1.bf16.msra.mxu0 %v2039
        %2110 = vmatprep.subr.bf16.mxu0 0
        %2111 = vmatpush2.bf16.msra.mxu0 0
        %2112 = vmatprep.subr.bf16.mxu0 0
        %2113 = vmatpush2.bf16.msra.mxu0 0
        %2114 = vmatprep.subr.bf16.mxu0 0
        %2115 = vmatpush2.bf16.msra.mxu0 0
        %2116 = vmatprep.subr.bf16.mxu0 0
        %2117 = vmatpush2.bf16.msra.mxu0 0
        %2118 = vmatprep.subr.bf16.mxu0 0
        %2119 = vmatpush2.bf16.msra.mxu0 0
        %2120 = vmatprep.subr.bf16.mxu0 0
        %2121 = vmatpush2.bf16.msra.mxu0 0
        %2122 = vmatprep.subr.bf16.mxu0 0
        %2123 = vmatpush2.bf16.msra.mxu0 0
        %2124 = vmatprep.subr.bf16.mxu0 0
        %2125 = vmatpush2.bf16.msra.mxu0 0
        %2126 = vmatprep.mubr.bf16.mxu0 0
        %2127 = vmatmul.mubr.bf16.gmra.mxu0 %v2026
        %v2128 = vpop.f32.mrf.mxu0
        %v2129 = vadd.f32 %v1985, %v2128
        %v2130 = vpop.f32.mrf.mxu0
        %v2131 = vpop.f32.mrf.mxu0
        %v2132 = vadd.f32 %v1990, %v2131
        %v2133 = vpop.f32.mrf.mxu0
        %2134 = vmatprep.mubr.bf16.mxu0 0
        %2135 = vmatmul.mubr.bf16.gmra.mxu0 %v2029
        %v2136 = vpop.f32.mrf.mxu0
        %v2137 = vadd.f32 %v1995, %v2136
        %v2138 = vpop.f32.mrf.mxu0
        %v2139 = vpop.f32.mrf.mxu0
        %v2140 = vadd.f32 %v2000, %v2139
        %v2141 = vpop.f32.mrf.mxu0
        %2142 = vdwg.mxu0
        %v2143 = vmul.f32 %v2076, %v2076
        %v2144 = vmul.f32 %v2078, %v2078
        %v2145 = vmul.f32 %v2129, %v2129
        %v2146 = vmul.f32 %v2080, %v2080
        %v2147 = vmul.f32 %v2082, %v2082
        %v2148 = vmul.f32 %v2132, %v2132
        %v2149 = vmul.f32 %v2086, %v2086
        %v2150 = vmul.f32 %v2088, %v2088
        %v2151 = vmul.f32 %v2137, %v2137
        %v2152 = vmul.f32 %v2090, %v2090
        %v2153 = vmul.f32 %v2092, %v2092
        %v2154 = vmul.f32 %v2140, %v2140
        %v2155 = vmul.f32 %v2076, %v2143
        %v2156 = vmul.f32 %v2078, %v2144
        %v2157 = vmul.f32 %v2129, %v2145
        %v2158 = vmul.f32 %v2080, %v2146
        %v2159 = vmul.f32 %v2082, %v2147
        %v2160 = vmul.f32 %v2132, %v2148
        %v2161 = vmul.f32 %v2086, %v2149
        %v2162 = vmul.f32 %v2088, %v2150
        %v2163 = vmul.f32 %v2137, %v2151
        %v2164 = vmul.f32 %v2090, %v2152
        %v2165 = vmul.f32 %v2092, %v2153
        %v2166 = vmul.f32 %v2140, %v2154
        %v2167 = vmul.f32 %v2155, 0.044715
        %v2168 = vmul.f32 %v2156, 0.044715
        %v2169 = vmul.f32 %v2157, 0.044715
        %v2170 = vmul.f32 %v2158, 0.044715
        %v2171 = vmul.f32 %v2159, 0.044715
        %v2172 = vmul.f32 %v2160, 0.044715
        %v2173 = vmul.f32 %v2161, 0.044715
        %v2174 = vmul.f32 %v2162, 0.044715
        %v2175 = vmul.f32 %v2163, 0.044715
        %v2176 = vmul.f32 %v2164, 0.044715
        %v2177 = vmul.f32 %v2165, 0.044715
        %v2178 = vmul.f32 %v2166, 0.044715
        %v2179 = vadd.f32 %v2076, %v2167
        %v2180 = vadd.f32 %v2078, %v2168
        %v2181 = vadd.f32 %v2129, %v2169
        %v2182 = vadd.f32 %v2080, %v2170
        %v2183 = vadd.f32 %v2082, %v2171
        %v2184 = vadd.f32 %v2132, %v2172
        %v2185 = vadd.f32 %v2086, %v2173
        %v2186 = vadd.f32 %v2088, %v2174
        %v2187 = vadd.f32 %v2137, %v2175
        %v2188 = vadd.f32 %v2090, %v2176
        %v2189 = vadd.f32 %v2092, %v2177
        %v2190 = vadd.f32 %v2140, %v2178
        %v2191 = vmul.f32 %v2179, 0.7978846
        %v2192 = vmul.f32 %v2180, 0.7978846
        %v2193 = vmul.f32 %v2181, 0.7978846
        %v2194 = vmul.f32 %v2182, 0.7978846
        %v2195 = vmul.f32 %v2183, 0.7978846
        %v2196 = vmul.f32 %v2184, 0.7978846
        %v2197 = vmul.f32 %v2185, 0.7978846
        %v2198 = vmul.f32 %v2186, 0.7978846
        %v2199 = vmul.f32 %v2187, 0.7978846
        %v2200 = vmul.f32 %v2188, 0.7978846
        %v2201 = vmul.f32 %v2189, 0.7978846
        %v2202 = vmul.f32 %v2190, 0.7978846
        %v2203 = vtanh.pop %v2191
        %v2204 = vtanh.pop %v2192
        %v2205 = vtanh.pop %v2193
        %v2206 = vtanh.pop %v2194
        %v2207 = vtanh.pop %v2195
        %v2208 = vtanh.pop %v2196
        %v2209 = vtanh.pop %v2197
        %v2210 = vtanh.pop %v2198
        %v2211 = vtanh.pop %v2199
        %v2212 = vtanh.pop %v2200
        %v2213 = vtanh.pop %v2201
        %v2214 = vtanh.pop %v2202
        %v2215 = vadd.f32 %v2203, 1.0
        %v2216 = vadd.f32 %v2204, 1.0
        %v2217 = vadd.f32 %v2205, 1.0
        %v2218 = vadd.f32 %v2206, 1.0
        %v2219 = vadd.f32 %v2207, 1.0
        %v2220 = vadd.f32 %v2208, 1.0
        %v2221 = vadd.f32 %v2209, 1.0
        %v2222 = vadd.f32 %v2210, 1.0
        %v2223 = vadd.f32 %v2211, 1.0
        %v2224 = vadd.f32 %v2212, 1.0
        %v2225 = vadd.f32 %v2213, 1.0
        %v2226 = vadd.f32 %v2214, 1.0
        %v2227 = vmul.f32 %v2215, 0.5
        %v2228 = vmul.f32 %v2216, 0.5
        %v2229 = vmul.f32 %v2217, 0.5
        %v2230 = vmul.f32 %v2218, 0.5
        %v2231 = vmul.f32 %v2219, 0.5
        %v2232 = vmul.f32 %v2220, 0.5
        %v2233 = vmul.f32 %v2221, 0.5
        %v2234 = vmul.f32 %v2222, 0.5
        %v2235 = vmul.f32 %v2223, 0.5
        %v2236 = vmul.f32 %v2224, 0.5
        %v2237 = vmul.f32 %v2225, 0.5
        %v2238 = vmul.f32 %v2226, 0.5
        %v2239 = vmul.f32 %v2076, %v2227
        %v2240 = vmul.f32 %v2078, %v2228
        %v2241 = vmul.f32 %v2129, %v2229
        %v2242 = vmul.f32 %v2080, %v2230
        %v2243 = vmul.f32 %v2082, %v2231
        %v2244 = vmul.f32 %v2132, %v2232
        %v2245 = vmul.f32 %v2086, %v2233
        %v2246 = vmul.f32 %v2088, %v2234
        %v2247 = vmul.f32 %v2137, %v2235
        %v2248 = vmul.f32 %v2090, %v2236
        %v2249 = vmul.f32 %v2092, %v2237
        %v2250 = vmul.f32 %v2140, %v2238
        %v2251 = vld [vmem:[%s8] sm:$0xf]
        %v2252 = vpack.c.bf16 %v2242, %v2239
        %v2253 = vpack.c.bf16 %v2243, %v2240
        %v2254 = vpack.c.bf16 %v2244, %v2241
        %v2255 = vpack.c.bf16 %v2248, %v2245
        %v2256 = vpack.c.bf16 %v2249, %v2246
        %v2257 = vpack.c.bf16 %v2250, %v2247
        %v2258 = vld [vmem:[%s9] sm:$0xff]
        %2260 = vset.pattern.permute.xlu0 0
        %2261 = vperm.xlu0 %2260, %v2258
        %v2262 = vpop.permute.xlu0 %2261
        %vm2264 = vcmask 261120
        %v2266 = vsel %vm2264, %v2251, 0
        %2268 = vmatprep.subr.bf16.mxu0 0
        %2269 = vmatpush1.bf16.msra.mxu0 0
        %2270 = vmatprep.subr.bf16.mxu0 0
        %2271 = vmatpush1.bf16.msra.mxu0 0
        %2272 = vmatprep.subr.bf16.mxu0 0
        %2273 = vmatpush1.bf16.msra.mxu0 0
        %2274 = vmatprep.subr.bf16.mxu0 0
        %2275 = vmatpush1.bf16.msra.mxu0 0
        %2276 = vmatprep.subr.bf16.mxu0 0
        %2277 = vmatpush1.bf16.msra.mxu0 0
        %2278 = vmatprep.subr.bf16.mxu0 0
        %2279 = vmatpush1.bf16.msra.mxu0 0
        %2280 = vmatprep.subr.bf16.mxu0 %v2256
        %2281 = vmatpush1.bf16.msra.mxu0 %v2255
        %2282 = vmatprep.subr.bf16.mxu0 %v2253
        %2283 = vmatpush1.bf16.msra.mxu0 %v2252
        %2284 = vmatprep.subr.bf16.mxu0 0
        %2285 = vmatpush2.bf16.msra.mxu0 0
        %2286 = vmatprep.subr.bf16.mxu0 0
        %2287 = vmatpush2.bf16.msra.mxu0 0
        %2288 = vmatprep.subr.bf16.mxu0 0
        %2289 = vmatpush2.bf16.msra.mxu0 0
        %2290 = vmatprep.subr.bf16.mxu0 0
        %2291 = vmatpush2.bf16.msra.mxu0 0
        %2292 = vmatprep.subr.bf16.mxu0 0
        %2293 = vmatpush2.bf16.msra.mxu0 0
        %2294 = vmatprep.subr.bf16.mxu0 0
        %2295 = vmatpush2.bf16.msra.mxu0 0
        %2296 = vmatprep.subr.bf16.mxu0 0
        %2297 = vmatpush2.bf16.msra.mxu0 0
        %2298 = vmatprep.subr.bf16.mxu0 0
        %2299 = vmatpush2.bf16.msra.mxu0 0
        %2300 = vmatprep.mubr.bf16.mxu0 0
        %2301 = vmatmul.mubr.bf16.gmra.mxu0 %v2266
        %v2302 = vpop.f32.mrf.mxu0
        %v2303 = vadd.f32 %v2262, %v2302
        %v2304 = vpop.f32.mrf.mxu0
        %v2305 = vadd.f32 %v2262, %v2304
        %v2306 = vpop.f32.mrf.mxu0
        %v2307 = vpop.f32.mrf.mxu0
        %2308 = vdwg.mxu0
        %2309 = vmatprep.subr.bf16.mxu0 0
        %2310 = vmatpush1.bf16.msra.mxu0 0
        %2311 = vmatprep.subr.bf16.mxu0 0
        %2312 = vmatpush1.bf16.msra.mxu0 0
        %2313 = vmatprep.subr.bf16.mxu0 0
        %2314 = vmatpush1.bf16.msra.mxu0 0
        %2315 = vmatprep.subr.bf16.mxu0 0
        %2316 = vmatpush1.bf16.msra.mxu0 0
        %2317 = vmatprep.subr.bf16.mxu0 0
        %2318 = vmatpush1.bf16.msra.mxu0 0
        %2319 = vmatprep.subr.bf16.mxu0 0
        %2320 = vmatpush1.bf16.msra.mxu0 0
        %2321 = vmatprep.subr.bf16.mxu0 0
        %2322 = vmatpush1.bf16.msra.mxu0 %v2257
        %2323 = vmatprep.subr.bf16.mxu0 0
        %2324 = vmatpush1.bf16.msra.mxu0 %v2254
        %2325 = vmatprep.subr.bf16.mxu0 0
        %2326 = vmatpush2.bf16.msra.mxu0 0
        %2327 = vmatprep.subr.bf16.mxu0 0
        %2328 = vmatpush2.bf16.msra.mxu0 0
        %2329 = vmatprep.subr.bf16.mxu0 0
        %2330 = vmatpush2.bf16.msra.mxu0 0
        %2331 = vmatprep.subr.bf16.mxu0 0
        %2332 = vmatpush2.bf16.msra.mxu0 0
        %2333 = vmatprep.subr.bf16.mxu0 0
        %2334 = vmatpush2.bf16.msra.mxu0 0
        %2335 = vmatprep.subr.bf16.mxu0 0
        %2336 = vmatpush2.bf16.msra.mxu0 0
        %2337 = vmatprep.subr.bf16.mxu0 0
        %2338 = vmatpush2.bf16.msra.mxu0 0
        %2339 = vmatprep.subr.bf16.mxu0 0
        %2340 = vmatpush2.bf16.msra.mxu0 0
        %2341 = vmatprep.mubr.bf16.mxu0 0
        %2342 = vmatmul.mubr.bf16.gmra.mxu0 %v2266
        %v2343 = vpop.f32.mrf.mxu0
        %v2344 = vadd.f32 %v2262, %v2343
        %v2345 = vpop.f32.mrf.mxu0
        %v2346 = vpop.f32.mrf.mxu0
        %v2347 = vpop.f32.mrf.mxu0
        %2348 = vdwg.mxu0
        %2353 = vrot.lane.b32.xlu0 %v542, 40
        %v2354 = vpop.permute.xlu0 %2353
        %2355 = vrot.lane.b32.xlu0 %v543, 40
        %v2356 = vpop.permute.xlu0 %2355
        %2357 = vrot.lane.b32.xlu0 %v544, 40
        %v2358 = vpop.permute.xlu0 %2357
        %2359 = vrot.lane.b32.xlu0 %v545, 40
        %v2360 = vpop.permute.xlu0 %2359
        %v2361 = vsel %vm1262, %v2354, %v2356
        %v2362 = vsel %vm1262, %v2356, %v2358
        %v2363 = vsel %vm1262, %v2358, %v2360
        %v2367 = vadd.f32 %v2303, %v2361
        %v2368 = vadd.f32 %v2305, %v2362
        %v2369 = vadd.f32 %v2344, %v2363
        %2371 = vrot.lane.b32.xlu0 %v2367, 125
        %v2372 = vpop.permute.xlu0 %2371
        %2374 = vst.msk [vmem:[%s352] sm:$0xff] %vm1545, %v2372
        %2375 = vrot.lane.b32.xlu0 %v2367, 119
        %v2376 = vpop.permute.xlu0 %2375
        %vm2378 = vcmask 261248
        %2379 = vst.msk [vmem:[%s352] sm:$0xff] %vm2378, %v2376
        %2380 = vrot.lane.b32.xlu0 %v2367, 113
        %v2381 = vpop.permute.xlu0 %2380
        %vm2383 = vcmask 392448
        %2384 = vst.msk [vmem:[%s352] sm:$0xff] %vm2383, %v2381
        %2385 = vrot.lane.b32.xlu0 %v2367, 107
        %v2386 = vpop.permute.xlu0 %2385
        %vm2388 = vcmask 523648
        %2389 = vst.msk [vmem:[%s352] sm:$0xff] %vm2388, %v2386
        %2390 = vrot.lane.b32.xlu0 %v2367, 101
        %v2391 = vpop.permute.xlu0 %2390
        %vm2393 = vcmask 654848
        %2394 = vst.msk [vmem:[%s352] sm:$0xff] %vm2393, %v2391
        %2396 = vrot.lane.b32.xlu0 %v2367, 95
        %v2397 = vpop.permute.xlu0 %2396
        %2398 = vrot.lane.b32.xlu0 %v2368, 95
        %v2399 = vpop.permute.xlu0 %2398
        %vm2400 = vcmask 777216
        %v2401 = vsel %vm2400, %v2397, %v2399
        %vm2403 = vcmask 786048
        %2404 = vst.msk [vmem:[%s352] sm:$0xff] %vm2403, %v2401
        %2405 = vrot.lane.b32.xlu0 %v2368, 89
        %v2406 = vpop.permute.xlu0 %2405
        %vm2408 = vcmask 917248
        %2409 = vst.msk [vmem:[%s352] sm:$0xff] %vm2408, %v2406
        %2410 = vrot.lane.b32.xlu0 %v2368, 83
        %v2411 = vpop.permute.xlu0 %2410
        %vm2413 = vcmask 1048448
        %2414 = vst.msk [vmem:[%s352] sm:$0xff] %vm2413, %v2411
        %2415 = vrot.lane.b32.xlu0 %v2368, 77
        %v2416 = vpop.permute.xlu0 %2415
        %2418 = vst.msk [vmem:[%s352 + $0x8] sm:$0xff] %vm1545, %v2416
        %2419 = vrot.lane.b32.xlu0 %v2368, 71
        %v2420 = vpop.permute.xlu0 %2419
        %2422 = vst.msk [vmem:[%s352 + $0x8] sm:$0xff] %vm2378, %v2420
        %2423 = vrot.lane.b32.xlu0 %v2368, 65
        %v2424 = vpop.permute.xlu0 %2423
        %2426 = vst.msk [vmem:[%s352 + $0x8] sm:$0xff] %vm2383, %v2424
        %2428 = vrot.lane.b32.xlu0 %v2368, 59
        %v2429 = vpop.permute.xlu0 %2428
        %2430 = vrot.lane.b32.xlu0 %v2369, 59
        %v2431 = vpop.permute.xlu0 %2430
        %v2432 = vsel %vm1130, %v2429, %v2431
        %2434 = vst.msk [vmem:[%s352 + $0x8] sm:$0xff] %vm2388, %v2432
        %2435 = vrot.lane.b32.xlu0 %v2369, 53
        %v2436 = vpop.permute.xlu0 %2435
        %2438 = vst.msk [vmem:[%s352 + $0x8] sm:$0xff] %vm2393, %v2436
        %2439 = vrot.lane.b32.xlu0 %v2369, 47
        %v2440 = vpop.permute.xlu0 %2439
        %2442 = vst.msk [vmem:[%s352 + $0x8] sm:$0xff] %vm2403, %v2440
        %2443 = vrot.lane.b32.xlu0 %v2369, 41
        %v2444 = vpop.permute.xlu0 %2443
        %2446 = vst.msk [vmem:[%s352 + $0x8] sm:$0xff] %vm2408, %v2444
        %2447 = vrot.lane.b32.xlu0 %v2369, 35
        %v2448 = vpop.permute.xlu0 %2447
        %2450 = vst.msk [vmem:[%s352 + $0x8] sm:$0xff] %vm2413, %v2448
        %s2451 = sand.u32 %s247, 1
        %s2452 = scalar_lea.sflag [#allocation3], %s2451
        %s2453 = sand.u32 %s247, 1
        %s2454 = smul.addr %s2453, 16
        %s2455 = scalar_lea.vmem [#allocation2], %s2454
        // Predicated region
        $region61: #{tpu_custom_call.1} parent=59 // pred_check
          %p2456 = pneg %p257
        $region62: #{tpu_custom_call.1} parent=59 // pred_check_branch
          %2458 = sbr.rel (%p2456) target = $region64
        $region63: #{tpu_custom_call.1} parent=59 // pred_region
          %s2460 = ssub.s32 256, 256
          %2461 = vsyncadd %s2452, %s2460
          %s2462 = smul.addr %s24, 2
          %s2463 = smul.addr %s2462, 128
          %s2464 = scalar_lea.hbm %s10, %s2463
          %s2466 = sshll.u32 %s2455, 4
          %s2467 = int_to_ptr.vmem [resolvable:$true] %s2466
          %2469 = dma.vmem_to_hbm [thread:$0]  %s2467, 256, %s2464, %s2452
        $region64: #{tpu_custom_call.1} parent=59 // pred_fallthru
          _
      $region60: #{tpu_custom_call.1} parent=5 // pred_fallthru
        _
      %p2470 = scmp.le.s32.totalorder 2, %s19
      // Predicated region
      $region65: #{tpu_custom_call.1} parent=5 // pred_check
        %p2471 = pneg %p2470
      $region66: #{tpu_custom_call.1} parent=5 // pred_check_branch
        %2473 = sbr.rel (%p2471) target = $region68
      $region67: #{tpu_custom_call.1} parent=5 // pred_region
        %s2474 = ssub.s32 %s19, 2
        // Predicated region
        $region69: #{tpu_custom_call.1} parent=67 // pred_check
          %p2475 = pneg %p263
        $region70: #{tpu_custom_call.1} parent=67 // pred_check_branch
          %2477 = sbr.rel (%p2475) target = $region72
        $region71: #{tpu_custom_call.1} parent=67 // pred_region
          %s2478 = sand.u32 %s248, 1
          %s2479 = scalar_lea.sflag [#allocation3], %s2478
          %s2480 = sand.u32 %s248, 1
          %s2481 = smul.addr %s2480, 16
          %s2482 = scalar_lea.vmem [#allocation2], %s2481
          %2483 = dma.done %s2479, 256
        $region72: #{tpu_custom_call.1} parent=67 // pred_fallthru
          _
      $region68: #{tpu_custom_call.1} parent=5 // pred_fallthru
        _
    $region6: #{tpu_custom_call.1} parent=1 // loop_footer
      %s23 = sadd.s32 1, %s19
    $region7: #{tpu_custom_call.1} parent=1 // loop_footer_branch
      %18 = sbr.rel target = $region3
    $region8: #{tpu_custom_call.1} parent=1 // loop_exit
      _
    %2484 = vsyncpa [#allocation3], 1
    %s2485 = scalar_lea.sflag [#allocation3], 1
    %2486 = vsyncpa %s2485, 1

</llo_original>
